<compile_context>
chip_gen: v7x
topology: tpu7x:2x2x1
jax: 0.10.0
libtpu: 0.0.40
codegen_flags: <defaults>
</compile_context>

<pallas_src>
import functools
import math

import jax
import jax.numpy as jnp
from jax.experimental import pallas as pl
from jax.experimental.pallas import tpu as pltpu

# Small robustness shim for older jax versions that used the TPU-prefixed name.
_CompilerParams = getattr(pltpu, "CompilerParams", None) or getattr(pltpu, "TPUCompilerParams")

# Preferred tile sizes: 256-wide M/N tiles fill the 256x256 MXU on v6e/v7x
# (drop to 128 on v5e if desired); K tiles of 512 keep the DMA pipeline busy.
_TM, _TN, _TK = 256, 256, 512
_LN_ROWS = 512
_VMEM_LIMIT = 32 * 1024 * 1024  # explicit budget; fits v7x's 64 MiB VMEM with headroom


def _fit_sub(dim, pref):
    """Tile for a second-to-last (sublane) block dim: multiple of 8 dividing dim, else full."""
    if dim % 8 != 0:
        return dim
    t = max(8, (min(pref, dim) // 8) * 8)
    while dim % t != 0:
        t -= 8
    return t


def _fit_lane(dim, pref):
    """Tile for a last (lane) block dim: multiple of 128 dividing dim, else full."""
    if dim % 128 != 0:
        return dim
    t = max(128, (min(pref, dim) // 128) * 128)
    while dim % t != 0:
        t -= 128
    return t


# ----------------------------- Pallas kernels ------------------------------

def _matmul_bias_kernel(x_ref, w_ref, b_ref, o_ref, acc_ref, *, activation):
    @pl.when(pl.program_id(2) == 0)
    def _init():
        acc_ref[...] = jnp.zeros_like(acc_ref)

    acc_ref[...] += jnp.dot(x_ref[...], w_ref[...], preferred_element_type=jnp.float32)

    @pl.when(pl.program_id(2) == pl.num_programs(2) - 1)
    def _finalize():
        out = acc_ref[...] + b_ref[...]          # (1, tn) broadcasts over (tm, tn)
        if activation == "relu":
            out = jnp.maximum(out, 0.0)
        o_ref[...] = out.astype(o_ref.dtype)


def linear(x2d, w, b, activation=None):
    """x2d: (M, K), w: (K, N), b: (N,) -> (M, N) f32. Tiled, bf16 MXU operands, f32 accum."""
    M, K = x2d.shape
    _, N = w.shape
    tm = _fit_sub(M, _TM)
    tn = _fit_lane(N, _TN)
    tk = _fit_lane(K, _TK)
    grid = (M // tm, N // tn, K // tk)
    kern = functools.partial(_matmul_bias_kernel, activation=activation)
    return pl.pallas_call(
        kern,
        out_shape=jax.ShapeDtypeStruct((M, N), jnp.float32),
        grid=grid,
        in_specs=[
            pl.BlockSpec((tm, tk), lambda i, j, k: (i, k)),
            pl.BlockSpec((tk, tn), lambda i, j, k: (k, j)),
            pl.BlockSpec((1, tn), lambda i, j, k: (0, j)),
        ],
        out_specs=pl.BlockSpec((tm, tn), lambda i, j, k: (i, j)),
        scratch_shapes=[pltpu.VMEM((tm, tn), jnp.float32)],
        compiler_params=_CompilerParams(
            dimension_semantics=("parallel", "parallel", "arbitrary"),
            vmem_limit_bytes=_VMEM_LIMIT,
        ),
    )(x2d.astype(jnp.bfloat16), w.astype(jnp.bfloat16), b.reshape(1, N).astype(jnp.float32))


def _add_layernorm_kernel(x_ref, r_ref, g_ref, b_ref, o_ref, *, eps):
    x = x_ref[...].astype(jnp.float32) + r_ref[...].astype(jnp.float32)
    mean = jnp.mean(x, axis=-1, keepdims=True)
    xc = x - mean
    var = jnp.mean(xc * xc, axis=-1, keepdims=True)
    inv = jax.lax.rsqrt(var + eps)
    o_ref[...] = (xc * inv * g_ref[...] + b_ref[...]).astype(o_ref.dtype)


def add_layer_norm(x, residual, gamma, beta, eps=1e-5):
    """LayerNorm(x + residual), fused and row-tiled. x, residual: (B, S, D)."""
    B, S, D = x.shape
    M = B * S
    tm = _fit_sub(M, _LN_ROWS)
    kern = functools.partial(_add_layernorm_kernel, eps=eps)
    out = pl.pallas_call(
        kern,
        out_shape=jax.ShapeDtypeStruct((M, D), jnp.float32),
        grid=(M // tm,),
        in_specs=[
            pl.BlockSpec((tm, D), lambda i: (i, 0)),
            pl.BlockSpec((tm, D), lambda i: (i, 0)),
            pl.BlockSpec((1, D), lambda i: (0, 0)),
            pl.BlockSpec((1, D), lambda i: (0, 0)),
        ],
        out_specs=pl.BlockSpec((tm, D), lambda i: (i, 0)),
        compiler_params=_CompilerParams(dimension_semantics=("parallel",)),
    )(x.reshape(M, D), residual.reshape(M, D), gamma.reshape(1, D), beta.reshape(1, D))
    return out.reshape(B, S, D)


def _attention_kernel(q_ref, k_ref, v_ref, kp_ref, o_ref, *, num_heads, scale, causal):
    # One program per batch. q: (Sq, D) bf16, k/v: (Sk, D) bf16, kp: (1, Sk) additive f32.
    Sq, D = q_ref.shape
    Sk = k_ref.shape[0]
    dh = D // num_heads

    q = q_ref[...]
    k = k_ref[...]
    v = v_ref[...]
    bias = kp_ref[...]                                    # (1, Sk) broadcasts over queries

    if causal:
        row = jax.lax.broadcasted_iota(jnp.int32, (Sq, Sk), 0)
        col = jax.lax.broadcasted_iota(jnp.int32, (Sq, Sk), 1)
        causal_bias = jnp.where(col > row, jnp.float32(-1e9), jnp.float32(0.0))

    for h in range(num_heads):                            # static unroll; heads are lane-contiguous
        sl = slice(h * dh, (h + 1) * dh)
        qh, kh, vh = q[:, sl], k[:, sl], v[:, sl]
        # Contract on head_dim directly (no explicit K^T materialization).
        s = jax.lax.dot_general(qh, kh, (((1,), (1,)), ((), ())),
                                preferred_element_type=jnp.float32) * scale
        s = s + bias
        if causal:
            s = s + causal_bias
        m = jnp.max(s, axis=-1, keepdims=True)
        p = jnp.exp(s - m)
        l = jnp.sum(p, axis=-1, keepdims=True)
        p = p * pl.reciprocal(l, approx=True)             # EUP slot; negligible error post-softmax
        oh = jnp.dot(p.astype(jnp.bfloat16), vh, preferred_element_type=jnp.float32)
        o_ref[:, sl] = oh.astype(o_ref.dtype)


def attention_core(q, k, v, key_pad, num_heads, causal):
    """q: (B, Sq, D), k/v: (B, Sk, D), key_pad: (B, 1, Sk) additive mask -> (B, Sq, D)."""
    B, Sq, D = q.shape
    Sk = k.shape[1]
    scale = 1.0 / math.sqrt(D // num_heads)
    kern = functools.partial(_attention_kernel, num_heads=num_heads, scale=scale, causal=causal)
    return pl.pallas_call(
        kern,
        out_shape=jax.ShapeDtypeStruct((B, Sq, D), jnp.float32),
        grid=(B,),
        in_specs=[
            pl.BlockSpec((None, Sq, D), lambda b: (b, 0, 0)),
            pl.BlockSpec((None, Sk, D), lambda b: (b, 0, 0)),
            pl.BlockSpec((None, Sk, D), lambda b: (b, 0, 0)),
            pl.BlockSpec((None, 1, Sk), lambda b: (b, 0, 0)),
        ],
        out_specs=pl.BlockSpec((None, Sq, D), lambda b: (b, 0, 0)),
        compiler_params=_CompilerParams(dimension_semantics=("parallel",)),
    )(q.astype(jnp.bfloat16), k.astype(jnp.bfloat16), v.astype(jnp.bfloat16), key_pad)


# ------------------------------ model pieces -------------------------------

def positional_encoding(seq_len, d_model):
    pos = jnp.arange(seq_len, dtype=jnp.float32)[:, None]
    i = jnp.arange(0, d_model, 2, dtype=jnp.float32)[None, :]
    angle = pos / jnp.power(10000.0, i / d_model)
    pe = jnp.zeros((seq_len, d_model), dtype=jnp.float32)
    pe = pe.at[:, 0::2].set(jnp.sin(angle))
    pe = pe.at[:, 1::2].set(jnp.cos(angle))
    return pe


def mha_self(x, p, num_heads, key_pad, causal):
    B, S, D = x.shape
    qkv = linear(x.reshape(B * S, D), p["wqkv"], p["bqkv"]).reshape(B, S, 3 * D)  # fused QKV
    q, k, v = qkv[..., :D], qkv[..., D:2 * D], qkv[..., 2 * D:]
    o = attention_core(q, k, v, key_pad, num_heads, causal)
    return linear(o.reshape(B * S, D), p["wo"], p["bo"]).reshape(B, S, D)


def mha_cross(x_q, x_kv, p, num_heads, key_pad):
    B, Sq, D = x_q.shape
    Sk = x_kv.shape[1]
    q = linear(x_q.reshape(B * Sq, D), p["wq"], p["bq"]).reshape(B, Sq, D)
    kv = linear(x_kv.reshape(B * Sk, D), p["wkv"], p["bkv"]).reshape(B, Sk, 2 * D)  # fused KV
    k, v = kv[..., :D], kv[..., D:]
    o = attention_core(q, k, v, key_pad, num_heads, causal=False)
    return linear(o.reshape(B * Sq, D), p["wo"], p["bo"]).reshape(B, Sq, D)


def ffn(x, p):
    B, S, D = x.shape
    h = linear(x.reshape(B * S, D), p["w1"], p["b1"], activation="relu")
    o = linear(h, p["w2"], p["b2"])
    return o.reshape(B, S, D)


def encoder_layer(x, p, num_heads, src_key_pad):
    # post-norm residual blocks (dropout = identity, inference semantics)
    x = add_layer_norm(mha_self(x, p["self_attn"], num_heads, src_key_pad, causal=False),
                       x, p["ln1_g"], p["ln1_b"])
    x = add_layer_norm(ffn(x, p["ffn"]), x, p["ln2_g"], p["ln2_b"])
    return x


def decoder_layer(y, p, num_heads, enc_out, tgt_key_pad, src_key_pad):
    y = add_layer_norm(mha_self(y, p["self_attn"], num_heads, tgt_key_pad, causal=True),
                       y, p["ln1_g"], p["ln1_b"])
    y = add_layer_norm(mha_cross(y, enc_out, p["cross_attn"], num_heads, src_key_pad),
                       y, p["ln2_g"], p["ln2_b"])
    y = add_layer_norm(ffn(y, p["ffn"]), y, p["ln3_g"], p["ln3_b"])
    return y


def transformer_forward(params, src_tokens, tgt_tokens, *, num_heads, padding_id=0):
    B, Ss = src_tokens.shape
    _, St = tgt_tokens.shape
    d_model = params["embedding"].shape[1]
    NEG = jnp.float32(-1e9)

    # Key-padding rows only, shape (B, 1, Sk); the causal part of the decoder mask is
    # generated inside the attention kernel from iota (no O(S^2) mask in HBM).
    src_kp = jnp.where(src_tokens == padding_id, NEG, jnp.float32(0.0)).reshape(B, 1, Ss)
    tgt_kp = jnp.where(tgt_tokens == padding_id, NEG, jnp.float32(0.0)).reshape(B, 1, St)

    # Embedding + positional encoding (glue).
    src = jnp.take(params["embedding"], src_tokens, axis=0) + positional_encoding(Ss, d_model)[None]
    tgt = jnp.take(params["embedding"], tgt_tokens, axis=0) + positional_encoding(St, d_model)[None]
    # TODO(synk): dropout layers are identity here (inference semantics); no RNG dropout in-kernel.

    x = src
    for lp in params["encoder"]:
        x = encoder_layer(x, lp, num_heads, src_kp)
    enc_out = x

    y = tgt
    for lp in params["decoder"]:
        y = decoder_layer(y, lp, num_heads, enc_out, tgt_kp, src_kp)

    logits = linear(y.reshape(B * St, d_model), params["w_out"], params["b_out"])
    return logits.reshape(B, St, -1)


# ------------------------------ param init ---------------------------------

def _w(key, shape):
    return jax.random.normal(key, shape, jnp.float32) * 0.02


def init_self_attn(key, d):
    k = jax.random.split(key, 2)
    return dict(wqkv=_w(k[0], (d, 3 * d)), bqkv=jnp.zeros((3 * d,), jnp.float32),
                wo=_w(k[1], (d, d)), bo=jnp.zeros((d,), jnp.float32))


def init_cross_attn(key, d):
    k = jax.random.split(key, 3)
    return dict(wq=_w(k[0], (d, d)), bq=jnp.zeros((d,), jnp.float32),
                wkv=_w(k[1], (d, 2 * d)), bkv=jnp.zeros((2 * d,), jnp.float32),
                wo=_w(k[2], (d, d)), bo=jnp.zeros((d,), jnp.float32))


def init_ffn(key, d, d_ff):
    k = jax.random.split(key, 2)
    return dict(w1=_w(k[0], (d, d_ff)), b1=jnp.zeros((d_ff,), jnp.float32),
                w2=_w(k[1], (d_ff, d)), b2=jnp.zeros((d,), jnp.float32))


def init_params(key, *, num_layers, d_model, d_ff, vocab_size):
    keys = jax.random.split(key, 2 + 2 * num_layers)
    ones = jnp.ones((d_model,), jnp.float32)
    zeros = jnp.zeros((d_model,), jnp.float32)
    enc_layers, dec_layers = [], []
    for i in range(num_layers):
        ek = jax.random.split(keys[2 + i], 2)
        enc_layers.append(dict(self_attn=init_self_attn(ek[0], d_model),
                               ffn=init_ffn(ek[1], d_model, d_ff),
                               ln1_g=ones, ln1_b=zeros, ln2_g=ones, ln2_b=zeros))
        dk = jax.random.split(keys[2 + num_layers + i], 3)
        dec_layers.append(dict(self_attn=init_self_attn(dk[0], d_model),
                               cross_attn=init_cross_attn(dk[1], d_model),
                               ffn=init_ffn(dk[2], d_model, d_ff),
                               ln1_g=ones, ln1_b=zeros, ln2_g=ones, ln2_b=zeros,
                               ln3_g=ones, ln3_b=zeros))
    return dict(
        embedding=_w(keys[0], (vocab_size, d_model)),
        encoder=enc_layers,
        decoder=dec_layers,
        w_out=_w(keys[1], (d_model, vocab_size)),
        b_out=jnp.zeros((vocab_size,), jnp.float32),
    )


# --------------------------------- main -------------------------------------

if __name__ == "__main__":
    # Small demo shapes (production configs with d_model=512, d_ff=2048 are
    # 128-lane-aligned and engage the real tiling / MXU-sized blocks).
    num_layers, d_model, num_heads, d_ff = 2, 32, 4, 64
    vocab_size, padding_id = 100, 0
    B, S_src, S_tgt = 2, 8, 8

    key = jax.random.PRNGKey(0)
    k_par, k_src, k_tgt = jax.random.split(key, 3)

    params = init_params(k_par, num_layers=num_layers, d_model=d_model, d_ff=d_ff, vocab_size=vocab_size)

    src = jax.random.randint(k_src, (B, S_src), 1, vocab_size, dtype=jnp.int32)
    tgt = jax.random.randint(k_tgt, (B, S_tgt), 1, vocab_size, dtype=jnp.int32)
    # introduce some padding tokens to exercise the masks
    src = src.at[0, -2:].set(padding_id)
    tgt = tgt.at[1, -1:].set(padding_id)

    fwd = jax.jit(functools.partial(transformer_forward, num_heads=num_heads, padding_id=padding_id))
    logits = jax.block_until_ready(fwd(params, src, tgt))

    assert logits.shape == (B, S_tgt, vocab_size)
    assert bool(jnp.all(jnp.isfinite(logits)))
    print("KERNEL_OK")
</pallas_src>

<mosaic_0001>
module attributes {stable_mosaic.version = 11 : i64} {
  func.func @_matmul_bias_kernel(%arg0: i32, %arg1: i32, %arg2: i32, %arg3: memref<16x32xbf16, #tpu.memory_space<vmem>>, %arg4: memref<32x96xbf16, #tpu.memory_space<vmem>>, %arg5: memref<1x96xf32, #tpu.memory_space<vmem>>, %arg6: memref<16x96xf32, #tpu.memory_space<vmem>>, %arg7: memref<16x96xf32, #tpu.memory_space<vmem>>) attributes {dimension_semantics = [#tpu.dimension_semantics<parallel>, #tpu.dimension_semantics<parallel>, #tpu.dimension_semantics<arbitrary>], iteration_bounds = array<i64: 1, 1, 1>, scalar_prefetch = 0 : i64, scratch_operands = 1 : i64, tpu.core_type = #tpu.core_type<tc>, window_params = [{transform_indices = @transform_0, window_bounds = array<i64: 16, 32>}, {transform_indices = @transform_1, window_bounds = array<i64: 32, 96>}, {transform_indices = @transform_2, window_bounds = array<i64: 1, 96>}, {transform_indices = @transform_3, window_bounds = array<i64: 16, 96>}]} {
    %c0_i32 = arith.constant 0 : i32
    %0 = arith.cmpi eq, %arg2, %c0_i32 : i32
    %1 = arith.extui %0 : i1 to i32
    %c0_i32_0 = arith.constant 0 : i32
    %2 = arith.cmpi ne, %1, %c0_i32_0 : i32
    scf.if %2 {
      %cst_10 = arith.constant 0.000000e+00 : f32
      %12 = vector.broadcast %cst_10 : f32 to vector<16x96xf32>
      %c0_11 = arith.constant 0 : index
      %c0_12 = arith.constant 0 : index
      %13 = vector.load %arg7[%c0_11, %c0_12] : memref<16x96xf32, #tpu.memory_space<vmem>>, vector<16x96xf32>
      tpu.vector_store %arg7[%c0_11, %c0_12], %12 {strides = array<i32>} : memref<16x96xf32, #tpu.memory_space<vmem>>, vector<16x96xf32>,
    } else {
    }
    %c0 = arith.constant 0 : index
    %c0_1 = arith.constant 0 : index
    %3 = vector.load %arg7[%c0, %c0_1] : memref<16x96xf32, #tpu.memory_space<vmem>>, vector<16x96xf32>
    %c0_2 = arith.constant 0 : index
    %c0_3 = arith.constant 0 : index
    %4 = vector.load %arg3[%c0_2, %c0_3] : memref<16x32xbf16, #tpu.memory_space<vmem>>, vector<16x32xbf16>
    %c0_4 = arith.constant 0 : index
    %c0_5 = arith.constant 0 : index
    %5 = vector.load %arg4[%c0_4, %c0_5] : memref<32x96xbf16, #tpu.memory_space<vmem>>, vector<32x96xbf16>
    %cst = arith.constant dense<0.000000e+00> : vector<16x96xf32>
    %6 = tpu.matmul %4, %5, %cst {dimension_numbers = #tpu.dot_dimension_numbers<[1], [0], [0], [1], [0, 0, 1, 1], [], []>} : vector<16x32xbf16>, vector<32x96xbf16>, vector<16x96xf32> -> vector<16x96xf32>
    %7 = arith.addf %3, %6 : vector<16x96xf32>
    %c0_6 = arith.constant 0 : index
    %c0_7 = arith.constant 0 : index
    %8 = vector.load %arg7[%c0_6, %c0_7] : memref<16x96xf32, #tpu.memory_space<vmem>>, vector<16x96xf32>
    tpu.vector_store %arg7[%c0_6, %c0_7], %7 {strides = array<i32>} : memref<16x96xf32, #tpu.memory_space<vmem>>, vector<16x96xf32>,
    %c0_i32_8 = arith.constant 0 : i32
    %9 = arith.cmpi eq, %arg2, %c0_i32_8 : i32
    %10 = arith.extui %9 : i1 to i32
    %c0_i32_9 = arith.constant 0 : i32
    %11 = arith.cmpi ne, %10, %c0_i32_9 : i32
    scf.if %11 {
      %c0_10 = arith.constant 0 : index
      %c0_11 = arith.constant 0 : index
      %12 = vector.load %arg7[%c0_10, %c0_11] : memref<16x96xf32, #tpu.memory_space<vmem>>, vector<16x96xf32>
      %c0_12 = arith.constant 0 : index
      %c0_13 = arith.constant 0 : index
      %13 = vector.load %arg5[%c0_12, %c0_13] : memref<1x96xf32, #tpu.memory_space<vmem>>, vector<1x96xf32>
      %14 = vector.broadcast %13 : vector<1x96xf32> to vector<16x96xf32>
      %15 = arith.addf %12, %14 : vector<16x96xf32>
      %c0_14 = arith.constant 0 : index
      %c0_15 = arith.constant 0 : index
      %16 = vector.load %arg6[%c0_14, %c0_15] : memref<16x96xf32, #tpu.memory_space<vmem>>, vector<16x96xf32>
      tpu.vector_store %arg6[%c0_14, %c0_15], %15 {strides = array<i32>} : memref<16x96xf32, #tpu.memory_space<vmem>>, vector<16x96xf32>,
    } else {
    }
    return
  }
  func.func @transform_0(%arg0: i32, %arg1: i32, %arg2: i32) -> (i32, i32) {
    %c0_i32 = arith.constant 0 : i32
    return %arg0, %arg2 : i32, i32
  }
  func.func @transform_1(%arg0: i32, %arg1: i32, %arg2: i32) -> (i32, i32) {
    %c0_i32 = arith.constant 0 : i32
    return %arg2, %arg1 : i32, i32
  }
  func.func @transform_2(%arg0: i32, %arg1: i32, %arg2: i32) -> (i32, i32) {
    %c0_i32 = arith.constant 0 : i32
    %c0_i32_0 = arith.constant 0 : i32
    return %c0_i32, %arg1 : i32, i32
  }
  func.func @transform_3(%arg0: i32, %arg1: i32, %arg2: i32) -> (i32, i32) {
    %c0_i32 = arith.constant 0 : i32
    return %arg0, %arg1 : i32, i32
  }
}

module attributes {stable_mosaic.version = 11 : i64} {
  func.func @_matmul_bias_kernel(%arg0: i32, %arg1: i32, %arg2: i32, %arg3: memref<16x32xbf16, #tpu.memory_space<vmem>>, %arg4: memref<32x32xbf16, #tpu.memory_space<vmem>>, %arg5: memref<1x32xf32, #tpu.memory_space<vmem>>, %arg6: memref<16x32xf32, #tpu.memory_space<vmem>>, %arg7: memref<16x32xf32, #tpu.memory_space<vmem>>) attributes {dimension_semantics = [#tpu.dimension_semantics<parallel>, #tpu.dimension_semantics<parallel>, #tpu.dimension_semantics<arbitrary>], iteration_bounds = array<i64: 1, 1, 1>, scalar_prefetch = 0 : i64, scratch_operands = 1 : i64, tpu.core_type = #tpu.core_type<tc>, window_params = [{transform_indices = @transform_0, window_bounds = array<i64: 16, 32>}, {transform_indices = @transform_1, window_bounds = array<i64: 32, 32>}, {transform_indices = @transform_2, window_bounds = array<i64: 1, 32>}, {transform_indices = @transform_3, window_bounds = array<i64: 16, 32>}]} {
    %c0_i32 = arith.constant 0 : i32
    %0 = arith.cmpi eq, %arg2, %c0_i32 : i32
    %1 = arith.extui %0 : i1 to i32
    %c0_i32_0 = arith.constant 0 : i32
    %2 = arith.cmpi ne, %1, %c0_i32_0 : i32
    scf.if %2 {
      %cst_10 = arith.constant 0.000000e+00 : f32
      %12 = vector.broadcast %cst_10 : f32 to vector<16x32xf32>
      %c0_11 = arith.constant 0 : index
      %c0_12 = arith.constant 0 : index
      %13 = vector.load %arg7[%c0_11, %c0_12] : memref<16x32xf32, #tpu.memory_space<vmem>>, vector<16x32xf32>
      tpu.vector_store %arg7[%c0_11, %c0_12], %12 {strides = array<i32>} : memref<16x32xf32, #tpu.memory_space<vmem>>, vector<16x32xf32>,
    } else {
    }
    %c0 = arith.constant 0 : index
    %c0_1 = arith.constant 0 : index
    %3 = vector.load %arg7[%c0, %c0_1] : memref<16x32xf32, #tpu.memory_space<vmem>>, vector<16x32xf32>
    %c0_2 = arith.constant 0 : index
    %c0_3 = arith.constant 0 : index
    %4 = vector.load %arg3[%c0_2, %c0_3] : memref<16x32xbf16, #tpu.memory_space<vmem>>, vector<16x32xbf16>
    %c0_4 = arith.constant 0 : index
    %c0_5 = arith.constant 0 : index
    %5 = vector.load %arg4[%c0_4, %c0_5] : memref<32x32xbf16, #tpu.memory_space<vmem>>, vector<32x32xbf16>
    %cst = arith.constant dense<0.000000e+00> : vector<16x32xf32>
    %6 = tpu.matmul %4, %5, %cst {dimension_numbers = #tpu.dot_dimension_numbers<[1], [0], [0], [1], [0, 0, 1, 1], [], []>} : vector<16x32xbf16>, vector<32x32xbf16>, vector<16x32xf32> -> vector<16x32xf32>
    %7 = arith.addf %3, %6 : vector<16x32xf32>
    %c0_6 = arith.constant 0 : index
    %c0_7 = arith.constant 0 : index
    %8 = vector.load %arg7[%c0_6, %c0_7] : memref<16x32xf32, #tpu.memory_space<vmem>>, vector<16x32xf32>
    tpu.vector_store %arg7[%c0_6, %c0_7], %7 {strides = array<i32>} : memref<16x32xf32, #tpu.memory_space<vmem>>, vector<16x32xf32>,
    %c0_i32_8 = arith.constant 0 : i32
    %9 = arith.cmpi eq, %arg2, %c0_i32_8 : i32
    %10 = arith.extui %9 : i1 to i32
    %c0_i32_9 = arith.constant 0 : i32
    %11 = arith.cmpi ne, %10, %c0_i32_9 : i32
    scf.if %11 {
      %c0_10 = arith.constant 0 : index
      %c0_11 = arith.constant 0 : index
      %12 = vector.load %arg7[%c0_10, %c0_11] : memref<16x32xf32, #tpu.memory_space<vmem>>, vector<16x32xf32>
      %c0_12 = arith.constant 0 : index
      %c0_13 = arith.constant 0 : index
      %13 = vector.load %arg5[%c0_12, %c0_13] : memref<1x32xf32, #tpu.memory_space<vmem>>, vector<1x32xf32>
      %14 = vector.broadcast %13 : vector<1x32xf32> to vector<16x32xf32>
      %15 = arith.addf %12, %14 : vector<16x32xf32>
      %c0_14 = arith.constant 0 : index
      %c0_15 = arith.constant 0 : index
      %16 = vector.load %arg6[%c0_14, %c0_15] : memref<16x32xf32, #tpu.memory_space<vmem>>, vector<16x32xf32>
      tpu.vector_store %arg6[%c0_14, %c0_15], %15 {strides = array<i32>} : memref<16x32xf32, #tpu.memory_space<vmem>>, vector<16x32xf32>,
    } else {
    }
    return
  }
  func.func @transform_0(%arg0: i32, %arg1: i32, %arg2: i32) -> (i32, i32) {
    %c0_i32 = arith.constant 0 : i32
    return %arg0, %arg2 : i32, i32
  }
  func.func @transform_1(%arg0: i32, %arg1: i32, %arg2: i32) -> (i32, i32) {
    %c0_i32 = arith.constant 0 : i32
    return %arg2, %arg1 : i32, i32
  }
  func.func @transform_2(%arg0: i32, %arg1: i32, %arg2: i32) -> (i32, i32) {
    %c0_i32 = arith.constant 0 : i32
    %c0_i32_0 = arith.constant 0 : i32
    return %c0_i32, %arg1 : i32, i32
  }
  func.func @transform_3(%arg0: i32, %arg1: i32, %arg2: i32) -> (i32, i32) {
    %c0_i32 = arith.constant 0 : i32
    return %arg0, %arg1 : i32, i32
  }
}

module attributes {stable_mosaic.version = 11 : i64} {
  func.func @_attention_kernel(%arg0: i32, %arg1: memref<1x8x32xbf16, #tpu.memory_space<vmem>>, %arg2: memref<1x8x32xbf16, #tpu.memory_space<vmem>>, %arg3: memref<1x8x32xbf16, #tpu.memory_space<vmem>>, %arg4: memref<1x1x8xf32, #tpu.memory_space<vmem>>, %arg5: memref<1x8x32xf32, #tpu.memory_space<vmem>>) attributes {dimension_semantics = [#tpu.dimension_semantics<parallel>], iteration_bounds = array<i64: 2>, scalar_prefetch = 0 : i64, scratch_operands = 0 : i64, tpu.core_type = #tpu.core_type<tc>, window_params = [{transform_indices = @transform_0, window_bounds = array<i64: 1, 8, 32>}, {transform_indices = @transform_1, window_bounds = array<i64: 1, 8, 32>}, {transform_indices = @transform_2, window_bounds = array<i64: 1, 8, 32>}, {transform_indices = @transform_3, window_bounds = array<i64: 1, 1, 8>}, {transform_indices = @transform_4, window_bounds = array<i64: 1, 8, 32>}]} {
    %c0 = arith.constant 0 : index
    %c0_0 = arith.constant 0 : index
    %c0_1 = arith.constant 0 : index
    %0 = vector.load %arg1[%c0, %c0_0, %c0_1] : memref<1x8x32xbf16, #tpu.memory_space<vmem>>, vector<1x8x32xbf16>
    %1 = vector.shape_cast %0 : vector<1x8x32xbf16> to vector<8x32xbf16>
    %c0_2 = arith.constant 0 : index
    %c0_3 = arith.constant 0 : index
    %c0_4 = arith.constant 0 : index
    %2 = vector.load %arg2[%c0_2, %c0_3, %c0_4] : memref<1x8x32xbf16, #tpu.memory_space<vmem>>, vector<1x8x32xbf16>
    %3 = vector.shape_cast %2 : vector<1x8x32xbf16> to vector<8x32xbf16>
    %c0_5 = arith.constant 0 : index
    %c0_6 = arith.constant 0 : index
    %c0_7 = arith.constant 0 : index
    %4 = vector.load %arg3[%c0_5, %c0_6, %c0_7] : memref<1x8x32xbf16, #tpu.memory_space<vmem>>, vector<1x8x32xbf16>
    %5 = vector.shape_cast %4 : vector<1x8x32xbf16> to vector<8x32xbf16>
    %c0_8 = arith.constant 0 : index
    %c0_9 = arith.constant 0 : index
    %c0_10 = arith.constant 0 : index
    %6 = vector.load %arg4[%c0_8, %c0_9, %c0_10] : memref<1x1x8xf32, #tpu.memory_space<vmem>>, vector<1x1x8xf32>
    %7 = vector.shape_cast %6 : vector<1x1x8xf32> to vector<1x8xf32>
    %8 = vector.extract_strided_slice %1 {offsets = [0, 0], sizes = [8, 8], strides = [1, 1]} : vector<8x32xbf16> to vector<8x8xbf16>
    %9 = vector.extract_strided_slice %3 {offsets = [0, 0], sizes = [8, 8], strides = [1, 1]} : vector<8x32xbf16> to vector<8x8xbf16>
    %10 = vector.extract_strided_slice %5 {offsets = [0, 0], sizes = [8, 8], strides = [1, 1]} : vector<8x32xbf16> to vector<8x8xbf16>
    %cst = arith.constant dense<0.000000e+00> : vector<8x8xf32>
    %11 = tpu.matmul %8, %9, %cst {dimension_numbers = #tpu.dot_dimension_numbers<[1], [1], [0], [0], [0, 0, 1, 0], [], []>} : vector<8x8xbf16>, vector<8x8xbf16>, vector<8x8xf32> -> vector<8x8xf32>
    %cst_11 = arith.constant 0.353553385 : f32
    %12 = vector.broadcast %cst_11 : f32 to vector<8x8xf32>
    %13 = arith.mulf %11, %12 : vector<8x8xf32>
    %14 = vector.broadcast %7 : vector<1x8xf32> to vector<8x8xf32>
    %15 = arith.addf %13, %14 : vector<8x8xf32>
    %cst_12 = arith.constant dense<0xFF800000> : vector<8xf32>
    %16 = vector.multi_reduction <maximumf>, %15, %cst_12 [1] : vector<8x8xf32> to vector<8xf32>
    %17 = vector.shape_cast %16 : vector<8xf32> to vector<8x1xf32>
    %18 = vector.broadcast %17 : vector<8x1xf32> to vector<8x8xf32>
    %19 = arith.subf %15, %18 : vector<8x8xf32>
    %20 = math.exp %19 : vector<8x8xf32>
    %cst_13 = arith.constant dense<0.000000e+00> : vector<8xf32>
    %21 = vector.multi_reduction <add>, %20, %cst_13 [1] : vector<8x8xf32> to vector<8xf32>
    %22 = vector.shape_cast %21 : vector<8xf32> to vector<8x1xf32>
    %23 = tpu.reciprocal %22 {approx = true} : vector<8x1xf32> -> vector<8x1xf32>
    %24 = vector.broadcast %23 : vector<8x1xf32> to vector<8x8xf32>
    %25 = arith.mulf %20, %24 : vector<8x8xf32>
    %26 = arith.truncf %25 : vector<8x8xf32> to vector<8x8xbf16>
    %cst_14 = arith.constant dense<0.000000e+00> : vector<8x8xf32>
    %27 = tpu.matmul %26, %10, %cst_14 {dimension_numbers = #tpu.dot_dimension_numbers<[1], [0], [0], [1], [0, 0, 1, 1], [], []>} : vector<8x8xbf16>, vector<8x8xbf16>, vector<8x8xf32> -> vector<8x8xf32>
    %c0_15 = arith.constant 0 : index
    %c0_16 = arith.constant 0 : index
    %c0_17 = arith.constant 0 : index
    %28 = vector.load %arg5[%c0_15, %c0_16, %c0_17] : memref<1x8x32xf32, #tpu.memory_space<vmem>>, vector<1x8x8xf32>
    %29 = vector.shape_cast %28 : vector<1x8x8xf32> to vector<8x8xf32>
    %30 = vector.shape_cast %27 : vector<8x8xf32> to vector<1x8x8xf32>
    tpu.vector_store %arg5[%c0_15, %c0_16, %c0_17], %30 {strides = array<i32>} : memref<1x8x32xf32, #tpu.memory_space<vmem>>, vector<1x8x8xf32>,
    %31 = vector.extract_strided_slice %1 {offsets = [0, 8], sizes = [8, 8], strides = [1, 1]} : vector<8x32xbf16> to vector<8x8xbf16>
    %32 = vector.extract_strided_slice %3 {offsets = [0, 8], sizes = [8, 8], strides = [1, 1]} : vector<8x32xbf16> to vector<8x8xbf16>
    %33 = vector.extract_strided_slice %5 {offsets = [0, 8], sizes = [8, 8], strides = [1, 1]} : vector<8x32xbf16> to vector<8x8xbf16>
    %cst_18 = arith.constant dense<0.000000e+00> : vector<8x8xf32>
    %34 = tpu.matmul %31, %32, %cst_18 {dimension_numbers = #tpu.dot_dimension_numbers<[1], [1], [0], [0], [0, 0, 1, 0], [], []>} : vector<8x8xbf16>, vector<8x8xbf16>, vector<8x8xf32> -> vector<8x8xf32>
    %cst_19 = arith.constant 0.353553385 : f32
    %35 = vector.broadcast %cst_19 : f32 to vector<8x8xf32>
    %36 = arith.mulf %34, %35 : vector<8x8xf32>
    %37 = vector.broadcast %7 : vector<1x8xf32> to vector<8x8xf32>
    %38 = arith.addf %36, %37 : vector<8x8xf32>
    %cst_20 = arith.constant dense<0xFF800000> : vector<8xf32>
    %39 = vector.multi_reduction <maximumf>, %38, %cst_20 [1] : vector<8x8xf32> to vector<8xf32>
    %40 = vector.shape_cast %39 : vector<8xf32> to vector<8x1xf32>
    %41 = vector.broadcast %40 : vector<8x1xf32> to vector<8x8xf32>
    %42 = arith.subf %38, %41 : vector<8x8xf32>
    %43 = math.exp %42 : vector<8x8xf32>
    %cst_21 = arith.constant dense<0.000000e+00> : vector<8xf32>
    %44 = vector.multi_reduction <add>, %43, %cst_21 [1] : vector<8x8xf32> to vector<8xf32>
    %45 = vector.shape_cast %44 : vector<8xf32> to vector<8x1xf32>
    %46 = tpu.reciprocal %45 {approx = true} : vector<8x1xf32> -> vector<8x1xf32>
    %47 = vector.broadcast %46 : vector<8x1xf32> to vector<8x8xf32>
    %48 = arith.mulf %43, %47 : vector<8x8xf32>
    %49 = arith.truncf %48 : vector<8x8xf32> to vector<8x8xbf16>
    %cst_22 = arith.constant dense<0.000000e+00> : vector<8x8xf32>
    %50 = tpu.matmul %49, %33, %cst_22 {dimension_numbers = #tpu.dot_dimension_numbers<[1], [0], [0], [1], [0, 0, 1, 1], [], []>} : vector<8x8xbf16>, vector<8x8xbf16>, vector<8x8xf32> -> vector<8x8xf32>
    %c0_23 = arith.constant 0 : index
    %c0_24 = arith.constant 0 : index
    %c8 = arith.constant 8 : index
    %51 = vector.load %arg5[%c0_23, %c0_24, %c8] : memref<1x8x32xf32, #tpu.memory_space<vmem>>, vector<1x8x8xf32>
    %52 = vector.shape_cast %51 : vector<1x8x8xf32> to vector<8x8xf32>
    %53 = vector.shape_cast %50 : vector<8x8xf32> to vector<1x8x8xf32>
    tpu.vector_store %arg5[%c0_23, %c0_24, %c8], %53 {strides = array<i32>} : memref<1x8x32xf32, #tpu.memory_space<vmem>>, vector<1x8x8xf32>,
    %54 = vector.extract_strided_slice %1 {offsets = [0, 16], sizes = [8, 8], strides = [1, 1]} : vector<8x32xbf16> to vector<8x8xbf16>
    %55 = vector.extract_strided_slice %3 {offsets = [0, 16], sizes = [8, 8], strides = [1, 1]} : vector<8x32xbf16> to vector<8x8xbf16>
    %56 = vector.extract_strided_slice %5 {offsets = [0, 16], sizes = [8, 8], strides = [1, 1]} : vector<8x32xbf16> to vector<8x8xbf16>
    %cst_25 = arith.constant dense<0.000000e+00> : vector<8x8xf32>
    %57 = tpu.matmul %54, %55, %cst_25 {dimension_numbers = #tpu.dot_dimension_numbers<[1], [1], [0], [0], [0, 0, 1, 0], [], []>} : vector<8x8xbf16>, vector<8x8xbf16>, vector<8x8xf32> -> vector<8x8xf32>
    %cst_26 = arith.constant 0.353553385 : f32
    %58 = vector.broadcast %cst_26 : f32 to vector<8x8xf32>
    %59 = arith.mulf %57, %58 : vector<8x8xf32>
    %60 = vector.broadcast %7 : vector<1x8xf32> to vector<8x8xf32>
    %61 = arith.addf %59, %60 : vector<8x8xf32>
    %cst_27 = arith.constant dense<0xFF800000> : vector<8xf32>
    %62 = vector.multi_reduction <maximumf>, %61, %cst_27 [1] : vector<8x8xf32> to vector<8xf32>
    %63 = vector.shape_cast %62 : vector<8xf32> to vector<8x1xf32>
    %64 = vector.broadcast %63 : vector<8x1xf32> to vector<8x8xf32>
    %65 = arith.subf %61, %64 : vector<8x8xf32>
    %66 = math.exp %65 : vector<8x8xf32>
    %cst_28 = arith.constant dense<0.000000e+00> : vector<8xf32>
    %67 = vector.multi_reduction <add>, %66, %cst_28 [1] : vector<8x8xf32> to vector<8xf32>
    %68 = vector.shape_cast %67 : vector<8xf32> to vector<8x1xf32>
    %69 = tpu.reciprocal %68 {approx = true} : vector<8x1xf32> -> vector<8x1xf32>
    %70 = vector.broadcast %69 : vector<8x1xf32> to vector<8x8xf32>
    %71 = arith.mulf %66, %70 : vector<8x8xf32>
    %72 = arith.truncf %71 : vector<8x8xf32> to vector<8x8xbf16>
    %cst_29 = arith.constant dense<0.000000e+00> : vector<8x8xf32>
    %73 = tpu.matmul %72, %56, %cst_29 {dimension_numbers = #tpu.dot_dimension_numbers<[1], [0], [0], [1], [0, 0, 1, 1], [], []>} : vector<8x8xbf16>, vector<8x8xbf16>, vector<8x8xf32> -> vector<8x8xf32>
    %c0_30 = arith.constant 0 : index
    %c0_31 = arith.constant 0 : index
    %c16 = arith.constant 16 : index
    %74 = vector.load %arg5[%c0_30, %c0_31, %c16] : memref<1x8x32xf32, #tpu.memory_space<vmem>>, vector<1x8x8xf32>
    %75 = vector.shape_cast %74 : vector<1x8x8xf32> to vector<8x8xf32>
    %76 = vector.shape_cast %73 : vector<8x8xf32> to vector<1x8x8xf32>
    tpu.vector_store %arg5[%c0_30, %c0_31, %c16], %76 {strides = array<i32>} : memref<1x8x32xf32, #tpu.memory_space<vmem>>, vector<1x8x8xf32>,
    %77 = vector.extract_strided_slice %1 {offsets = [0, 24], sizes = [8, 8], strides = [1, 1]} : vector<8x32xbf16> to vector<8x8xbf16>
    %78 = vector.extract_strided_slice %3 {offsets = [0, 24], sizes = [8, 8], strides = [1, 1]} : vector<8x32xbf16> to vector<8x8xbf16>
    %79 = vector.extract_strided_slice %5 {offsets = [0, 24], sizes = [8, 8], strides = [1, 1]} : vector<8x32xbf16> to vector<8x8xbf16>
    %cst_32 = arith.constant dense<0.000000e+00> : vector<8x8xf32>
    %80 = tpu.matmul %77, %78, %cst_32 {dimension_numbers = #tpu.dot_dimension_numbers<[1], [1], [0], [0], [0, 0, 1, 0], [], []>} : vector<8x8xbf16>, vector<8x8xbf16>, vector<8x8xf32> -> vector<8x8xf32>
    %cst_33 = arith.constant 0.353553385 : f32
    %81 = vector.broadcast %cst_33 : f32 to vector<8x8xf32>
    %82 = arith.mulf %80, %81 : vector<8x8xf32>
    %83 = vector.broadcast %7 : vector<1x8xf32> to vector<8x8xf32>
    %84 = arith.addf %82, %83 : vector<8x8xf32>
    %cst_34 = arith.constant dense<0xFF800000> : vector<8xf32>
    %85 = vector.multi_reduction <maximumf>, %84, %cst_34 [1] : vector<8x8xf32> to vector<8xf32>
    %86 = vector.shape_cast %85 : vector<8xf32> to vector<8x1xf32>
    %87 = vector.broadcast %86 : vector<8x1xf32> to vector<8x8xf32>
    %88 = arith.subf %84, %87 : vector<8x8xf32>
    %89 = math.exp %88 : vector<8x8xf32>
    %cst_35 = arith.constant dense<0.000000e+00> : vector<8xf32>
    %90 = vector.multi_reduction <add>, %89, %cst_35 [1] : vector<8x8xf32> to vector<8xf32>
    %91 = vector.shape_cast %90 : vector<8xf32> to vector<8x1xf32>
    %92 = tpu.reciprocal %91 {approx = true} : vector<8x1xf32> -> vector<8x1xf32>
    %93 = vector.broadcast %92 : vector<8x1xf32> to vector<8x8xf32>
    %94 = arith.mulf %89, %93 : vector<8x8xf32>
    %95 = arith.truncf %94 : vector<8x8xf32> to vector<8x8xbf16>
    %cst_36 = arith.constant dense<0.000000e+00> : vector<8x8xf32>
    %96 = tpu.matmul %95, %79, %cst_36 {dimension_numbers = #tpu.dot_dimension_numbers<[1], [0], [0], [1], [0, 0, 1, 1], [], []>} : vector<8x8xbf16>, vector<8x8xbf16>, vector<8x8xf32> -> vector<8x8xf32>
    %c0_37 = arith.constant 0 : index
    %c0_38 = arith.constant 0 : index
    %c24 = arith.constant 24 : index
    %97 = vector.load %arg5[%c0_37, %c0_38, %c24] : memref<1x8x32xf32, #tpu.memory_space<vmem>>, vector<1x8x8xf32>
    %98 = vector.shape_cast %97 : vector<1x8x8xf32> to vector<8x8xf32>
    %99 = vector.shape_cast %96 : vector<8x8xf32> to vector<1x8x8xf32>
    tpu.vector_store %arg5[%c0_37, %c0_38, %c24], %99 {strides = array<i32>} : memref<1x8x32xf32, #tpu.memory_space<vmem>>, vector<1x8x8xf32>,
    return
  }
  func.func @transform_0(%arg0: i32) -> (i32, i32, i32) {
    %c0_i32 = arith.constant 0 : i32
    %c0_i32_0 = arith.constant 0 : i32
    %c0_i32_1 = arith.constant 0 : i32
    return %arg0, %c0_i32, %c0_i32_0 : i32, i32, i32
  }
  func.func @transform_1(%arg0: i32) -> (i32, i32, i32) {
    %c0_i32 = arith.constant 0 : i32
    %c0_i32_0 = arith.constant 0 : i32
    %c0_i32_1 = arith.constant 0 : i32
    return %arg0, %c0_i32, %c0_i32_0 : i32, i32, i32
  }
  func.func @transform_2(%arg0: i32) -> (i32, i32, i32) {
    %c0_i32 = arith.constant 0 : i32
    %c0_i32_0 = arith.constant 0 : i32
    %c0_i32_1 = arith.constant 0 : i32
    return %arg0, %c0_i32, %c0_i32_0 : i32, i32, i32
  }
  func.func @transform_3(%arg0: i32) -> (i32, i32, i32) {
    %c0_i32 = arith.constant 0 : i32
    %c0_i32_0 = arith.constant 0 : i32
    %c0_i32_1 = arith.constant 0 : i32
    return %arg0, %c0_i32, %c0_i32_0 : i32, i32, i32
  }
  func.func @transform_4(%arg0: i32) -> (i32, i32, i32) {
    %c0_i32 = arith.constant 0 : i32
    %c0_i32_0 = arith.constant 0 : i32
    %c0_i32_1 = arith.constant 0 : i32
    return %arg0, %c0_i32, %c0_i32_0 : i32, i32, i32
  }
}

module attributes {stable_mosaic.version = 11 : i64} {
  func.func @_add_layernorm_kernel(%arg0: i32, %arg1: memref<16x32xf32, #tpu.memory_space<vmem>>, %arg2: memref<16x32xf32, #tpu.memory_space<vmem>>, %arg3: memref<1x32xf32, #tpu.memory_space<vmem>>, %arg4: memref<1x32xf32, #tpu.memory_space<vmem>>, %arg5: memref<16x32xf32, #tpu.memory_space<vmem>>) attributes {dimension_semantics = [#tpu.dimension_semantics<parallel>], iteration_bounds = array<i64: 1>, scalar_prefetch = 0 : i64, scratch_operands = 0 : i64, tpu.core_type = #tpu.core_type<tc>, window_params = [{transform_indices = @transform_0, window_bounds = array<i64: 16, 32>}, {transform_indices = @transform_1, window_bounds = array<i64: 16, 32>}, {pipeline_mode = #tpu.pipeline_mode<synchronous>, transform_indices = @transform_2, window_bounds = array<i64: 1, 32>}, {pipeline_mode = #tpu.pipeline_mode<synchronous>, transform_indices = @transform_3, window_bounds = array<i64: 1, 32>}, {transform_indices = @transform_4, window_bounds = array<i64: 16, 32>}]} {
    %c0 = arith.constant 0 : index
    %c0_0 = arith.constant 0 : index
    %0 = vector.load %arg1[%c0, %c0_0] : memref<16x32xf32, #tpu.memory_space<vmem>>, vector<16x32xf32>
    %c0_1 = arith.constant 0 : index
    %c0_2 = arith.constant 0 : index
    %1 = vector.load %arg2[%c0_1, %c0_2] : memref<16x32xf32, #tpu.memory_space<vmem>>, vector<16x32xf32>
    %2 = arith.addf %0, %1 : vector<16x32xf32>
    %cst = arith.constant dense<0.000000e+00> : vector<16xf32>
    %3 = vector.multi_reduction <add>, %2, %cst [1] : vector<16x32xf32> to vector<16xf32>
    %4 = vector.shape_cast %3 : vector<16xf32> to vector<16x1xf32>
    %cst_3 = arith.constant 3.200000e+01 : f32
    %5 = vector.broadcast %cst_3 : f32 to vector<16x1xf32>
    %6 = arith.divf %4, %5 : vector<16x1xf32>
    %7 = vector.broadcast %6 : vector<16x1xf32> to vector<16x32xf32>
    %8 = arith.subf %2, %7 : vector<16x32xf32>
    %9 = arith.mulf %8, %8 : vector<16x32xf32>
    %cst_4 = arith.constant dense<0.000000e+00> : vector<16xf32>
    %10 = vector.multi_reduction <add>, %9, %cst_4 [1] : vector<16x32xf32> to vector<16xf32>
    %11 = vector.shape_cast %10 : vector<16xf32> to vector<16x1xf32>
    %cst_5 = arith.constant 3.200000e+01 : f32
    %12 = vector.broadcast %cst_5 : f32 to vector<16x1xf32>
    %13 = arith.divf %11, %12 : vector<16x1xf32>
    %cst_6 = arith.constant 9.99999974E-6 : f32
    %14 = vector.broadcast %cst_6 : f32 to vector<16x1xf32>
    %15 = arith.addf %13, %14 : vector<16x1xf32>
    %16 = math.rsqrt %15 : vector<16x1xf32>
    %17 = vector.broadcast %16 : vector<16x1xf32> to vector<16x32xf32>
    %18 = arith.mulf %8, %17 : vector<16x32xf32>
    %c0_7 = arith.constant 0 : index
    %c0_8 = arith.constant 0 : index
    %19 = vector.load %arg3[%c0_7, %c0_8] : memref<1x32xf32, #tpu.memory_space<vmem>>, vector<1x32xf32>
    %20 = vector.broadcast %19 : vector<1x32xf32> to vector<16x32xf32>
    %21 = arith.mulf %18, %20 : vector<16x32xf32>
    %c0_9 = arith.constant 0 : index
    %c0_10 = arith.constant 0 : index
    %22 = vector.load %arg4[%c0_9, %c0_10] : memref<1x32xf32, #tpu.memory_space<vmem>>, vector<1x32xf32>
    %23 = vector.broadcast %22 : vector<1x32xf32> to vector<16x32xf32>
    %24 = arith.addf %21, %23 : vector<16x32xf32>
    %c0_11 = arith.constant 0 : index
    %c0_12 = arith.constant 0 : index
    %25 = vector.load %arg5[%c0_11, %c0_12] : memref<16x32xf32, #tpu.memory_space<vmem>>, vector<16x32xf32>
    tpu.vector_store %arg5[%c0_11, %c0_12], %24 {strides = array<i32>} : memref<16x32xf32, #tpu.memory_space<vmem>>, vector<16x32xf32>,
    return
  }
  func.func @transform_0(%arg0: i32) -> (i32, i32) {
    %c0_i32 = arith.constant 0 : i32
    %c0_i32_0 = arith.constant 0 : i32
    return %arg0, %c0_i32 : i32, i32
  }
  func.func @transform_1(%arg0: i32) -> (i32, i32) {
    %c0_i32 = arith.constant 0 : i32
    %c0_i32_0 = arith.constant 0 : i32
    return %arg0, %c0_i32 : i32, i32
  }
  func.func @transform_2(%arg0: i32) -> (i32, i32) {
    %c0_i32 = arith.constant 0 : i32
    %c0_i32_0 = arith.constant 0 : i32
    %c0_i32_1 = arith.constant 0 : i32
    return %c0_i32, %c0_i32_0 : i32, i32
  }
  func.func @transform_3(%arg0: i32) -> (i32, i32) {
    %c0_i32 = arith.constant 0 : i32
    %c0_i32_0 = arith.constant 0 : i32
    %c0_i32_1 = arith.constant 0 : i32
    return %c0_i32, %c0_i32_0 : i32, i32
  }
  func.func @transform_4(%arg0: i32) -> (i32, i32) {
    %c0_i32 = arith.constant 0 : i32
    %c0_i32_0 = arith.constant 0 : i32
    return %arg0, %c0_i32 : i32, i32
  }
}

module attributes {stable_mosaic.version = 11 : i64} {
  func.func @_matmul_bias_kernel(%arg0: i32, %arg1: i32, %arg2: i32, %arg3: memref<16x32xbf16, #tpu.memory_space<vmem>>, %arg4: memref<32x64xbf16, #tpu.memory_space<vmem>>, %arg5: memref<1x64xf32, #tpu.memory_space<vmem>>, %arg6: memref<16x64xf32, #tpu.memory_space<vmem>>, %arg7: memref<16x64xf32, #tpu.memory_space<vmem>>) attributes {dimension_semantics = [#tpu.dimension_semantics<parallel>, #tpu.dimension_semantics<parallel>, #tpu.dimension_semantics<arbitrary>], iteration_bounds = array<i64: 1, 1, 1>, scalar_prefetch = 0 : i64, scratch_operands = 1 : i64, tpu.core_type = #tpu.core_type<tc>, window_params = [{transform_indices = @transform_0, window_bounds = array<i64: 16, 32>}, {transform_indices = @transform_1, window_bounds = array<i64: 32, 64>}, {transform_indices = @transform_2, window_bounds = array<i64: 1, 64>}, {transform_indices = @transform_3, window_bounds = array<i64: 16, 64>}]} {
    %c0_i32 = arith.constant 0 : i32
    %0 = arith.cmpi eq, %arg2, %c0_i32 : i32
    %1 = arith.extui %0 : i1 to i32
    %c0_i32_0 = arith.constant 0 : i32
    %2 = arith.cmpi ne, %1, %c0_i32_0 : i32
    scf.if %2 {
      %cst_10 = arith.constant 0.000000e+00 : f32
      %12 = vector.broadcast %cst_10 : f32 to vector<16x64xf32>
      %c0_11 = arith.constant 0 : index
      %c0_12 = arith.constant 0 : index
      %13 = vector.load %arg7[%c0_11, %c0_12] : memref<16x64xf32, #tpu.memory_space<vmem>>, vector<16x64xf32>
      tpu.vector_store %arg7[%c0_11, %c0_12], %12 {strides = array<i32>} : memref<16x64xf32, #tpu.memory_space<vmem>>, vector<16x64xf32>,
    } else {
    }
    %c0 = arith.constant 0 : index
    %c0_1 = arith.constant 0 : index
    %3 = vector.load %arg7[%c0, %c0_1] : memref<16x64xf32, #tpu.memory_space<vmem>>, vector<16x64xf32>
    %c0_2 = arith.constant 0 : index
    %c0_3 = arith.constant 0 : index
    %4 = vector.load %arg3[%c0_2, %c0_3] : memref<16x32xbf16, #tpu.memory_space<vmem>>, vector<16x32xbf16>
    %c0_4 = arith.constant 0 : index
    %c0_5 = arith.constant 0 : index
    %5 = vector.load %arg4[%c0_4, %c0_5] : memref<32x64xbf16, #tpu.memory_space<vmem>>, vector<32x64xbf16>
    %cst = arith.constant dense<0.000000e+00> : vector<16x64xf32>
    %6 = tpu.matmul %4, %5, %cst {dimension_numbers = #tpu.dot_dimension_numbers<[1], [0], [0], [1], [0, 0, 1, 1], [], []>} : vector<16x32xbf16>, vector<32x64xbf16>, vector<16x64xf32> -> vector<16x64xf32>
    %7 = arith.addf %3, %6 : vector<16x64xf32>
    %c0_6 = arith.constant 0 : index
    %c0_7 = arith.constant 0 : index
    %8 = vector.load %arg7[%c0_6, %c0_7] : memref<16x64xf32, #tpu.memory_space<vmem>>, vector<16x64xf32>
    tpu.vector_store %arg7[%c0_6, %c0_7], %7 {strides = array<i32>} : memref<16x64xf32, #tpu.memory_space<vmem>>, vector<16x64xf32>,
    %c0_i32_8 = arith.constant 0 : i32
    %9 = arith.cmpi eq, %arg2, %c0_i32_8 : i32
    %10 = arith.extui %9 : i1 to i32
    %c0_i32_9 = arith.constant 0 : i32
    %11 = arith.cmpi ne, %10, %c0_i32_9 : i32
    scf.if %11 {
      %c0_10 = arith.constant 0 : index
      %c0_11 = arith.constant 0 : index
      %12 = vector.load %arg7[%c0_10, %c0_11] : memref<16x64xf32, #tpu.memory_space<vmem>>, vector<16x64xf32>
      %c0_12 = arith.constant 0 : index
      %c0_13 = arith.constant 0 : index
      %13 = vector.load %arg5[%c0_12, %c0_13] : memref<1x64xf32, #tpu.memory_space<vmem>>, vector<1x64xf32>
      %14 = vector.broadcast %13 : vector<1x64xf32> to vector<16x64xf32>
      %15 = arith.addf %12, %14 : vector<16x64xf32>
      %cst_14 = arith.constant 0.000000e+00 : f32
      %16 = vector.broadcast %cst_14 : f32 to vector<16x64xf32>
      %17 = arith.maximumf %15, %16 : vector<16x64xf32>
      %c0_15 = arith.constant 0 : index
      %c0_16 = arith.constant 0 : index
      %18 = vector.load %arg6[%c0_15, %c0_16] : memref<16x64xf32, #tpu.memory_space<vmem>>, vector<16x64xf32>
      tpu.vector_store %arg6[%c0_15, %c0_16], %17 {strides = array<i32>} : memref<16x64xf32, #tpu.memory_space<vmem>>, vector<16x64xf32>,
    } else {
    }
    return
  }
  func.func @transform_0(%arg0: i32, %arg1: i32, %arg2: i32) -> (i32, i32) {
    %c0_i32 = arith.constant 0 : i32
    return %arg0, %arg2 : i32, i32
  }
  func.func @transform_1(%arg0: i32, %arg1: i32, %arg2: i32) -> (i32, i32) {
    %c0_i32 = arith.constant 0 : i32
    return %arg2, %arg1 : i32, i32
  }
  func.func @transform_2(%arg0: i32, %arg1: i32, %arg2: i32) -> (i32, i32) {
    %c0_i32 = arith.constant 0 : i32
    %c0_i32_0 = arith.constant 0 : i32
    return %c0_i32, %arg1 : i32, i32
  }
  func.func @transform_3(%arg0: i32, %arg1: i32, %arg2: i32) -> (i32, i32) {
    %c0_i32 = arith.constant 0 : i32
    return %arg0, %arg1 : i32, i32
  }
}

module attributes {stable_mosaic.version = 11 : i64} {
  func.func @_matmul_bias_kernel(%arg0: i32, %arg1: i32, %arg2: i32, %arg3: memref<16x32xbf16, #tpu.memory_space<vmem>>, %arg4: memref<32x64xbf16, #tpu.memory_space<vmem>>, %arg5: memref<1x64xf32, #tpu.memory_space<vmem>>, %arg6: memref<16x64xf32, #tpu.memory_space<vmem>>, %arg7: memref<16x64xf32, #tpu.memory_space<vmem>>) attributes {dimension_semantics = [#tpu.dimension_semantics<parallel>, #tpu.dimension_semantics<parallel>, #tpu.dimension_semantics<arbitrary>], iteration_bounds = array<i64: 1, 1, 1>, scalar_prefetch = 0 : i64, scratch_operands = 1 : i64, tpu.core_type = #tpu.core_type<tc>, window_params = [{transform_indices = @transform_0, window_bounds = array<i64: 16, 32>}, {transform_indices = @transform_1, window_bounds = array<i64: 32, 64>}, {transform_indices = @transform_2, window_bounds = array<i64: 1, 64>}, {transform_indices = @transform_3, window_bounds = array<i64: 16, 64>}]} {
    %c0_i32 = arith.constant 0 : i32
    %0 = arith.cmpi eq, %arg2, %c0_i32 : i32
    %1 = arith.extui %0 : i1 to i32
    %c0_i32_0 = arith.constant 0 : i32
    %2 = arith.cmpi ne, %1, %c0_i32_0 : i32
    scf.if %2 {
      %cst_10 = arith.constant 0.000000e+00 : f32
      %12 = vector.broadcast %cst_10 : f32 to vector<16x64xf32>
      %c0_11 = arith.constant 0 : index
      %c0_12 = arith.constant 0 : index
      %13 = vector.load %arg7[%c0_11, %c0_12] : memref<16x64xf32, #tpu.memory_space<vmem>>, vector<16x64xf32>
      tpu.vector_store %arg7[%c0_11, %c0_12], %12 {strides = array<i32>} : memref<16x64xf32, #tpu.memory_space<vmem>>, vector<16x64xf32>,
    } else {
    }
    %c0 = arith.constant 0 : index
    %c0_1 = arith.constant 0 : index
    %3 = vector.load %arg7[%c0, %c0_1] : memref<16x64xf32, #tpu.memory_space<vmem>>, vector<16x64xf32>
    %c0_2 = arith.constant 0 : index
    %c0_3 = arith.constant 0 : index
    %4 = vector.load %arg3[%c0_2, %c0_3] : memref<16x32xbf16, #tpu.memory_space<vmem>>, vector<16x32xbf16>
    %c0_4 = arith.constant 0 : index
    %c0_5 = arith.constant 0 : index
    %5 = vector.load %arg4[%c0_4, %c0_5] : memref<32x64xbf16, #tpu.memory_space<vmem>>, vector<32x64xbf16>
    %cst = arith.constant dense<0.000000e+00> : vector<16x64xf32>
    %6 = tpu.matmul %4, %5, %cst {dimension_numbers = #tpu.dot_dimension_numbers<[1], [0], [0], [1], [0, 0, 1, 1], [], []>} : vector<16x32xbf16>, vector<32x64xbf16>, vector<16x64xf32> -> vector<16x64xf32>
    %7 = arith.addf %3, %6 : vector<16x64xf32>
    %c0_6 = arith.constant 0 : index
    %c0_7 = arith.constant 0 : index
    %8 = vector.load %arg7[%c0_6, %c0_7] : memref<16x64xf32, #tpu.memory_space<vmem>>, vector<16x64xf32>
    tpu.vector_store %arg7[%c0_6, %c0_7], %7 {strides = array<i32>} : memref<16x64xf32, #tpu.memory_space<vmem>>, vector<16x64xf32>,
    %c0_i32_8 = arith.constant 0 : i32
    %9 = arith.cmpi eq, %arg2, %c0_i32_8 : i32
    %10 = arith.extui %9 : i1 to i32
    %c0_i32_9 = arith.constant 0 : i32
    %11 = arith.cmpi ne, %10, %c0_i32_9 : i32
    scf.if %11 {
      %c0_10 = arith.constant 0 : index
      %c0_11 = arith.constant 0 : index
      %12 = vector.load %arg7[%c0_10, %c0_11] : memref<16x64xf32, #tpu.memory_space<vmem>>, vector<16x64xf32>
      %c0_12 = arith.constant 0 : index
      %c0_13 = arith.constant 0 : index
      %13 = vector.load %arg5[%c0_12, %c0_13] : memref<1x64xf32, #tpu.memory_space<vmem>>, vector<1x64xf32>
      %14 = vector.broadcast %13 : vector<1x64xf32> to vector<16x64xf32>
      %15 = arith.addf %12, %14 : vector<16x64xf32>
      %c0_14 = arith.constant 0 : index
      %c0_15 = arith.constant 0 : index
      %16 = vector.load %arg6[%c0_14, %c0_15] : memref<16x64xf32, #tpu.memory_space<vmem>>, vector<16x64xf32>
      tpu.vector_store %arg6[%c0_14, %c0_15], %15 {strides = array<i32>} : memref<16x64xf32, #tpu.memory_space<vmem>>, vector<16x64xf32>,
    } else {
    }
    return
  }
  func.func @transform_0(%arg0: i32, %arg1: i32, %arg2: i32) -> (i32, i32) {
    %c0_i32 = arith.constant 0 : i32
    return %arg0, %arg2 : i32, i32
  }
  func.func @transform_1(%arg0: i32, %arg1: i32, %arg2: i32) -> (i32, i32) {
    %c0_i32 = arith.constant 0 : i32
    return %arg2, %arg1 : i32, i32
  }
  func.func @transform_2(%arg0: i32, %arg1: i32, %arg2: i32) -> (i32, i32) {
    %c0_i32 = arith.constant 0 : i32
    %c0_i32_0 = arith.constant 0 : i32
    return %c0_i32, %arg1 : i32, i32
  }
  func.func @transform_3(%arg0: i32, %arg1: i32, %arg2: i32) -> (i32, i32) {
    %c0_i32 = arith.constant 0 : i32
    return %arg0, %arg1 : i32, i32
  }
}

module attributes {stable_mosaic.version = 11 : i64} {
  func.func @_matmul_bias_kernel(%arg0: i32, %arg1: i32, %arg2: i32, %arg3: memref<16x64xbf16, #tpu.memory_space<vmem>>, %arg4: memref<64x32xbf16, #tpu.memory_space<vmem>>, %arg5: memref<1x32xf32, #tpu.memory_space<vmem>>, %arg6: memref<16x32xf32, #tpu.memory_space<vmem>>, %arg7: memref<16x32xf32, #tpu.memory_space<vmem>>) attributes {dimension_semantics = [#tpu.dimension_semantics<parallel>, #tpu.dimension_semantics<parallel>, #tpu.dimension_semantics<arbitrary>], iteration_bounds = array<i64: 1, 1, 1>, scalar_prefetch = 0 : i64, scratch_operands = 1 : i64, tpu.core_type = #tpu.core_type<tc>, window_params = [{transform_indices = @transform_0, window_bounds = array<i64: 16, 64>}, {transform_indices = @transform_1, window_bounds = array<i64: 64, 32>}, {transform_indices = @transform_2, window_bounds = array<i64: 1, 32>}, {transform_indices = @transform_3, window_bounds = array<i64: 16, 32>}]} {
    %c0_i32 = arith.constant 0 : i32
    %0 = arith.cmpi eq, %arg2, %c0_i32 : i32
    %1 = arith.extui %0 : i1 to i32
    %c0_i32_0 = arith.constant 0 : i32
    %2 = arith.cmpi ne, %1, %c0_i32_0 : i32
    scf.if %2 {
      %cst_10 = arith.constant 0.000000e+00 : f32
      %12 = vector.broadcast %cst_10 : f32 to vector<16x32xf32>
      %c0_11 = arith.constant 0 : index
      %c0_12 = arith.constant 0 : index
      %13 = vector.load %arg7[%c0_11, %c0_12] : memref<16x32xf32, #tpu.memory_space<vmem>>, vector<16x32xf32>
      tpu.vector_store %arg7[%c0_11, %c0_12], %12 {strides = array<i32>} : memref<16x32xf32, #tpu.memory_space<vmem>>, vector<16x32xf32>,
    } else {
    }
    %c0 = arith.constant 0 : index
    %c0_1 = arith.constant 0 : index
    %3 = vector.load %arg7[%c0, %c0_1] : memref<16x32xf32, #tpu.memory_space<vmem>>, vector<16x32xf32>
    %c0_2 = arith.constant 0 : index
    %c0_3 = arith.constant 0 : index
    %4 = vector.load %arg3[%c0_2, %c0_3] : memref<16x64xbf16, #tpu.memory_space<vmem>>, vector<16x64xbf16>
    %c0_4 = arith.constant 0 : index
    %c0_5 = arith.constant 0 : index
    %5 = vector.load %arg4[%c0_4, %c0_5] : memref<64x32xbf16, #tpu.memory_space<vmem>>, vector<64x32xbf16>
    %cst = arith.constant dense<0.000000e+00> : vector<16x32xf32>
    %6 = tpu.matmul %4, %5, %cst {dimension_numbers = #tpu.dot_dimension_numbers<[1], [0], [0], [1], [0, 0, 1, 1], [], []>} : vector<16x64xbf16>, vector<64x32xbf16>, vector<16x32xf32> -> vector<16x32xf32>
    %7 = arith.addf %3, %6 : vector<16x32xf32>
    %c0_6 = arith.constant 0 : index
    %c0_7 = arith.constant 0 : index
    %8 = vector.load %arg7[%c0_6, %c0_7] : memref<16x32xf32, #tpu.memory_space<vmem>>, vector<16x32xf32>
    tpu.vector_store %arg7[%c0_6, %c0_7], %7 {strides = array<i32>} : memref<16x32xf32, #tpu.memory_space<vmem>>, vector<16x32xf32>,
    %c0_i32_8 = arith.constant 0 : i32
    %9 = arith.cmpi eq, %arg2, %c0_i32_8 : i32
    %10 = arith.extui %9 : i1 to i32
    %c0_i32_9 = arith.constant 0 : i32
    %11 = arith.cmpi ne, %10, %c0_i32_9 : i32
    scf.if %11 {
      %c0_10 = arith.constant 0 : index
      %c0_11 = arith.constant 0 : index
      %12 = vector.load %arg7[%c0_10, %c0_11] : memref<16x32xf32, #tpu.memory_space<vmem>>, vector<16x32xf32>
      %c0_12 = arith.constant 0 : index
      %c0_13 = arith.constant 0 : index
      %13 = vector.load %arg5[%c0_12, %c0_13] : memref<1x32xf32, #tpu.memory_space<vmem>>, vector<1x32xf32>
      %14 = vector.broadcast %13 : vector<1x32xf32> to vector<16x32xf32>
      %15 = arith.addf %12, %14 : vector<16x32xf32>
      %c0_14 = arith.constant 0 : index
      %c0_15 = arith.constant 0 : index
      %16 = vector.load %arg6[%c0_14, %c0_15] : memref<16x32xf32, #tpu.memory_space<vmem>>, vector<16x32xf32>
      tpu.vector_store %arg6[%c0_14, %c0_15], %15 {strides = array<i32>} : memref<16x32xf32, #tpu.memory_space<vmem>>, vector<16x32xf32>,
    } else {
    }
    return
  }
  func.func @transform_0(%arg0: i32, %arg1: i32, %arg2: i32) -> (i32, i32) {
    %c0_i32 = arith.constant 0 : i32
    return %arg0, %arg2 : i32, i32
  }
  func.func @transform_1(%arg0: i32, %arg1: i32, %arg2: i32) -> (i32, i32) {
    %c0_i32 = arith.constant 0 : i32
    return %arg2, %arg1 : i32, i32
  }
  func.func @transform_2(%arg0: i32, %arg1: i32, %arg2: i32) -> (i32, i32) {
    %c0_i32 = arith.constant 0 : i32
    %c0_i32_0 = arith.constant 0 : i32
    return %c0_i32, %arg1 : i32, i32
  }
  func.func @transform_3(%arg0: i32, %arg1: i32, %arg2: i32) -> (i32, i32) {
    %c0_i32 = arith.constant 0 : i32
    return %arg0, %arg1 : i32, i32
  }
}

module attributes {stable_mosaic.version = 11 : i64} {
  func.func @_attention_kernel(%arg0: i32, %arg1: memref<1x8x32xbf16, #tpu.memory_space<vmem>>, %arg2: memref<1x8x32xbf16, #tpu.memory_space<vmem>>, %arg3: memref<1x8x32xbf16, #tpu.memory_space<vmem>>, %arg4: memref<1x1x8xf32, #tpu.memory_space<vmem>>, %arg5: memref<1x8x32xf32, #tpu.memory_space<vmem>>) attributes {dimension_semantics = [#tpu.dimension_semantics<parallel>], iteration_bounds = array<i64: 2>, scalar_prefetch = 0 : i64, scratch_operands = 0 : i64, tpu.core_type = #tpu.core_type<tc>, window_params = [{transform_indices = @transform_0, window_bounds = array<i64: 1, 8, 32>}, {transform_indices = @transform_1, window_bounds = array<i64: 1, 8, 32>}, {transform_indices = @transform_2, window_bounds = array<i64: 1, 8, 32>}, {transform_indices = @transform_3, window_bounds = array<i64: 1, 1, 8>}, {transform_indices = @transform_4, window_bounds = array<i64: 1, 8, 32>}]} {
    %c0 = arith.constant 0 : index
    %c0_0 = arith.constant 0 : index
    %c0_1 = arith.constant 0 : index
    %0 = vector.load %arg1[%c0, %c0_0, %c0_1] : memref<1x8x32xbf16, #tpu.memory_space<vmem>>, vector<1x8x32xbf16>
    %1 = vector.shape_cast %0 : vector<1x8x32xbf16> to vector<8x32xbf16>
    %c0_2 = arith.constant 0 : index
    %c0_3 = arith.constant 0 : index
    %c0_4 = arith.constant 0 : index
    %2 = vector.load %arg2[%c0_2, %c0_3, %c0_4] : memref<1x8x32xbf16, #tpu.memory_space<vmem>>, vector<1x8x32xbf16>
    %3 = vector.shape_cast %2 : vector<1x8x32xbf16> to vector<8x32xbf16>
    %c0_5 = arith.constant 0 : index
    %c0_6 = arith.constant 0 : index
    %c0_7 = arith.constant 0 : index
    %4 = vector.load %arg3[%c0_5, %c0_6, %c0_7] : memref<1x8x32xbf16, #tpu.memory_space<vmem>>, vector<1x8x32xbf16>
    %5 = vector.shape_cast %4 : vector<1x8x32xbf16> to vector<8x32xbf16>
    %c0_8 = arith.constant 0 : index
    %c0_9 = arith.constant 0 : index
    %c0_10 = arith.constant 0 : index
    %6 = vector.load %arg4[%c0_8, %c0_9, %c0_10] : memref<1x1x8xf32, #tpu.memory_space<vmem>>, vector<1x1x8xf32>
    %7 = vector.shape_cast %6 : vector<1x1x8xf32> to vector<1x8xf32>
    %8 = tpu.iota {dimensions = array<i32: 0>} : vector<8x8xi32>
    %9 = tpu.iota {dimensions = array<i32: 1>} : vector<8x8xi32>
    %10 = arith.cmpi sgt, %9, %8 : vector<8x8xi32>
    %cst = arith.constant -1.000000e+09 : f32
    %cst_11 = arith.constant 0.000000e+00 : f32
    %11 = vector.broadcast %cst : f32 to vector<8x8xf32>
    %12 = vector.broadcast %cst_11 : f32 to vector<8x8xf32>
    %13 = arith.select %10, %11, %12 : vector<8x8xi1>, vector<8x8xf32>
    %14 = vector.extract_strided_slice %1 {offsets = [0, 0], sizes = [8, 8], strides = [1, 1]} : vector<8x32xbf16> to vector<8x8xbf16>
    %15 = vector.extract_strided_slice %3 {offsets = [0, 0], sizes = [8, 8], strides = [1, 1]} : vector<8x32xbf16> to vector<8x8xbf16>
    %16 = vector.extract_strided_slice %5 {offsets = [0, 0], sizes = [8, 8], strides = [1, 1]} : vector<8x32xbf16> to vector<8x8xbf16>
    %cst_12 = arith.constant dense<0.000000e+00> : vector<8x8xf32>
    %17 = tpu.matmul %14, %15, %cst_12 {dimension_numbers = #tpu.dot_dimension_numbers<[1], [1], [0], [0], [0, 0, 1, 0], [], []>} : vector<8x8xbf16>, vector<8x8xbf16>, vector<8x8xf32> -> vector<8x8xf32>
    %cst_13 = arith.constant 0.353553385 : f32
    %18 = vector.broadcast %cst_13 : f32 to vector<8x8xf32>
    %19 = arith.mulf %17, %18 : vector<8x8xf32>
    %20 = vector.broadcast %7 : vector<1x8xf32> to vector<8x8xf32>
    %21 = arith.addf %19, %20 : vector<8x8xf32>
    %22 = arith.addf %21, %13 : vector<8x8xf32>
    %cst_14 = arith.constant dense<0xFF800000> : vector<8xf32>
    %23 = vector.multi_reduction <maximumf>, %22, %cst_14 [1] : vector<8x8xf32> to vector<8xf32>
    %24 = vector.shape_cast %23 : vector<8xf32> to vector<8x1xf32>
    %25 = vector.broadcast %24 : vector<8x1xf32> to vector<8x8xf32>
    %26 = arith.subf %22, %25 : vector<8x8xf32>
    %27 = math.exp %26 : vector<8x8xf32>
    %cst_15 = arith.constant dense<0.000000e+00> : vector<8xf32>
    %28 = vector.multi_reduction <add>, %27, %cst_15 [1] : vector<8x8xf32> to vector<8xf32>
    %29 = vector.shape_cast %28 : vector<8xf32> to vector<8x1xf32>
    %30 = tpu.reciprocal %29 {approx = true} : vector<8x1xf32> -> vector<8x1xf32>
    %31 = vector.broadcast %30 : vector<8x1xf32> to vector<8x8xf32>
    %32 = arith.mulf %27, %31 : vector<8x8xf32>
    %33 = arith.truncf %32 : vector<8x8xf32> to vector<8x8xbf16>
    %cst_16 = arith.constant dense<0.000000e+00> : vector<8x8xf32>
    %34 = tpu.matmul %33, %16, %cst_16 {dimension_numbers = #tpu.dot_dimension_numbers<[1], [0], [0], [1], [0, 0, 1, 1], [], []>} : vector<8x8xbf16>, vector<8x8xbf16>, vector<8x8xf32> -> vector<8x8xf32>
    %c0_17 = arith.constant 0 : index
    %c0_18 = arith.constant 0 : index
    %c0_19 = arith.constant 0 : index
    %35 = vector.load %arg5[%c0_17, %c0_18, %c0_19] : memref<1x8x32xf32, #tpu.memory_space<vmem>>, vector<1x8x8xf32>
    %36 = vector.shape_cast %35 : vector<1x8x8xf32> to vector<8x8xf32>
    %37 = vector.shape_cast %34 : vector<8x8xf32> to vector<1x8x8xf32>
    tpu.vector_store %arg5[%c0_17, %c0_18, %c0_19], %37 {strides = array<i32>} : memref<1x8x32xf32, #tpu.memory_space<vmem>>, vector<1x8x8xf32>,
    %38 = vector.extract_strided_slice %1 {offsets = [0, 8], sizes = [8, 8], strides = [1, 1]} : vector<8x32xbf16> to vector<8x8xbf16>
    %39 = vector.extract_strided_slice %3 {offsets = [0, 8], sizes = [8, 8], strides = [1, 1]} : vector<8x32xbf16> to vector<8x8xbf16>
    %40 = vector.extract_strided_slice %5 {offsets = [0, 8], sizes = [8, 8], strides = [1, 1]} : vector<8x32xbf16> to vector<8x8xbf16>
    %cst_20 = arith.constant dense<0.000000e+00> : vector<8x8xf32>
    %41 = tpu.matmul %38, %39, %cst_20 {dimension_numbers = #tpu.dot_dimension_numbers<[1], [1], [0], [0], [0, 0, 1, 0], [], []>} : vector<8x8xbf16>, vector<8x8xbf16>, vector<8x8xf32> -> vector<8x8xf32>
    %cst_21 = arith.constant 0.353553385 : f32
    %42 = vector.broadcast %cst_21 : f32 to vector<8x8xf32>
    %43 = arith.mulf %41, %42 : vector<8x8xf32>
    %44 = vector.broadcast %7 : vector<1x8xf32> to vector<8x8xf32>
    %45 = arith.addf %43, %44 : vector<8x8xf32>
    %46 = arith.addf %45, %13 : vector<8x8xf32>
    %cst_22 = arith.constant dense<0xFF800000> : vector<8xf32>
    %47 = vector.multi_reduction <maximumf>, %46, %cst_22 [1] : vector<8x8xf32> to vector<8xf32>
    %48 = vector.shape_cast %47 : vector<8xf32> to vector<8x1xf32>
    %49 = vector.broadcast %48 : vector<8x1xf32> to vector<8x8xf32>
    %50 = arith.subf %46, %49 : vector<8x8xf32>
    %51 = math.exp %50 : vector<8x8xf32>
    %cst_23 = arith.constant dense<0.000000e+00> : vector<8xf32>
    %52 = vector.multi_reduction <add>, %51, %cst_23 [1] : vector<8x8xf32> to vector<8xf32>
    %53 = vector.shape_cast %52 : vector<8xf32> to vector<8x1xf32>
    %54 = tpu.reciprocal %53 {approx = true} : vector<8x1xf32> -> vector<8x1xf32>
    %55 = vector.broadcast %54 : vector<8x1xf32> to vector<8x8xf32>
    %56 = arith.mulf %51, %55 : vector<8x8xf32>
    %57 = arith.truncf %56 : vector<8x8xf32> to vector<8x8xbf16>
    %cst_24 = arith.constant dense<0.000000e+00> : vector<8x8xf32>
    %58 = tpu.matmul %57, %40, %cst_24 {dimension_numbers = #tpu.dot_dimension_numbers<[1], [0], [0], [1], [0, 0, 1, 1], [], []>} : vector<8x8xbf16>, vector<8x8xbf16>, vector<8x8xf32> -> vector<8x8xf32>
    %c0_25 = arith.constant 0 : index
    %c0_26 = arith.constant 0 : index
    %c8 = arith.constant 8 : index
    %59 = vector.load %arg5[%c0_25, %c0_26, %c8] : memref<1x8x32xf32, #tpu.memory_space<vmem>>, vector<1x8x8xf32>
    %60 = vector.shape_cast %59 : vector<1x8x8xf32> to vector<8x8xf32>
    %61 = vector.shape_cast %58 : vector<8x8xf32> to vector<1x8x8xf32>
    tpu.vector_store %arg5[%c0_25, %c0_26, %c8], %61 {strides = array<i32>} : memref<1x8x32xf32, #tpu.memory_space<vmem>>, vector<1x8x8xf32>,
    %62 = vector.extract_strided_slice %1 {offsets = [0, 16], sizes = [8, 8], strides = [1, 1]} : vector<8x32xbf16> to vector<8x8xbf16>
    %63 = vector.extract_strided_slice %3 {offsets = [0, 16], sizes = [8, 8], strides = [1, 1]} : vector<8x32xbf16> to vector<8x8xbf16>
    %64 = vector.extract_strided_slice %5 {offsets = [0, 16], sizes = [8, 8], strides = [1, 1]} : vector<8x32xbf16> to vector<8x8xbf16>
    %cst_27 = arith.constant dense<0.000000e+00> : vector<8x8xf32>
    %65 = tpu.matmul %62, %63, %cst_27 {dimension_numbers = #tpu.dot_dimension_numbers<[1], [1], [0], [0], [0, 0, 1, 0], [], []>} : vector<8x8xbf16>, vector<8x8xbf16>, vector<8x8xf32> -> vector<8x8xf32>
    %cst_28 = arith.constant 0.353553385 : f32
    %66 = vector.broadcast %cst_28 : f32 to vector<8x8xf32>
    %67 = arith.mulf %65, %66 : vector<8x8xf32>
    %68 = vector.broadcast %7 : vector<1x8xf32> to vector<8x8xf32>
    %69 = arith.addf %67, %68 : vector<8x8xf32>
    %70 = arith.addf %69, %13 : vector<8x8xf32>
    %cst_29 = arith.constant dense<0xFF800000> : vector<8xf32>
    %71 = vector.multi_reduction <maximumf>, %70, %cst_29 [1] : vector<8x8xf32> to vector<8xf32>
    %72 = vector.shape_cast %71 : vector<8xf32> to vector<8x1xf32>
    %73 = vector.broadcast %72 : vector<8x1xf32> to vector<8x8xf32>
    %74 = arith.subf %70, %73 : vector<8x8xf32>
    %75 = math.exp %74 : vector<8x8xf32>
    %cst_30 = arith.constant dense<0.000000e+00> : vector<8xf32>
    %76 = vector.multi_reduction <add>, %75, %cst_30 [1] : vector<8x8xf32> to vector<8xf32>
    %77 = vector.shape_cast %76 : vector<8xf32> to vector<8x1xf32>
    %78 = tpu.reciprocal %77 {approx = true} : vector<8x1xf32> -> vector<8x1xf32>
    %79 = vector.broadcast %78 : vector<8x1xf32> to vector<8x8xf32>
    %80 = arith.mulf %75, %79 : vector<8x8xf32>
    %81 = arith.truncf %80 : vector<8x8xf32> to vector<8x8xbf16>
    %cst_31 = arith.constant dense<0.000000e+00> : vector<8x8xf32>
    %82 = tpu.matmul %81, %64, %cst_31 {dimension_numbers = #tpu.dot_dimension_numbers<[1], [0], [0], [1], [0, 0, 1, 1], [], []>} : vector<8x8xbf16>, vector<8x8xbf16>, vector<8x8xf32> -> vector<8x8xf32>
    %c0_32 = arith.constant 0 : index
    %c0_33 = arith.constant 0 : index
    %c16 = arith.constant 16 : index
    %83 = vector.load %arg5[%c0_32, %c0_33, %c16] : memref<1x8x32xf32, #tpu.memory_space<vmem>>, vector<1x8x8xf32>
    %84 = vector.shape_cast %83 : vector<1x8x8xf32> to vector<8x8xf32>
    %85 = vector.shape_cast %82 : vector<8x8xf32> to vector<1x8x8xf32>
    tpu.vector_store %arg5[%c0_32, %c0_33, %c16], %85 {strides = array<i32>} : memref<1x8x32xf32, #tpu.memory_space<vmem>>, vector<1x8x8xf32>,
    %86 = vector.extract_strided_slice %1 {offsets = [0, 24], sizes = [8, 8], strides = [1, 1]} : vector<8x32xbf16> to vector<8x8xbf16>
    %87 = vector.extract_strided_slice %3 {offsets = [0, 24], sizes = [8, 8], strides = [1, 1]} : vector<8x32xbf16> to vector<8x8xbf16>
    %88 = vector.extract_strided_slice %5 {offsets = [0, 24], sizes = [8, 8], strides = [1, 1]} : vector<8x32xbf16> to vector<8x8xbf16>
    %cst_34 = arith.constant dense<0.000000e+00> : vector<8x8xf32>
    %89 = tpu.matmul %86, %87, %cst_34 {dimension_numbers = #tpu.dot_dimension_numbers<[1], [1], [0], [0], [0, 0, 1, 0], [], []>} : vector<8x8xbf16>, vector<8x8xbf16>, vector<8x8xf32> -> vector<8x8xf32>
    %cst_35 = arith.constant 0.353553385 : f32
    %90 = vector.broadcast %cst_35 : f32 to vector<8x8xf32>
    %91 = arith.mulf %89, %90 : vector<8x8xf32>
    %92 = vector.broadcast %7 : vector<1x8xf32> to vector<8x8xf32>
    %93 = arith.addf %91, %92 : vector<8x8xf32>
    %94 = arith.addf %93, %13 : vector<8x8xf32>
    %cst_36 = arith.constant dense<0xFF800000> : vector<8xf32>
    %95 = vector.multi_reduction <maximumf>, %94, %cst_36 [1] : vector<8x8xf32> to vector<8xf32>
    %96 = vector.shape_cast %95 : vector<8xf32> to vector<8x1xf32>
    %97 = vector.broadcast %96 : vector<8x1xf32> to vector<8x8xf32>
    %98 = arith.subf %94, %97 : vector<8x8xf32>
    %99 = math.exp %98 : vector<8x8xf32>
    %cst_37 = arith.constant dense<0.000000e+00> : vector<8xf32>
    %100 = vector.multi_reduction <add>, %99, %cst_37 [1] : vector<8x8xf32> to vector<8xf32>
    %101 = vector.shape_cast %100 : vector<8xf32> to vector<8x1xf32>
    %102 = tpu.reciprocal %101 {approx = true} : vector<8x1xf32> -> vector<8x1xf32>
    %103 = vector.broadcast %102 : vector<8x1xf32> to vector<8x8xf32>
    %104 = arith.mulf %99, %103 : vector<8x8xf32>
    %105 = arith.truncf %104 : vector<8x8xf32> to vector<8x8xbf16>
    %cst_38 = arith.constant dense<0.000000e+00> : vector<8x8xf32>
    %106 = tpu.matmul %105, %88, %cst_38 {dimension_numbers = #tpu.dot_dimension_numbers<[1], [0], [0], [1], [0, 0, 1, 1], [], []>} : vector<8x8xbf16>, vector<8x8xbf16>, vector<8x8xf32> -> vector<8x8xf32>
    %c0_39 = arith.constant 0 : index
    %c0_40 = arith.constant 0 : index
    %c24 = arith.constant 24 : index
    %107 = vector.load %arg5[%c0_39, %c0_40, %c24] : memref<1x8x32xf32, #tpu.memory_space<vmem>>, vector<1x8x8xf32>
    %108 = vector.shape_cast %107 : vector<1x8x8xf32> to vector<8x8xf32>
    %109 = vector.shape_cast %106 : vector<8x8xf32> to vector<1x8x8xf32>
    tpu.vector_store %arg5[%c0_39, %c0_40, %c24], %109 {strides = array<i32>} : memref<1x8x32xf32, #tpu.memory_space<vmem>>, vector<1x8x8xf32>,
    return
  }
  func.func @transform_0(%arg0: i32) -> (i32, i32, i32) {
    %c0_i32 = arith.constant 0 : i32
    %c0_i32_0 = arith.constant 0 : i32
    %c0_i32_1 = arith.constant 0 : i32
    return %arg0, %c0_i32, %c0_i32_0 : i32, i32, i32
  }
  func.func @transform_1(%arg0: i32) -> (i32, i32, i32) {
    %c0_i32 = arith.constant 0 : i32
    %c0_i32_0 = arith.constant 0 : i32
    %c0_i32_1 = arith.constant 0 : i32
    return %arg0, %c0_i32, %c0_i32_0 : i32, i32, i32
  }
  func.func @transform_2(%arg0: i32) -> (i32, i32, i32) {
    %c0_i32 = arith.constant 0 : i32
    %c0_i32_0 = arith.constant 0 : i32
    %c0_i32_1 = arith.constant 0 : i32
    return %arg0, %c0_i32, %c0_i32_0 : i32, i32, i32
  }
  func.func @transform_3(%arg0: i32) -> (i32, i32, i32) {
    %c0_i32 = arith.constant 0 : i32
    %c0_i32_0 = arith.constant 0 : i32
    %c0_i32_1 = arith.constant 0 : i32
    return %arg0, %c0_i32, %c0_i32_0 : i32, i32, i32
  }
  func.func @transform_4(%arg0: i32) -> (i32, i32, i32) {
    %c0_i32 = arith.constant 0 : i32
    %c0_i32_0 = arith.constant 0 : i32
    %c0_i32_1 = arith.constant 0 : i32
    return %arg0, %c0_i32, %c0_i32_0 : i32, i32, i32
  }
}

module attributes {stable_mosaic.version = 11 : i64} {
  func.func @_matmul_bias_kernel(%arg0: i32, %arg1: i32, %arg2: i32, %arg3: memref<16x32xbf16, #tpu.memory_space<vmem>>, %arg4: memref<32x100xbf16, #tpu.memory_space<vmem>>, %arg5: memref<1x100xf32, #tpu.memory_space<vmem>>, %arg6: memref<16x100xf32, #tpu.memory_space<vmem>>, %arg7: memref<16x100xf32, #tpu.memory_space<vmem>>) attributes {dimension_semantics = [#tpu.dimension_semantics<parallel>, #tpu.dimension_semantics<parallel>, #tpu.dimension_semantics<arbitrary>], iteration_bounds = array<i64: 1, 1, 1>, scalar_prefetch = 0 : i64, scratch_operands = 1 : i64, tpu.core_type = #tpu.core_type<tc>, window_params = [{transform_indices = @transform_0, window_bounds = array<i64: 16, 32>}, {transform_indices = @transform_1, window_bounds = array<i64: 32, 100>}, {transform_indices = @transform_2, window_bounds = array<i64: 1, 100>}, {transform_indices = @transform_3, window_bounds = array<i64: 16, 100>}]} {
    %c0_i32 = arith.constant 0 : i32
    %0 = arith.cmpi eq, %arg2, %c0_i32 : i32
    %1 = arith.extui %0 : i1 to i32
    %c0_i32_0 = arith.constant 0 : i32
    %2 = arith.cmpi ne, %1, %c0_i32_0 : i32
    scf.if %2 {
      %cst_10 = arith.constant 0.000000e+00 : f32
      %12 = vector.broadcast %cst_10 : f32 to vector<16x100xf32>
      %c0_11 = arith.constant 0 : index
      %c0_12 = arith.constant 0 : index
      %13 = vector.load %arg7[%c0_11, %c0_12] : memref<16x100xf32, #tpu.memory_space<vmem>>, vector<16x100xf32>
      tpu.vector_store %arg7[%c0_11, %c0_12], %12 {strides = array<i32>} : memref<16x100xf32, #tpu.memory_space<vmem>>, vector<16x100xf32>,
    } else {
    }
    %c0 = arith.constant 0 : index
    %c0_1 = arith.constant 0 : index
    %3 = vector.load %arg7[%c0, %c0_1] : memref<16x100xf32, #tpu.memory_space<vmem>>, vector<16x100xf32>
    %c0_2 = arith.constant 0 : index
    %c0_3 = arith.constant 0 : index
    %4 = vector.load %arg3[%c0_2, %c0_3] : memref<16x32xbf16, #tpu.memory_space<vmem>>, vector<16x32xbf16>
    %c0_4 = arith.constant 0 : index
    %c0_5 = arith.constant 0 : index
    %5 = vector.load %arg4[%c0_4, %c0_5] : memref<32x100xbf16, #tpu.memory_space<vmem>>, vector<32x100xbf16>
    %cst = arith.constant dense<0.000000e+00> : vector<16x100xf32>
    %6 = tpu.matmul %4, %5, %cst {dimension_numbers = #tpu.dot_dimension_numbers<[1], [0], [0], [1], [0, 0, 1, 1], [], []>} : vector<16x32xbf16>, vector<32x100xbf16>, vector<16x100xf32> -> vector<16x100xf32>
    %7 = arith.addf %3, %6 : vector<16x100xf32>
    %c0_6 = arith.constant 0 : index
    %c0_7 = arith.constant 0 : index
    %8 = vector.load %arg7[%c0_6, %c0_7] : memref<16x100xf32, #tpu.memory_space<vmem>>, vector<16x100xf32>
    tpu.vector_store %arg7[%c0_6, %c0_7], %7 {strides = array<i32>} : memref<16x100xf32, #tpu.memory_space<vmem>>, vector<16x100xf32>,
    %c0_i32_8 = arith.constant 0 : i32
    %9 = arith.cmpi eq, %arg2, %c0_i32_8 : i32
    %10 = arith.extui %9 : i1 to i32
    %c0_i32_9 = arith.constant 0 : i32
    %11 = arith.cmpi ne, %10, %c0_i32_9 : i32
    scf.if %11 {
      %c0_10 = arith.constant 0 : index
      %c0_11 = arith.constant 0 : index
      %12 = vector.load %arg7[%c0_10, %c0_11] : memref<16x100xf32, #tpu.memory_space<vmem>>, vector<16x100xf32>
      %c0_12 = arith.constant 0 : index
      %c0_13 = arith.constant 0 : index
      %13 = vector.load %arg5[%c0_12, %c0_13] : memref<1x100xf32, #tpu.memory_space<vmem>>, vector<1x100xf32>
      %14 = vector.broadcast %13 : vector<1x100xf32> to vector<16x100xf32>
      %15 = arith.addf %12, %14 : vector<16x100xf32>
      %c0_14 = arith.constant 0 : index
      %c0_15 = arith.constant 0 : index
      %16 = vector.load %arg6[%c0_14, %c0_15] : memref<16x100xf32, #tpu.memory_space<vmem>>, vector<16x100xf32>
      tpu.vector_store %arg6[%c0_14, %c0_15], %15 {strides = array<i32>} : memref<16x100xf32, #tpu.memory_space<vmem>>, vector<16x100xf32>,
    } else {
    }
    return
  }
  func.func @transform_0(%arg0: i32, %arg1: i32, %arg2: i32) -> (i32, i32) {
    %c0_i32 = arith.constant 0 : i32
    return %arg0, %arg2 : i32, i32
  }
  func.func @transform_1(%arg0: i32, %arg1: i32, %arg2: i32) -> (i32, i32) {
    %c0_i32 = arith.constant 0 : i32
    return %arg2, %arg1 : i32, i32
  }
  func.func @transform_2(%arg0: i32, %arg1: i32, %arg2: i32) -> (i32, i32) {
    %c0_i32 = arith.constant 0 : i32
    %c0_i32_0 = arith.constant 0 : i32
    return %c0_i32, %arg1 : i32, i32
  }
  func.func @transform_3(%arg0: i32, %arg1: i32, %arg2: i32) -> (i32, i32) {
    %c0_i32 = arith.constant 0 : i32
    return %arg0, %arg1 : i32, i32
  }
}

</mosaic_0001>

<llo_original>
// kernel: transformer_forward.39
$region0: #{transformer_forward.39}
  #allocation0 [shape = 'u32[]', space=smem, size = 0x4, offset = 0x4, fixed_abs, tag = 'smem constant byte address 0x4 - core index']
  #allocation1 [shape = 'u32[144,128]{1,0:T(1,128)}', space=vmem, size = 0x12000, scoped, tag = 'internal scratch']
  #allocation2 [shape = 'f32[16,96]{1,0:T(8,128)}', space=vmem, size = 0x2000, scoped, tag = 'scratch operand']
  %s0 = inlined_call_operand.vmem [shape: bf16[16,32], index: 0, kind: input, shape index: {}]
  %s1 = inlined_call_operand.vmem [shape: bf16[32,96], index: 1, kind: input, shape index: {}]
  %s2 = inlined_call_operand.vmem [shape: f32[1,96], index: 2, kind: input, shape index: {}]
  %s3 = inlined_call_operand.vmem [shape: f32[16,96], index: 3, kind: output, shape index: {}]
  %s4 = sld [smem:[#allocation0]]
  $region30: #{transformer_forward.39} parent=0
    _
  %s6 = ssub.s32 1, %s4
  %s7 = scalar_select 0, %s6, %s4
  // Predicated region
  $region2: #{transformer_forward.39} parent=0 // pred_check
    _
  $region3: #{transformer_forward.39} parent=0 // pred_check_branch
    %9 = sbr.rel (0) target = $region5
  $region4: #{transformer_forward.39} parent=0 // pred_region
    _
  $region5: #{transformer_forward.39} parent=0 // pred_fallthru
    _
  // Predicated region
  $region6: #{transformer_forward.39} parent=0 // pred_check
    _
  $region7: #{transformer_forward.39} parent=0 // pred_check_branch
    %11 = sbr.rel (0) target = $region9
  $region8: #{transformer_forward.39} parent=0 // pred_region
    _
  $region9: #{transformer_forward.39} parent=0 // pred_fallthru
    _
  // Predicated region
  $region10: #{transformer_forward.39} parent=0 // pred_check
    _
  $region11: #{transformer_forward.39} parent=0 // pred_check_branch
    %13 = sbr.rel (0) target = $region13
  $region12: #{transformer_forward.39} parent=0 // pred_region
    _
  $region13: #{transformer_forward.39} parent=0 // pred_fallthru
    _
  %p15 = scmp.eq.s32.totalorder 0, 0
  // Predicated region
  $region14: #{transformer_forward.39} parent=0 // pred_check
    %p16 = pneg %p15
  $region15: #{transformer_forward.39} parent=0 // pred_check_branch
    %18 = sbr.rel (%p16) target = $region17
  $region16: #{transformer_forward.39} parent=0 // pred_region
    %vm19 = vcmask 785408
    %20 = vst.msk [vmem:[#allocation2] sm:$0xff] %vm19, 0.0
    %21 = vst.msk [vmem:[#allocation2 + $0x8] sm:$0xff] %vm19, 0.0
  $region17: #{transformer_forward.39} parent=0 // pred_fallthru
    _
  %v22 = vld [vmem:[#allocation2] sm:$0xff]
  %v23 = vld [vmem:[#allocation2 + $0x8] sm:$0xff]
  %v24 = vld [vmem:[%s0] sm:$0xf]
  %v25 = vld [vmem:[%s0 + $0x4] sm:$0xf]
  %v26 = vld [vmem:[%s1] sm:$0xf]
  %v27 = vld [vmem:[%s1 + $0x4] sm:$0xf]
  %v28 = vld [vmem:[%s1 + $0x8] sm:$0xf]
  %v29 = vld [vmem:[%s1 + $0xc] sm:$0xf]
  %v32 = vunpack.c.l.b16 %v24
  %v33 = vunpack.c.l.b16 %v25
  %v34 = vpack.c.b16 %v33, %v32
  %v39 = vunpack.c.l.b16 %v26
  %v40 = vunpack.c.l.b16 %v27
  %v41 = vunpack.c.l.b16 %v28
  %v42 = vunpack.c.l.b16 %v29
  %v43 = vpack.c.b16 %v40, %v39
  %v44 = vpack.c.b16 %v42, %v41
  %vm47 = vcmask 261120
  %v49 = vsel %vm47, %v34, 0
  %51 = vmatprep.subr.bf16.mxu0 0
  %52 = vmatpush1.bf16.msra.mxu0 %v43
  %53 = vmatprep.subr.bf16.mxu0 0
  %54 = vmatpush1.bf16.msra.mxu0 %v44
  %55 = vmatprep.subr.bf16.mxu0 0
  %56 = vmatpush1.bf16.msra.mxu0 0
  %57 = vmatprep.subr.bf16.mxu0 0
  %58 = vmatpush1.bf16.msra.mxu0 0
  %59 = vmatprep.subr.bf16.mxu0 0
  %60 = vmatpush1.bf16.msra.mxu0 0
  %61 = vmatprep.subr.bf16.mxu0 0
  %62 = vmatpush1.bf16.msra.mxu0 0
  %63 = vmatprep.subr.bf16.mxu0 0
  %64 = vmatpush1.bf16.msra.mxu0 0
  %65 = vmatprep.subr.bf16.mxu0 0
  %66 = vmatpush1.bf16.msra.mxu0 0
  %67 = vmatprep.subr.bf16.mxu0 0
  %68 = vmatpush1.bf16.msra.mxu0 0
  %69 = vmatprep.subr.bf16.mxu0 0
  %70 = vmatpush1.bf16.msra.mxu0 0
  %71 = vmatprep.subr.bf16.mxu0 0
  %72 = vmatpush1.bf16.msra.mxu0 0
  %73 = vmatprep.subr.bf16.mxu0 0
  %74 = vmatpush1.bf16.msra.mxu0 0
  %75 = vmatprep.subr.bf16.mxu0 0
  %76 = vmatpush1.bf16.msra.mxu0 0
  %77 = vmatprep.subr.bf16.mxu0 0
  %78 = vmatpush1.bf16.msra.mxu0 0
  %79 = vmatprep.subr.bf16.mxu0 0
  %80 = vmatpush1.bf16.msra.mxu0 0
  %81 = vmatprep.subr.bf16.mxu0 0
  %82 = vmatpush1.bf16.msra.mxu0 0
  %83 = vmatprep.mubr.bf16.mxu0 0
  %84 = vmatmul.mubr.bf16.gmra.mrb[0].mxu0 %v49
  %v85 = vpop.f32.mrb[0].mxu0
  %v86 = vadd.f32 0.0, %v85
  %v87 = vpop.f32.mrb[0].mxu0
  %v88 = vpop.f32.mrb[0].mxu0
  %v89 = vadd.f32 0.0, %v88
  %v90 = vpop.f32.mrb[0].mxu0
  %91 = vdwg.mxu0
  %v92 = vadd.f32 %v22, %v86
  %v93 = vadd.f32 %v23, %v89
  %vm94 = vcmask 785408
  %95 = vst.msk [vmem:[#allocation2] sm:$0xff] %vm94, %v92
  %96 = vst.msk [vmem:[#allocation2 + $0x8] sm:$0xff] %vm94, %v93
  // Predicated region
  $region18: #{transformer_forward.39} parent=0 // pred_check
    %p97 = pneg %p15
  $region19: #{transformer_forward.39} parent=0 // pred_check_branch
    %99 = sbr.rel (%p97) target = $region21
  $region20: #{transformer_forward.39} parent=0 // pred_region
    %v100 = vld [vmem:[#allocation2] sm:$0xff]
    %v101 = vld [vmem:[#allocation2 + $0x8] sm:$0xff]
    %v102 = vld [vmem:[%s2] sm:$0x1]
    %v104 = vlaneseq
    %v105 = vshrl.u32 %v104, 7
    %v106 = vsub.s32 0, %v105
    %v107 = vrot.slane %v102, %v106
    %v109 = vadd.f32 %v100, %v107
    %v110 = vadd.f32 %v101, %v107
    %111 = vst.msk [vmem:[%s3] sm:$0xff] %vm94, %v109
    %112 = vst.msk [vmem:[%s3 + $0x8] sm:$0xff] %vm94, %v110
  $region21: #{transformer_forward.39} parent=0 // pred_fallthru
    _
  // Predicated region
  $region22: #{transformer_forward.39} parent=0 // pred_check
    _
  $region23: #{transformer_forward.39} parent=0 // pred_check_branch
    %114 = sbr.rel (0) target = $region25
  $region24: #{transformer_forward.39} parent=0 // pred_region
    _
  $region25: #{transformer_forward.39} parent=0 // pred_fallthru
    _
  // Predicated region
  $region26: #{transformer_forward.39} parent=0 // pred_check
    _
  $region27: #{transformer_forward.39} parent=0 // pred_check_branch
    %116 = sbr.rel (0) target = $region29
  $region28: #{transformer_forward.39} parent=0 // pred_region
    _
  $region29: #{transformer_forward.39} parent=0 // pred_fallthru
    _

// kernel: transformer_forward.41
$region0: #{transformer_forward.41}
  #allocation0 [shape = 'u32[]', space=smem, size = 0x4, offset = 0x4, fixed_abs, tag = 'smem constant byte address 0x4 - core index']
  #allocation1 [shape = 'u32[144,128]{1,0:T(1,128)}', space=vmem, size = 0x12000, scoped, tag = 'internal scratch']
  #allocation2 [shape = 'f32[16,32]{1,0:T(8,128)}', space=vmem, size = 0x2000, scoped, tag = 'scratch operand']
  %s0 = inlined_call_operand.vmem [shape: bf16[16,32], index: 0, kind: input, shape index: {}]
  %s1 = inlined_call_operand.vmem [shape: bf16[32,32], index: 1, kind: input, shape index: {}]
  %s2 = inlined_call_operand.vmem [shape: f32[1,32], index: 2, kind: input, shape index: {}]
  %s3 = inlined_call_operand.vmem [shape: f32[16,32], index: 3, kind: output, shape index: {}]
  %s4 = sld [smem:[#allocation0]]
  $region30: #{transformer_forward.41} parent=0
    _
  %s6 = ssub.s32 1, %s4
  %s7 = scalar_select 0, %s6, %s4
  // Predicated region
  $region2: #{transformer_forward.41} parent=0 // pred_check
    _
  $region3: #{transformer_forward.41} parent=0 // pred_check_branch
    %9 = sbr.rel (0) target = $region5
  $region4: #{transformer_forward.41} parent=0 // pred_region
    _
  $region5: #{transformer_forward.41} parent=0 // pred_fallthru
    _
  // Predicated region
  $region6: #{transformer_forward.41} parent=0 // pred_check
    _
  $region7: #{transformer_forward.41} parent=0 // pred_check_branch
    %11 = sbr.rel (0) target = $region9
  $region8: #{transformer_forward.41} parent=0 // pred_region
    _
  $region9: #{transformer_forward.41} parent=0 // pred_fallthru
    _
  // Predicated region
  $region10: #{transformer_forward.41} parent=0 // pred_check
    _
  $region11: #{transformer_forward.41} parent=0 // pred_check_branch
    %13 = sbr.rel (0) target = $region13
  $region12: #{transformer_forward.41} parent=0 // pred_region
    _
  $region13: #{transformer_forward.41} parent=0 // pred_fallthru
    _
  %p15 = scmp.eq.s32.totalorder 0, 0
  // Predicated region
  $region14: #{transformer_forward.41} parent=0 // pred_check
    %p16 = pneg %p15
  $region15: #{transformer_forward.41} parent=0 // pred_check_branch
    %18 = sbr.rel (%p16) target = $region17
  $region16: #{transformer_forward.41} parent=0 // pred_region
    %vm19 = vcmask 261120
    %20 = vst.msk [vmem:[#allocation2] sm:$0xff] %vm19, 0.0
    %21 = vst.msk [vmem:[#allocation2 + $0x8] sm:$0xff] %vm19, 0.0
  $region17: #{transformer_forward.41} parent=0 // pred_fallthru
    _
  %v22 = vld [vmem:[#allocation2] sm:$0xff]
  %v23 = vld [vmem:[#allocation2 + $0x8] sm:$0xff]
  %v24 = vld [vmem:[%s0] sm:$0xf]
  %v25 = vld [vmem:[%s0 + $0x4] sm:$0xf]
  %v26 = vld [vmem:[%s1] sm:$0xf]
  %v27 = vld [vmem:[%s1 + $0x4] sm:$0xf]
  %v28 = vld [vmem:[%s1 + $0x8] sm:$0xf]
  %v29 = vld [vmem:[%s1 + $0xc] sm:$0xf]
  %v32 = vunpack.c.l.b16 %v24
  %v33 = vunpack.c.l.b16 %v25
  %v34 = vpack.c.b16 %v33, %v32
  %v39 = vunpack.c.l.b16 %v26
  %v40 = vunpack.c.l.b16 %v27
  %v41 = vunpack.c.l.b16 %v28
  %v42 = vunpack.c.l.b16 %v29
  %v43 = vpack.c.b16 %v40, %v39
  %v44 = vpack.c.b16 %v42, %v41
  %vm47 = vcmask 261120
  %v49 = vsel %vm47, %v34, 0
  %51 = vmatprep.subr.bf16.mxu0 0
  %52 = vmatpush1.bf16.msra.mxu0 %v43
  %53 = vmatprep.subr.bf16.mxu0 0
  %54 = vmatpush1.bf16.msra.mxu0 %v44
  %55 = vmatprep.subr.bf16.mxu0 0
  %56 = vmatpush1.bf16.msra.mxu0 0
  %57 = vmatprep.subr.bf16.mxu0 0
  %58 = vmatpush1.bf16.msra.mxu0 0
  %59 = vmatprep.subr.bf16.mxu0 0
  %60 = vmatpush1.bf16.msra.mxu0 0
  %61 = vmatprep.subr.bf16.mxu0 0
  %62 = vmatpush1.bf16.msra.mxu0 0
  %63 = vmatprep.subr.bf16.mxu0 0
  %64 = vmatpush1.bf16.msra.mxu0 0
  %65 = vmatprep.subr.bf16.mxu0 0
  %66 = vmatpush1.bf16.msra.mxu0 0
  %67 = vmatprep.subr.bf16.mxu0 0
  %68 = vmatpush1.bf16.msra.mxu0 0
  %69 = vmatprep.subr.bf16.mxu0 0
  %70 = vmatpush1.bf16.msra.mxu0 0
  %71 = vmatprep.subr.bf16.mxu0 0
  %72 = vmatpush1.bf16.msra.mxu0 0
  %73 = vmatprep.subr.bf16.mxu0 0
  %74 = vmatpush1.bf16.msra.mxu0 0
  %75 = vmatprep.subr.bf16.mxu0 0
  %76 = vmatpush1.bf16.msra.mxu0 0
  %77 = vmatprep.subr.bf16.mxu0 0
  %78 = vmatpush1.bf16.msra.mxu0 0
  %79 = vmatprep.subr.bf16.mxu0 0
  %80 = vmatpush1.bf16.msra.mxu0 0
  %81 = vmatprep.subr.bf16.mxu0 0
  %82 = vmatpush1.bf16.msra.mxu0 0
  %83 = vmatprep.mubr.bf16.mxu0 0
  %84 = vmatmul.mubr.bf16.gmra.mrb[0].mxu0 %v49
  %v85 = vpop.f32.mrb[0].mxu0
  %v86 = vadd.f32 0.0, %v85
  %v87 = vpop.f32.mrb[0].mxu0
  %v88 = vpop.f32.mrb[0].mxu0
  %v89 = vadd.f32 0.0, %v88
  %v90 = vpop.f32.mrb[0].mxu0
  %91 = vdwg.mxu0
  %v92 = vadd.f32 %v22, %v86
  %v93 = vadd.f32 %v23, %v89
  %94 = vst.msk [vmem:[#allocation2] sm:$0xff] %vm47, %v92
  %95 = vst.msk [vmem:[#allocation2 + $0x8] sm:$0xff] %vm47, %v93
  // Predicated region
  $region18: #{transformer_forward.41} parent=0 // pred_check
    %p96 = pneg %p15
  $region19: #{transformer_forward.41} parent=0 // pred_check_branch
    %98 = sbr.rel (%p96) target = $region21
  $region20: #{transformer_forward.41} parent=0 // pred_region
    %v99 = vld [vmem:[#allocation2] sm:$0xff]
    %v100 = vld [vmem:[#allocation2 + $0x8] sm:$0xff]
    %v101 = vld [vmem:[%s2] sm:$0x1]
    %v103 = vlaneseq
    %v104 = vshrl.u32 %v103, 7
    %v105 = vsub.s32 0, %v104
    %v106 = vrot.slane %v101, %v105
    %v108 = vadd.f32 %v99, %v106
    %v109 = vadd.f32 %v100, %v106
    %110 = vst.msk [vmem:[%s3] sm:$0xff] %vm47, %v108
    %111 = vst.msk [vmem:[%s3 + $0x8] sm:$0xff] %vm47, %v109
  $region21: #{transformer_forward.41} parent=0 // pred_fallthru
    _
  // Predicated region
  $region22: #{transformer_forward.41} parent=0 // pred_check
    _
  $region23: #{transformer_forward.41} parent=0 // pred_check_branch
    %113 = sbr.rel (0) target = $region25
  $region24: #{transformer_forward.41} parent=0 // pred_region
    _
  $region25: #{transformer_forward.41} parent=0 // pred_fallthru
    _
  // Predicated region
  $region26: #{transformer_forward.41} parent=0 // pred_check
    _
  $region27: #{transformer_forward.41} parent=0 // pred_check_branch
    %115 = sbr.rel (0) target = $region29
  $region28: #{transformer_forward.41} parent=0 // pred_region
    _
  $region29: #{transformer_forward.41} parent=0 // pred_fallthru
    _

// kernel: transformer_forward.42
$region0: #{transformer_forward.42}
  #allocation0 [shape = 'u32[]', space=smem, size = 0x4, offset = 0x4, fixed_abs, tag = 'smem constant byte address 0x4 - core index']
  #allocation1 [shape = 'u32[144,128]{1,0:T(1,128)}', space=vmem, size = 0x12000, scoped, tag = 'internal scratch']
  %s0 = inlined_call_operand.vmem [shape: f32[16,32], index: 0, kind: input, shape index: {}]
  %s1 = inlined_call_operand.vmem [shape: f32[16,32], index: 1, kind: input, shape index: {}]
  %s2 = inlined_call_operand.vmem [shape: f32[1,32], index: 2, kind: input, shape index: {}]
  %s3 = inlined_call_operand.vmem [shape: f32[1,32], index: 3, kind: input, shape index: {}]
  %s4 = inlined_call_operand.vmem [shape: f32[16,32], index: 4, kind: output, shape index: {}]
  %s5 = sld [smem:[#allocation0]]
  $region26: #{transformer_forward.42} parent=0
    _
  %s7 = ssub.s32 1, %s5
  %s8 = scalar_select 0, %s7, %s5
  // Predicated region
  $region2: #{transformer_forward.42} parent=0 // pred_check
    _
  $region3: #{transformer_forward.42} parent=0 // pred_check_branch
    %10 = sbr.rel (0) target = $region5
  $region4: #{transformer_forward.42} parent=0 // pred_region
    _
  $region5: #{transformer_forward.42} parent=0 // pred_fallthru
    _
  // Predicated region
  $region6: #{transformer_forward.42} parent=0 // pred_check
    _
  $region7: #{transformer_forward.42} parent=0 // pred_check_branch
    %12 = sbr.rel (0) target = $region9
  $region8: #{transformer_forward.42} parent=0 // pred_region
    _
  $region9: #{transformer_forward.42} parent=0 // pred_fallthru
    _
  // Predicated region
  $region10: #{transformer_forward.42} parent=0 // pred_check
    _
  $region11: #{transformer_forward.42} parent=0 // pred_check_branch
    %14 = sbr.rel (0) target = $region13
  $region12: #{transformer_forward.42} parent=0 // pred_region
    _
  $region13: #{transformer_forward.42} parent=0 // pred_fallthru
    _
  // Predicated region
  $region14: #{transformer_forward.42} parent=0 // pred_check
    _
  $region15: #{transformer_forward.42} parent=0 // pred_check_branch
    %16 = sbr.rel (0) target = $region17
  $region16: #{transformer_forward.42} parent=0 // pred_region
    _
  $region17: #{transformer_forward.42} parent=0 // pred_fallthru
    _
  %v17 = vld [vmem:[%s0] sm:$0xff]
  %v18 = vld [vmem:[%s0 + $0x8] sm:$0xff]
  %v19 = vld [vmem:[%s1] sm:$0xff]
  %v20 = vld [vmem:[%s1 + $0x8] sm:$0xff]
  %v21 = vadd.f32 %v17, %v19
  %v22 = vadd.f32 %v18, %v20
  %vm23 = vcmask 261120
  %v24 = vsel %vm23, %v21, 0.0
  %25 = vadd.xlane.f32.xlu0 %v24
  %v26 = vpop.xlane.xlu0 %25
  %v27 = vsel %vm23, %v22, 0.0
  %28 = vadd.xlane.f32.xlu0 %v27
  %v29 = vpop.xlane.xlu0 %28
  %v30 = vrcp.pop 32.0
  %v31 = vmul.f32 %v26, %v30
  %v32 = vmul.f32 %v29, %v30
  %v33 = vsub.f32 %v21, %v31
  %v34 = vsub.f32 %v22, %v32
  %v35 = vmul.f32 %v33, %v33
  %v36 = vmul.f32 %v34, %v34
  %v37 = vsel %vm23, %v35, 0.0
  %38 = vadd.xlane.f32.xlu0 %v37
  %v39 = vpop.xlane.xlu0 %38
  %v40 = vsel %vm23, %v36, 0.0
  %41 = vadd.xlane.f32.xlu0 %v40
  %v42 = vpop.xlane.xlu0 %41
  %v43 = vmul.f32 %v39, %v30
  %v44 = vmul.f32 %v42, %v30
  %v45 = vadd.f32 %v43, 1e-05
  %v46 = vadd.f32 %v44, 1e-05
  %v47 = vrsqrt.pop %v45
  %v48 = vrsqrt.pop %v46
  %v49 = vmul.f32 %v33, %v47
  %v50 = vmul.f32 %v34, %v48
  %v51 = vld [vmem:[%s2] sm:$0x1]
  %v53 = vlaneseq
  %v54 = vshrl.u32 %v53, 7
  %v55 = vsub.s32 0, %v54
  %v56 = vrot.slane %v51, %v55
  %v58 = vmul.f32 %v49, %v56
  %v59 = vmul.f32 %v50, %v56
  %v60 = vld [vmem:[%s3] sm:$0x1]
  %v62 = vlaneseq
  %v63 = vshrl.u32 %v62, 7
  %v64 = vsub.s32 0, %v63
  %v65 = vrot.slane %v60, %v64
  %v67 = vadd.f32 %v58, %v65
  %v68 = vadd.f32 %v59, %v65
  %69 = vst.msk [vmem:[%s4] sm:$0xff] %vm23, %v67
  %70 = vst.msk [vmem:[%s4 + $0x8] sm:$0xff] %vm23, %v68
  // Predicated region
  $region18: #{transformer_forward.42} parent=0 // pred_check
    _
  $region19: #{transformer_forward.42} parent=0 // pred_check_branch
    %72 = sbr.rel (0) target = $region21
  $region20: #{transformer_forward.42} parent=0 // pred_region
    _
  $region21: #{transformer_forward.42} parent=0 // pred_fallthru
    _
  // Predicated region
  $region22: #{transformer_forward.42} parent=0 // pred_check
    _
  $region23: #{transformer_forward.42} parent=0 // pred_check_branch
    %74 = sbr.rel (0) target = $region25
  $region24: #{transformer_forward.42} parent=0 // pred_region
    _
  $region25: #{transformer_forward.42} parent=0 // pred_fallthru
    _

// kernel: transformer_forward.40
$region0: #{transformer_forward.40}
  #allocation0 [shape = 'u32[]', space=smem, size = 0x4, offset = 0x4, fixed_abs, tag = 'smem constant byte address 0x4 - core index']
  #allocation1 [shape = 'u32[144,128]{1,0:T(1,128)}', space=vmem, size = 0x12000, scoped, tag = 'internal scratch']
  %s0 = inlined_call_operand.vmem [shape: bf16[2,8,32], index: 0, kind: input, shape index: {}]
  %s1 = inlined_call_operand.vmem [shape: bf16[2,8,32], index: 1, kind: input, shape index: {}]
  %s2 = inlined_call_operand.vmem [shape: bf16[2,8,32], index: 2, kind: input, shape index: {}]
  %s3 = inlined_call_operand.vmem [shape: f32[2,1,8], index: 3, kind: input, shape index: {}]
  %s4 = inlined_call_operand.vmem [shape: f32[2,8,32], index: 4, kind: output, shape index: {}]
  %s5 = sld [smem:[#allocation0]]
  $region49: #{transformer_forward.40} parent=0
    _
  %s7 = ssub.s32 1, %s5
  %s8 = scalar_select 0, %s7, %s5
  loop: start=0, step=1, limit=4
  $region2: #{transformer_forward.40} parent=0 // loop_pre_header
    _
  $region3: #{transformer_forward.40} parent=0 // loop_header
    %s10 = sphi 0, %s14
    %p11 = scmp.ge.s32.totalorder %s10, 4
    %s20 = sphi 0, %s22
    %s23 = sphi 0, %s20
    %s24 = sphi 0, %s23
    %s40 = sphi 0, %s24
    %s46 = sphi 0, %s48
    %s49 = sphi 0, %s46
    %s50 = sphi 0, %s49
    %s66 = sphi 0, %s50
    %s72 = sphi 0, %s74
    %s75 = sphi 0, %s72
    %s76 = sphi 0, %s75
    %s92 = sphi 0, %s76
    %s98 = sphi 0, %s100
    %s101 = sphi 0, %s98
    %s102 = sphi 0, %s101
    %s118 = sphi 0, %s102
    %s124 = sphi 0, %s126
    %s127 = sphi 0, %s124
    %s128 = sphi 0, %s127
    %s144 = sphi 0, %s128
  $region4: #{transformer_forward.40} parent=0 // loop_header_branch
    %13 = sbr.rel (%p11) target = $region8
  $region5: #{transformer_forward.40} parent=0 // loop_body
    %s15 = ssub.s32 %s10, 1
    %s16 = ssub.s32 %s10, 2
    %s17 = sadd.s32 %s10, 1
    %s18 = ssub.s32 %s10, %s17
    %p19 = scmp.eq.s32.totalorder %s18, 0
    %s21 = sadd.s32 %s20, 1
    %s22 = scalar_select %p19, %s20, %s21
    %p25 = pneg %p19
    %p26 = scmp.eq.s32.totalorder %s10, 1
    %p27 = por %p25, %p26
    %p28 = scmp.ne.s32.totalorder %s20, %s23
    %p29 = scmp.eq.s32.totalorder %s10, 0
    %p30 = por %p28, %p29
    %p31 = scmp.ne.s32.totalorder %s20, %s23
    %p32 = scmp.eq.s32.totalorder %s15, 1
    %p33 = por %p31, %p32
    %p34 = scmp.ne.s32.totalorder %s23, %s24
    %p35 = scmp.eq.s32.totalorder %s15, 0
    %p36 = por %p34, %p35
    %p37 = scmp.ne.s32.totalorder %s23, %s24
    %p38 = scmp.eq.s32.totalorder %s16, 1
    %p39 = por %p37, %p38
    %p41 = scmp.ne.s32.totalorder %s24, %s40
    %p42 = scmp.eq.s32.totalorder %s16, 0
    %p43 = por %p41, %p42
    %s44 = ssub.s32 %s10, %s17
    %p45 = scmp.eq.s32.totalorder %s44, 0
    %s47 = sadd.s32 %s46, 1
    %s48 = scalar_select %p45, %s46, %s47
    %p51 = pneg %p45
    %p52 = scmp.eq.s32.totalorder %s10, 1
    %p53 = por %p51, %p52
    %p54 = scmp.ne.s32.totalorder %s46, %s49
    %p55 = scmp.eq.s32.totalorder %s10, 0
    %p56 = por %p54, %p55
    %p57 = scmp.ne.s32.totalorder %s46, %s49
    %p58 = scmp.eq.s32.totalorder %s15, 1
    %p59 = por %p57, %p58
    %p60 = scmp.ne.s32.totalorder %s49, %s50
    %p61 = scmp.eq.s32.totalorder %s15, 0
    %p62 = por %p60, %p61
    %p63 = scmp.ne.s32.totalorder %s49, %s50
    %p64 = scmp.eq.s32.totalorder %s16, 1
    %p65 = por %p63, %p64
    %p67 = scmp.ne.s32.totalorder %s50, %s66
    %p68 = scmp.eq.s32.totalorder %s16, 0
    %p69 = por %p67, %p68
    %s70 = ssub.s32 %s10, %s17
    %p71 = scmp.eq.s32.totalorder %s70, 0
    %s73 = sadd.s32 %s72, 1
    %s74 = scalar_select %p71, %s72, %s73
    %p77 = pneg %p71
    %p78 = scmp.eq.s32.totalorder %s10, 1
    %p79 = por %p77, %p78
    %p80 = scmp.ne.s32.totalorder %s72, %s75
    %p81 = scmp.eq.s32.totalorder %s10, 0
    %p82 = por %p80, %p81
    %p83 = scmp.ne.s32.totalorder %s72, %s75
    %p84 = scmp.eq.s32.totalorder %s15, 1
    %p85 = por %p83, %p84
    %p86 = scmp.ne.s32.totalorder %s75, %s76
    %p87 = scmp.eq.s32.totalorder %s15, 0
    %p88 = por %p86, %p87
    %p89 = scmp.ne.s32.totalorder %s75, %s76
    %p90 = scmp.eq.s32.totalorder %s16, 1
    %p91 = por %p89, %p90
    %p93 = scmp.ne.s32.totalorder %s76, %s92
    %p94 = scmp.eq.s32.totalorder %s16, 0
    %p95 = por %p93, %p94
    %s96 = ssub.s32 %s10, %s17
    %p97 = scmp.eq.s32.totalorder %s96, 0
    %s99 = sadd.s32 %s98, 1
    %s100 = scalar_select %p97, %s98, %s99
    %p103 = pneg %p97
    %p104 = scmp.eq.s32.totalorder %s10, 1
    %p105 = por %p103, %p104
    %p106 = scmp.ne.s32.totalorder %s98, %s101
    %p107 = scmp.eq.s32.totalorder %s10, 0
    %p108 = por %p106, %p107
    %p109 = scmp.ne.s32.totalorder %s98, %s101
    %p110 = scmp.eq.s32.totalorder %s15, 1
    %p111 = por %p109, %p110
    %p112 = scmp.ne.s32.totalorder %s101, %s102
    %p113 = scmp.eq.s32.totalorder %s15, 0
    %p114 = por %p112, %p113
    %p115 = scmp.ne.s32.totalorder %s101, %s102
    %p116 = scmp.eq.s32.totalorder %s16, 1
    %p117 = por %p115, %p116
    %p119 = scmp.ne.s32.totalorder %s102, %s118
    %p120 = scmp.eq.s32.totalorder %s16, 0
    %p121 = por %p119, %p120
    %s122 = ssub.s32 %s10, %s17
    %p123 = scmp.eq.s32.totalorder %s122, 0
    %s125 = sadd.s32 %s124, 1
    %s126 = scalar_select %p123, %s124, %s125
    %p129 = pneg %p123
    %p130 = scmp.eq.s32.totalorder %s10, 1
    %p131 = por %p129, %p130
    %p132 = scmp.ne.s32.totalorder %s124, %s127
    %p133 = scmp.eq.s32.totalorder %s10, 0
    %p134 = por %p132, %p133
    %p135 = scmp.ne.s32.totalorder %s124, %s127
    %p136 = scmp.eq.s32.totalorder %s15, 1
    %p137 = por %p135, %p136
    %p138 = scmp.ne.s32.totalorder %s127, %s128
    %p139 = scmp.eq.s32.totalorder %s15, 0
    %p140 = por %p138, %p139
    %p141 = scmp.ne.s32.totalorder %s127, %s128
    %p142 = scmp.eq.s32.totalorder %s16, 1
    %p143 = por %p141, %p142
    %p145 = scmp.ne.s32.totalorder %s128, %s144
    %p146 = scmp.eq.s32.totalorder %s16, 0
    %p147 = por %p145, %p146
    %p148 = scmp.le.s32.totalorder 1, %s10
    %p149 = scmp.lt.s32.totalorder %s10, 3
    %p150 = pnand %p148, %p149
    %p151 = pneg %p150
    // Predicated region
    $region9: #{transformer_forward.40} parent=5 // pred_check
      _
    $region10: #{transformer_forward.40} parent=5 // pred_check_branch
      %153 = sbr.rel (%p150) target = $region12
    $region11: #{transformer_forward.40} parent=5 // pred_region
      %s154 = ssub.s32 %s10, 1
    $region12: #{transformer_forward.40} parent=5 // pred_fallthru
      _
    %p155 = scmp.lt.s32.totalorder %s10, 2
    // Predicated region
    $region13: #{transformer_forward.40} parent=5 // pred_check
      %p156 = pneg %p155
    $region14: #{transformer_forward.40} parent=5 // pred_check_branch
      %158 = sbr.rel (%p156) target = $region16
    $region15: #{transformer_forward.40} parent=5 // pred_region
      // Predicated region
      $region17: #{transformer_forward.40} parent=15 // pred_check
        %p159 = pneg %p30
      $region18: #{transformer_forward.40} parent=15 // pred_check_branch
        %161 = sbr.rel (%p159) target = $region20
      $region19: #{transformer_forward.40} parent=15 // pred_region
        %p162 = scmp.lt.s32.totalorder %s10, 1
        %s163 = scalar_select %p162, %s10, 1
        %s164 = smul.addr %s163, 4
        %s165 = scalar_lea.vmem %s0, %s164
      $region20: #{transformer_forward.40} parent=15 // pred_fallthru
        _
      // Predicated region
      $region21: #{transformer_forward.40} parent=15 // pred_check
        %p166 = pneg %p56
      $region22: #{transformer_forward.40} parent=15 // pred_check_branch
        %168 = sbr.rel (%p166) target = $region24
      $region23: #{transformer_forward.40} parent=15 // pred_region
        %p169 = scmp.lt.s32.totalorder %s10, 1
        %s170 = scalar_select %p169, %s10, 1
        %s171 = smul.addr %s170, 4
        %s172 = scalar_lea.vmem %s1, %s171
      $region24: #{transformer_forward.40} parent=15 // pred_fallthru
        _
      // Predicated region
      $region25: #{transformer_forward.40} parent=15 // pred_check
        %p173 = pneg %p82
      $region26: #{transformer_forward.40} parent=15 // pred_check_branch
        %175 = sbr.rel (%p173) target = $region28
      $region27: #{transformer_forward.40} parent=15 // pred_region
        %p176 = scmp.lt.s32.totalorder %s10, 1
        %s177 = scalar_select %p176, %s10, 1
        %s178 = smul.addr %s177, 4
        %s179 = scalar_lea.vmem %s2, %s178
      $region28: #{transformer_forward.40} parent=15 // pred_fallthru
        _
      // Predicated region
      $region29: #{transformer_forward.40} parent=15 // pred_check
        %p180 = pneg %p108
      $region30: #{transformer_forward.40} parent=15 // pred_check_branch
        %182 = sbr.rel (%p180) target = $region32
      $region31: #{transformer_forward.40} parent=15 // pred_region
        %p183 = scmp.lt.s32.totalorder %s10, 1
        %s184 = scalar_select %p183, %s10, 1
        %s185 = scalar_lea.vmem %s3, %s184
      $region32: #{transformer_forward.40} parent=15 // pred_fallthru
        _
    $region16: #{transformer_forward.40} parent=5 // pred_fallthru
      _
    %p186 = scmp.le.s32.totalorder 1, %s10
    %p187 = scmp.lt.s32.totalorder %s10, 3
    %p188 = pnand %p186, %p187
    %p189 = pneg %p188
    // Predicated region
    $region33: #{transformer_forward.40} parent=5 // pred_check
      _
    $region34: #{transformer_forward.40} parent=5 // pred_check_branch
      %191 = sbr.rel (%p188) target = $region36
    $region35: #{transformer_forward.40} parent=5 // pred_region
      %s192 = ssub.s32 %s10, 1
      %p193 = scmp.lt.s32.totalorder %s15, 1
      %s194 = scalar_select %p193, %s15, 1
      %s195 = smul.addr %s194, 4
      %s196 = scalar_lea.vmem %s0, %s195
      %p197 = pneg %p36
      %p198 = pneg %p33
      %p199 = scmp.lt.s32.totalorder %s15, 1
      %s200 = scalar_select %p199, %s15, 1
      %s201 = smul.addr %s200, 4
      %s202 = scalar_lea.vmem %s1, %s201
      %p203 = pneg %p62
      %p204 = pneg %p59
      %p205 = scmp.lt.s32.totalorder %s15, 1
      %s206 = scalar_select %p205, %s15, 1
      %s207 = smul.addr %s206, 4
      %s208 = scalar_lea.vmem %s2, %s207
      %p209 = pneg %p88
      %p210 = pneg %p85
      %p211 = scmp.lt.s32.totalorder %s15, 1
      %s212 = scalar_select %p211, %s15, 1
      %s213 = scalar_lea.vmem %s3, %s212
      %p214 = pneg %p114
      %p215 = pneg %p111
      %p216 = pneg %p140
      %p217 = pneg %p137
      %p218 = scmp.lt.s32.totalorder %s15, 1
      %s219 = scalar_select %p218, %s15, 1
      %s220 = smul.addr %s219, 8
      %s221 = scalar_lea.vmem %s4, %s220
      %p222 = scmp.lt.s32.totalorder %s15, 1
      %s223 = scalar_select %p222, %s15, 1
      %s224 = smul.addr %s223, 4
      %s225 = scalar_lea.vmem %s0, %s224
      %p226 = scmp.lt.s32.totalorder %s15, 1
      %s227 = scalar_select %p226, %s15, 1
      %s228 = smul.addr %s227, 4
      %s229 = scalar_lea.vmem %s1, %s228
      %p230 = scmp.lt.s32.totalorder %s15, 1
      %s231 = scalar_select %p230, %s15, 1
      %s232 = smul.addr %s231, 4
      %s233 = scalar_lea.vmem %s2, %s232
      %p234 = scmp.lt.s32.totalorder %s15, 1
      %s235 = scalar_select %p234, %s15, 1
      %s236 = scalar_lea.vmem %s3, %s235
      %p237 = scmp.lt.s32.totalorder %s15, 1
      %s238 = scalar_select %p237, %s15, 1
      %s239 = smul.addr %s238, 8
      %s240 = scalar_lea.vmem %s4, %s239
      %v242 = vld [vmem:[%s225] sm:$0xf]
      %v243 = vld [vmem:[%s229] sm:$0xf]
      %v244 = vld [vmem:[%s233] sm:$0xf]
      %v245 = vld [vmem:[%s236] sm:$0x1]
      %vm246 = vcmask 64512
      %v248 = vsel %vm246, %v242, 0
      %v251 = vsel %vm246, %v243, 0
      %253 = vmatprep.subr.bf16.mxu0 0
      %254 = vmatpush1.bf16.xpose.msra.mxu0 %v251
      %255 = vmatprep.subr.bf16.mxu0 0
      %256 = vmatpush1.bf16.xpose.msra.mxu0 0
      %257 = vmatprep.subr.bf16.mxu0 0
      %258 = vmatpush1.bf16.xpose.msra.mxu0 0
      %259 = vmatprep.subr.bf16.mxu0 0
      %260 = vmatpush1.bf16.xpose.msra.mxu0 0
      %261 = vmatprep.subr.bf16.mxu0 0
      %262 = vmatpush1.bf16.xpose.msra.mxu0 0
      %263 = vmatprep.subr.bf16.mxu0 0
      %264 = vmatpush1.bf16.xpose.msra.mxu0 0
      %265 = vmatprep.subr.bf16.mxu0 0
      %266 = vmatpush1.bf16.xpose.msra.mxu0 0
      %267 = vmatprep.subr.bf16.mxu0 0
      %268 = vmatpush1.bf16.xpose.msra.mxu0 0
      %269 = vmatprep.subr.bf16.mxu0 0
      %270 = vmatpush1.bf16.xpose.msra.mxu0 0
      %271 = vmatprep.subr.bf16.mxu0 0
      %272 = vmatpush1.bf16.xpose.msra.mxu0 0
      %273 = vmatprep.subr.bf16.mxu0 0
      %274 = vmatpush1.bf16.xpose.msra.mxu0 0
      %275 = vmatprep.subr.bf16.mxu0 0
      %276 = vmatpush1.bf16.xpose.msra.mxu0 0
      %277 = vmatprep.subr.bf16.mxu0 0
      %278 = vmatpush1.bf16.xpose.msra.mxu0 0
      %279 = vmatprep.subr.bf16.mxu0 0
      %280 = vmatpush1.bf16.xpose.msra.mxu0 0
      %281 = vmatprep.subr.bf16.mxu0 0
      %282 = vmatpush1.bf16.xpose.msra.mxu0 0
      %283 = vmatprep.subr.bf16.mxu0 0
      %284 = vmatpush1.bf16.xpose.msra.mxu0 0
      %285 = vmatprep.mubr.bf16.mxu0 0
      %286 = vmatmul.mubr.bf16.gmra.mrb[0].mxu0 %v248
      %v287 = vpop.f32.mrb[0].mxu0
      %v288 = vadd.f32 0.0, %v287
      %v289 = vpop.f32.mrb[0].mxu0
      %v290 = vpop.f32.mrb[0].mxu0
      %v291 = vpop.f32.mrb[0].mxu0
      %292 = vdwg.mxu0
      %v293 = vmul.f32 %v288, 0.35355338
      %v295 = vlaneseq
      %v296 = vshrl.u32 %v295, 7
      %v297 = vsub.s32 0, %v296
      %v298 = vrot.slane %v245, %v297
      %v300 = vadd.f32 %v293, %v298
      %v301 = vsel %vm246, %v300, -inf
      %302 = vmax.xlane.f32.xlu0 %v301
      %v303 = vpop.xlane.xlu0 %302
      %v304 = vsub.f32 %v300, %v303
      %v305 = vmul.f32 %v304, 1.442695
      %v306 = vpow.pop %v305
      %v307 = vsel %vm246, %v306, 0.0
      %308 = vadd.xlane.f32.xlu0 %v307
      %v309 = vpop.xlane.xlu0 %308
      %v310 = vrcp.pop %v309
      %v311 = vmul.f32 %v306, %v310
      %v312 = vpack.c.bf16 %v311, %v311
      %v314 = vsel %vm246, %v312, 0
      %vm316 = vcmask 1043456
      %v318 = vsel %vm316, %v244, 0
      %320 = vmatprep.subr.bf16.mxu0 0
      %321 = vmatpush1.bf16.msra.mxu0 %v318
      %322 = vmatprep.subr.bf16.mxu0 0
      %323 = vmatpush1.bf16.msra.mxu0 0
      %324 = vmatprep.subr.bf16.mxu0 0
      %325 = vmatpush1.bf16.msra.mxu0 0
      %326 = vmatprep.subr.bf16.mxu0 0
      %327 = vmatpush1.bf16.msra.mxu0 0
      %328 = vmatprep.subr.bf16.mxu0 0
      %329 = vmatpush1.bf16.msra.mxu0 0
      %330 = vmatprep.subr.bf16.mxu0 0
      %331 = vmatpush1.bf16.msra.mxu0 0
      %332 = vmatprep.subr.bf16.mxu0 0
      %333 = vmatpush1.bf16.msra.mxu0 0
      %334 = vmatprep.subr.bf16.mxu0 0
      %335 = vmatpush1.bf16.msra.mxu0 0
      %336 = vmatprep.subr.bf16.mxu0 0
      %337 = vmatpush1.bf16.msra.mxu0 0
      %338 = vmatprep.subr.bf16.mxu0 0
      %339 = vmatpush1.bf16.msra.mxu0 0
      %340 = vmatprep.subr.bf16.mxu0 0
      %341 = vmatpush1.bf16.msra.mxu0 0
      %342 = vmatprep.subr.bf16.mxu0 0
      %343 = vmatpush1.bf16.msra.mxu0 0
      %344 = vmatprep.subr.bf16.mxu0 0
      %345 = vmatpush1.bf16.msra.mxu0 0
      %346 = vmatprep.subr.bf16.mxu0 0
      %347 = vmatpush1.bf16.msra.mxu0 0
      %348 = vmatprep.subr.bf16.mxu0 0
      %349 = vmatpush1.bf16.msra.mxu0 0
      %350 = vmatprep.subr.bf16.mxu0 0
      %351 = vmatpush1.bf16.msra.mxu0 0
      %352 = vmatprep.mubr.bf16.mxu0 0
      %353 = vmatmul.mubr.bf16.gmra.mrb[0].mxu0 %v314
      %v354 = vpop.f32.mrb[0].mxu0
      %v355 = vadd.f32 0.0, %v354
      %v356 = vpop.f32.mrb[0].mxu0
      %v357 = vpop.f32.mrb[0].mxu0
      %v358 = vpop.f32.mrb[0].mxu0
      %359 = vdwg.mxu0
      %360 = vst.msk [vmem:[%s240] sm:$0xff] %vm246, %v355
      %v362 = vunpack.c.l.b16 %v242
      %v363 = vpack.c.b16 %v362, %v362
      %364 = vrot.lane.b32.xlu0 %v363, 120
      %v365 = vpop.permute.xlu0 %364
      %v367 = vunpack.c.l.b16 %v243
      %v368 = vpack.c.b16 %v367, %v367
      %369 = vrot.lane.b32.xlu0 %v368, 120
      %v370 = vpop.permute.xlu0 %369
      %v372 = vsel %vm246, %v365, 0
      %v375 = vsel %vm246, %v370, 0
      %377 = vmatprep.subr.bf16.mxu0 0
      %378 = vmatpush1.bf16.xpose.msra.mxu0 %v375
      %379 = vmatprep.subr.bf16.mxu0 0
      %380 = vmatpush1.bf16.xpose.msra.mxu0 0
      %381 = vmatprep.subr.bf16.mxu0 0
      %382 = vmatpush1.bf16.xpose.msra.mxu0 0
      %383 = vmatprep.subr.bf16.mxu0 0
      %384 = vmatpush1.bf16.xpose.msra.mxu0 0
      %385 = vmatprep.subr.bf16.mxu0 0
      %386 = vmatpush1.bf16.xpose.msra.mxu0 0
      %387 = vmatprep.subr.bf16.mxu0 0
      %388 = vmatpush1.bf16.xpose.msra.mxu0 0
      %389 = vmatprep.subr.bf16.mxu0 0
      %390 = vmatpush1.bf16.xpose.msra.mxu0 0
      %391 = vmatprep.subr.bf16.mxu0 0
      %392 = vmatpush1.bf16.xpose.msra.mxu0 0
      %393 = vmatprep.subr.bf16.mxu0 0
      %394 = vmatpush1.bf16.xpose.msra.mxu0 0
      %395 = vmatprep.subr.bf16.mxu0 0
      %396 = vmatpush1.bf16.xpose.msra.mxu0 0
      %397 = vmatprep.subr.bf16.mxu0 0
      %398 = vmatpush1.bf16.xpose.msra.mxu0 0
      %399 = vmatprep.subr.bf16.mxu0 0
      %400 = vmatpush1.bf16.xpose.msra.mxu0 0
      %401 = vmatprep.subr.bf16.mxu0 0
      %402 = vmatpush1.bf16.xpose.msra.mxu0 0
      %403 = vmatprep.subr.bf16.mxu0 0
      %404 = vmatpush1.bf16.xpose.msra.mxu0 0
      %405 = vmatprep.subr.bf16.mxu0 0
      %406 = vmatpush1.bf16.xpose.msra.mxu0 0
      %407 = vmatprep.subr.bf16.mxu0 0
      %408 = vmatpush1.bf16.xpose.msra.mxu0 0
      %409 = vmatprep.mubr.bf16.mxu0 0
      %410 = vmatmul.mubr.bf16.gmra.mrb[0].mxu0 %v372
      %v411 = vpop.f32.mrb[0].mxu0
      %v412 = vadd.f32 0.0, %v411
      %v413 = vpop.f32.mrb[0].mxu0
      %v414 = vpop.f32.mrb[0].mxu0
      %v415 = vpop.f32.mrb[0].mxu0
      %416 = vdwg.mxu0
      %v417 = vmul.f32 %v412, 0.35355338
      %v418 = vadd.f32 %v417, %v298
      %v419 = vsel %vm246, %v418, -inf
      %420 = vmax.xlane.f32.xlu0 %v419
      %v421 = vpop.xlane.xlu0 %420
      %v422 = vsub.f32 %v418, %v421
      %v423 = vmul.f32 %v422, 1.442695
      %v424 = vpow.pop %v423
      %v425 = vsel %vm246, %v424, 0.0
      %426 = vadd.xlane.f32.xlu0 %v425
      %v427 = vpop.xlane.xlu0 %426
      %v428 = vrcp.pop %v427
      %v429 = vmul.f32 %v424, %v428
      %v430 = vpack.c.bf16 %v429, %v429
      %v432 = vunpack.c.l.b16 %v244
      %v433 = vpack.c.b16 %v432, %v432
      %434 = vrot.lane.b32.xlu0 %v433, 120
      %v435 = vpop.permute.xlu0 %434
      %v437 = vsel %vm246, %v430, 0
      %v440 = vsel %vm316, %v435, 0
      %442 = vmatprep.subr.bf16.mxu0 0
      %443 = vmatpush1.bf16.msra.mxu0 %v440
      %444 = vmatprep.subr.bf16.mxu0 0
      %445 = vmatpush1.bf16.msra.mxu0 0
      %446 = vmatprep.subr.bf16.mxu0 0
      %447 = vmatpush1.bf16.msra.mxu0 0
      %448 = vmatprep.subr.bf16.mxu0 0
      %449 = vmatpush1.bf16.msra.mxu0 0
      %450 = vmatprep.subr.bf16.mxu0 0
      %451 = vmatpush1.bf16.msra.mxu0 0
      %452 = vmatprep.subr.bf16.mxu0 0
      %453 = vmatpush1.bf16.msra.mxu0 0
      %454 = vmatprep.subr.bf16.mxu0 0
      %455 = vmatpush1.bf16.msra.mxu0 0
      %456 = vmatprep.subr.bf16.mxu0 0
      %457 = vmatpush1.bf16.msra.mxu0 0
      %458 = vmatprep.subr.bf16.mxu0 0
      %459 = vmatpush1.bf16.msra.mxu0 0
      %460 = vmatprep.subr.bf16.mxu0 0
      %461 = vmatpush1.bf16.msra.mxu0 0
      %462 = vmatprep.subr.bf16.mxu0 0
      %463 = vmatpush1.bf16.msra.mxu0 0
      %464 = vmatprep.subr.bf16.mxu0 0
      %465 = vmatpush1.bf16.msra.mxu0 0
      %466 = vmatprep.subr.bf16.mxu0 0
      %467 = vmatpush1.bf16.msra.mxu0 0
      %468 = vmatprep.subr.bf16.mxu0 0
      %469 = vmatpush1.bf16.msra.mxu0 0
      %470 = vmatprep.subr.bf16.mxu0 0
      %471 = vmatpush1.bf16.msra.mxu0 0
      %472 = vmatprep.subr.bf16.mxu0 0
      %473 = vmatpush1.bf16.msra.mxu0 0
      %474 = vmatprep.mubr.bf16.mxu0 0
      %475 = vmatmul.mubr.bf16.gmra.mrb[0].mxu0 %v437
      %v476 = vpop.f32.mrb[0].mxu0
      %v477 = vadd.f32 0.0, %v476
      %v478 = vpop.f32.mrb[0].mxu0
      %v479 = vpop.f32.mrb[0].mxu0
      %v480 = vpop.f32.mrb[0].mxu0
      %481 = vdwg.mxu0
      %483 = vrot.lane.b32.xlu0 %v477, 8
      %v484 = vpop.permute.xlu0 %483
      %vm486 = vcmask 130112
      %487 = vst.msk [vmem:[%s240] sm:$0xff] %vm486, %v484
      %488 = vrot.lane.b32.xlu0 %v363, 112
      %v489 = vpop.permute.xlu0 %488
      %490 = vrot.lane.b32.xlu0 %v368, 112
      %v491 = vpop.permute.xlu0 %490
      %v493 = vsel %vm246, %v489, 0
      %v496 = vsel %vm246, %v491, 0
      %498 = vmatprep.subr.bf16.mxu0 0
      %499 = vmatpush1.bf16.xpose.msra.mxu0 %v496
      %500 = vmatprep.subr.bf16.mxu0 0
      %501 = vmatpush1.bf16.xpose.msra.mxu0 0
      %502 = vmatprep.subr.bf16.mxu0 0
      %503 = vmatpush1.bf16.xpose.msra.mxu0 0
      %504 = vmatprep.subr.bf16.mxu0 0
      %505 = vmatpush1.bf16.xpose.msra.mxu0 0
      %506 = vmatprep.subr.bf16.mxu0 0
      %507 = vmatpush1.bf16.xpose.msra.mxu0 0
      %508 = vmatprep.subr.bf16.mxu0 0
      %509 = vmatpush1.bf16.xpose.msra.mxu0 0
      %510 = vmatprep.subr.bf16.mxu0 0
      %511 = vmatpush1.bf16.xpose.msra.mxu0 0
      %512 = vmatprep.subr.bf16.mxu0 0
      %513 = vmatpush1.bf16.xpose.msra.mxu0 0
      %514 = vmatprep.subr.bf16.mxu0 0
      %515 = vmatpush1.bf16.xpose.msra.mxu0 0
      %516 = vmatprep.subr.bf16.mxu0 0
      %517 = vmatpush1.bf16.xpose.msra.mxu0 0
      %518 = vmatprep.subr.bf16.mxu0 0
      %519 = vmatpush1.bf16.xpose.msra.mxu0 0
      %520 = vmatprep.subr.bf16.mxu0 0
      %521 = vmatpush1.bf16.xpose.msra.mxu0 0
      %522 = vmatprep.subr.bf16.mxu0 0
      %523 = vmatpush1.bf16.xpose.msra.mxu0 0
      %524 = vmatprep.subr.bf16.mxu0 0
      %525 = vmatpush1.bf16.xpose.msra.mxu0 0
      %526 = vmatprep.subr.bf16.mxu0 0
      %527 = vmatpush1.bf16.xpose.msra.mxu0 0
      %528 = vmatprep.subr.bf16.mxu0 0
      %529 = vmatpush1.bf16.xpose.msra.mxu0 0
      %530 = vmatprep.mubr.bf16.mxu0 0
      %531 = vmatmul.mubr.bf16.gmra.mrb[0].mxu0 %v493
      %v532 = vpop.f32.mrb[0].mxu0
      %v533 = vadd.f32 0.0, %v532
      %v534 = vpop.f32.mrb[0].mxu0
      %v535 = vpop.f32.mrb[0].mxu0
      %v536 = vpop.f32.mrb[0].mxu0
      %537 = vdwg.mxu0
      %v538 = vmul.f32 %v533, 0.35355338
      %v539 = vadd.f32 %v538, %v298
      %v540 = vsel %vm246, %v539, -inf
      %541 = vmax.xlane.f32.xlu0 %v540
      %v542 = vpop.xlane.xlu0 %541
      %v543 = vsub.f32 %v539, %v542
      %v544 = vmul.f32 %v543, 1.442695
      %v545 = vpow.pop %v544
      %v546 = vsel %vm246, %v545, 0.0
      %547 = vadd.xlane.f32.xlu0 %v546
      %v548 = vpop.xlane.xlu0 %547
      %v549 = vrcp.pop %v548
      %v550 = vmul.f32 %v545, %v549
      %v551 = vpack.c.bf16 %v550, %v550
      %552 = vrot.lane.b32.xlu0 %v433, 112
      %v553 = vpop.permute.xlu0 %552
      %v555 = vsel %vm246, %v551, 0
      %v558 = vsel %vm316, %v553, 0
      %560 = vmatprep.subr.bf16.mxu0 0
      %561 = vmatpush1.bf16.msra.mxu0 %v558
      %562 = vmatprep.subr.bf16.mxu0 0
      %563 = vmatpush1.bf16.msra.mxu0 0
      %564 = vmatprep.subr.bf16.mxu0 0
      %565 = vmatpush1.bf16.msra.mxu0 0
      %566 = vmatprep.subr.bf16.mxu0 0
      %567 = vmatpush1.bf16.msra.mxu0 0
      %568 = vmatprep.subr.bf16.mxu0 0
      %569 = vmatpush1.bf16.msra.mxu0 0
      %570 = vmatprep.subr.bf16.mxu0 0
      %571 = vmatpush1.bf16.msra.mxu0 0
      %572 = vmatprep.subr.bf16.mxu0 0
      %573 = vmatpush1.bf16.msra.mxu0 0
      %574 = vmatprep.subr.bf16.mxu0 0
      %575 = vmatpush1.bf16.msra.mxu0 0
      %576 = vmatprep.subr.bf16.mxu0 0
      %577 = vmatpush1.bf16.msra.mxu0 0
      %578 = vmatprep.subr.bf16.mxu0 0
      %579 = vmatpush1.bf16.msra.mxu0 0
      %580 = vmatprep.subr.bf16.mxu0 0
      %581 = vmatpush1.bf16.msra.mxu0 0
      %582 = vmatprep.subr.bf16.mxu0 0
      %583 = vmatpush1.bf16.msra.mxu0 0
      %584 = vmatprep.subr.bf16.mxu0 0
      %585 = vmatpush1.bf16.msra.mxu0 0
      %586 = vmatprep.subr.bf16.mxu0 0
      %587 = vmatpush1.bf16.msra.mxu0 0
      %588 = vmatprep.subr.bf16.mxu0 0
      %589 = vmatpush1.bf16.msra.mxu0 0
      %590 = vmatprep.subr.bf16.mxu0 0
      %591 = vmatpush1.bf16.msra.mxu0 0
      %592 = vmatprep.mubr.bf16.mxu0 0
      %593 = vmatmul.mubr.bf16.gmra.mrb[0].mxu0 %v555
      %v594 = vpop.f32.mrb[0].mxu0
      %v595 = vadd.f32 0.0, %v594
      %v596 = vpop.f32.mrb[0].mxu0
      %v597 = vpop.f32.mrb[0].mxu0
      %v598 = vpop.f32.mrb[0].mxu0
      %599 = vdwg.mxu0
      %601 = vrot.lane.b32.xlu0 %v595, 16
      %v602 = vpop.permute.xlu0 %601
      %vm604 = vcmask 195712
      %605 = vst.msk [vmem:[%s240] sm:$0xff] %vm604, %v602
      %606 = vrot.lane.b32.xlu0 %v363, 104
      %v607 = vpop.permute.xlu0 %606
      %608 = vrot.lane.b32.xlu0 %v368, 104
      %v609 = vpop.permute.xlu0 %608
      %v611 = vsel %vm246, %v607, 0
      %v614 = vsel %vm246, %v609, 0
      %616 = vmatprep.subr.bf16.mxu0 0
      %617 = vmatpush1.bf16.xpose.msra.mxu0 %v614
      %618 = vmatprep.subr.bf16.mxu0 0
      %619 = vmatpush1.bf16.xpose.msra.mxu0 0
      %620 = vmatprep.subr.bf16.mxu0 0
      %621 = vmatpush1.bf16.xpose.msra.mxu0 0
      %622 = vmatprep.subr.bf16.mxu0 0
      %623 = vmatpush1.bf16.xpose.msra.mxu0 0
      %624 = vmatprep.subr.bf16.mxu0 0
      %625 = vmatpush1.bf16.xpose.msra.mxu0 0
      %626 = vmatprep.subr.bf16.mxu0 0
      %627 = vmatpush1.bf16.xpose.msra.mxu0 0
      %628 = vmatprep.subr.bf16.mxu0 0
      %629 = vmatpush1.bf16.xpose.msra.mxu0 0
      %630 = vmatprep.subr.bf16.mxu0 0
      %631 = vmatpush1.bf16.xpose.msra.mxu0 0
      %632 = vmatprep.subr.bf16.mxu0 0
      %633 = vmatpush1.bf16.xpose.msra.mxu0 0
      %634 = vmatprep.subr.bf16.mxu0 0
      %635 = vmatpush1.bf16.xpose.msra.mxu0 0
      %636 = vmatprep.subr.bf16.mxu0 0
      %637 = vmatpush1.bf16.xpose.msra.mxu0 0
      %638 = vmatprep.subr.bf16.mxu0 0
      %639 = vmatpush1.bf16.xpose.msra.mxu0 0
      %640 = vmatprep.subr.bf16.mxu0 0
      %641 = vmatpush1.bf16.xpose.msra.mxu0 0
      %642 = vmatprep.subr.bf16.mxu0 0
      %643 = vmatpush1.bf16.xpose.msra.mxu0 0
      %644 = vmatprep.subr.bf16.mxu0 0
      %645 = vmatpush1.bf16.xpose.msra.mxu0 0
      %646 = vmatprep.subr.bf16.mxu0 0
      %647 = vmatpush1.bf16.xpose.msra.mxu0 0
      %648 = vmatprep.mubr.bf16.mxu0 0
      %649 = vmatmul.mubr.bf16.gmra.mrb[0].mxu0 %v611
      %v650 = vpop.f32.mrb[0].mxu0
      %v651 = vadd.f32 0.0, %v650
      %v652 = vpop.f32.mrb[0].mxu0
      %v653 = vpop.f32.mrb[0].mxu0
      %v654 = vpop.f32.mrb[0].mxu0
      %655 = vdwg.mxu0
      %v656 = vmul.f32 %v651, 0.35355338
      %v657 = vadd.f32 %v656, %v298
      %v658 = vsel %vm246, %v657, -inf
      %659 = vmax.xlane.f32.xlu0 %v658
      %v660 = vpop.xlane.xlu0 %659
      %v661 = vsub.f32 %v657, %v660
      %v662 = vmul.f32 %v661, 1.442695
      %v663 = vpow.pop %v662
      %v664 = vsel %vm246, %v663, 0.0
      %665 = vadd.xlane.f32.xlu0 %v664
      %v666 = vpop.xlane.xlu0 %665
      %v667 = vrcp.pop %v666
      %v668 = vmul.f32 %v663, %v667
      %v669 = vpack.c.bf16 %v668, %v668
      %670 = vrot.lane.b32.xlu0 %v433, 104
      %v671 = vpop.permute.xlu0 %670
      %v673 = vsel %vm246, %v669, 0
      %v676 = vsel %vm316, %v671, 0
      %678 = vmatprep.subr.bf16.mxu0 0
      %679 = vmatpush1.bf16.msra.mxu0 %v676
      %680 = vmatprep.subr.bf16.mxu0 0
      %681 = vmatpush1.bf16.msra.mxu0 0
      %682 = vmatprep.subr.bf16.mxu0 0
      %683 = vmatpush1.bf16.msra.mxu0 0
      %684 = vmatprep.subr.bf16.mxu0 0
      %685 = vmatpush1.bf16.msra.mxu0 0
      %686 = vmatprep.subr.bf16.mxu0 0
      %687 = vmatpush1.bf16.msra.mxu0 0
      %688 = vmatprep.subr.bf16.mxu0 0
      %689 = vmatpush1.bf16.msra.mxu0 0
      %690 = vmatprep.subr.bf16.mxu0 0
      %691 = vmatpush1.bf16.msra.mxu0 0
      %692 = vmatprep.subr.bf16.mxu0 0
      %693 = vmatpush1.bf16.msra.mxu0 0
      %694 = vmatprep.subr.bf16.mxu0 0
      %695 = vmatpush1.bf16.msra.mxu0 0
      %696 = vmatprep.subr.bf16.mxu0 0
      %697 = vmatpush1.bf16.msra.mxu0 0
      %698 = vmatprep.subr.bf16.mxu0 0
      %699 = vmatpush1.bf16.msra.mxu0 0
      %700 = vmatprep.subr.bf16.mxu0 0
      %701 = vmatpush1.bf16.msra.mxu0 0
      %702 = vmatprep.subr.bf16.mxu0 0
      %703 = vmatpush1.bf16.msra.mxu0 0
      %704 = vmatprep.subr.bf16.mxu0 0
      %705 = vmatpush1.bf16.msra.mxu0 0
      %706 = vmatprep.subr.bf16.mxu0 0
      %707 = vmatpush1.bf16.msra.mxu0 0
      %708 = vmatprep.subr.bf16.mxu0 0
      %709 = vmatpush1.bf16.msra.mxu0 0
      %710 = vmatprep.mubr.bf16.mxu0 0
      %711 = vmatmul.mubr.bf16.gmra.mrb[0].mxu0 %v673
      %v712 = vpop.f32.mrb[0].mxu0
      %v713 = vadd.f32 0.0, %v712
      %v714 = vpop.f32.mrb[0].mxu0
      %v715 = vpop.f32.mrb[0].mxu0
      %v716 = vpop.f32.mrb[0].mxu0
      %717 = vdwg.mxu0
      %719 = vrot.lane.b32.xlu0 %v713, 24
      %v720 = vpop.permute.xlu0 %719
      %vm722 = vcmask 261312
      %723 = vst.msk [vmem:[%s240] sm:$0xff] %vm722, %v720
      %p724 = scmp.lt.s32.totalorder %s15, 1
      %s725 = scalar_select %p724, %s15, 1
      %s726 = smul.addr %s725, 8
      %s727 = scalar_lea.vmem %s4, %s726
      // Predicated region
      $region37: #{transformer_forward.40} parent=35 // pred_check
        %p728 = pneg %p137
      $region38: #{transformer_forward.40} parent=35 // pred_check_branch
        %730 = sbr.rel (%p728) target = $region40
      $region39: #{transformer_forward.40} parent=35 // pred_region
        _
      $region40: #{transformer_forward.40} parent=35 // pred_fallthru
        _
    $region36: #{transformer_forward.40} parent=5 // pred_fallthru
      _
    %p731 = scmp.le.s32.totalorder 2, %s10
    // Predicated region
    $region41: #{transformer_forward.40} parent=5 // pred_check
      %p732 = pneg %p731
    $region42: #{transformer_forward.40} parent=5 // pred_check_branch
      %734 = sbr.rel (%p732) target = $region44
    $region43: #{transformer_forward.40} parent=5 // pred_region
      %s735 = ssub.s32 %s10, 2
      // Predicated region
      $region45: #{transformer_forward.40} parent=43 // pred_check
        %p736 = pneg %p143
      $region46: #{transformer_forward.40} parent=43 // pred_check_branch
        %738 = sbr.rel (%p736) target = $region48
      $region47: #{transformer_forward.40} parent=43 // pred_region
        %p739 = scmp.lt.s32.totalorder %s16, 1
        %s740 = scalar_select %p739, %s16, 1
        %s741 = smul.addr %s740, 8
        %s742 = scalar_lea.vmem %s4, %s741
      $region48: #{transformer_forward.40} parent=43 // pred_fallthru
        _
    $region44: #{transformer_forward.40} parent=5 // pred_fallthru
      _
  $region6: #{transformer_forward.40} parent=0 // loop_footer
    %s14 = sadd.s32 1, %s10
  $region7: #{transformer_forward.40} parent=0 // loop_footer_branch
    %9 = sbr.rel target = $region3
  $region8: #{transformer_forward.40} parent=0 // loop_exit
    _

// kernel: transformer_forward.43
$region0: #{transformer_forward.43}
  #allocation0 [shape = 'u32[]', space=smem, size = 0x4, offset = 0x4, fixed_abs, tag = 'smem constant byte address 0x4 - core index']
  #allocation1 [shape = 'u32[144,128]{1,0:T(1,128)}', space=vmem, size = 0x12000, scoped, tag = 'internal scratch']
  #allocation2 [shape = 'f32[16,64]{1,0:T(8,128)}', space=vmem, size = 0x2000, scoped, tag = 'scratch operand']
  %s0 = inlined_call_operand.vmem [shape: bf16[16,32], index: 0, kind: input, shape index: {}]
  %s1 = inlined_call_operand.vmem [shape: bf16[32,64], index: 1, kind: input, shape index: {}]
  %s2 = inlined_call_operand.vmem [shape: f32[1,64], index: 2, kind: input, shape index: {}]
  %s3 = inlined_call_operand.vmem [shape: f32[16,64], index: 3, kind: output, shape index: {}]
  %s4 = sld [smem:[#allocation0]]
  $region30: #{transformer_forward.43} parent=0
    _
  %s6 = ssub.s32 1, %s4
  %s7 = scalar_select 0, %s6, %s4
  // Predicated region
  $region2: #{transformer_forward.43} parent=0 // pred_check
    _
  $region3: #{transformer_forward.43} parent=0 // pred_check_branch
    %9 = sbr.rel (0) target = $region5
  $region4: #{transformer_forward.43} parent=0 // pred_region
    _
  $region5: #{transformer_forward.43} parent=0 // pred_fallthru
    _
  // Predicated region
  $region6: #{transformer_forward.43} parent=0 // pred_check
    _
  $region7: #{transformer_forward.43} parent=0 // pred_check_branch
    %11 = sbr.rel (0) target = $region9
  $region8: #{transformer_forward.43} parent=0 // pred_region
    _
  $region9: #{transformer_forward.43} parent=0 // pred_fallthru
    _
  // Predicated region
  $region10: #{transformer_forward.43} parent=0 // pred_check
    _
  $region11: #{transformer_forward.43} parent=0 // pred_check_branch
    %13 = sbr.rel (0) target = $region13
  $region12: #{transformer_forward.43} parent=0 // pred_region
    _
  $region13: #{transformer_forward.43} parent=0 // pred_fallthru
    _
  %p15 = scmp.eq.s32.totalorder 0, 0
  // Predicated region
  $region14: #{transformer_forward.43} parent=0 // pred_check
    %p16 = pneg %p15
  $region15: #{transformer_forward.43} parent=0 // pred_check_branch
    %18 = sbr.rel (%p16) target = $region17
  $region16: #{transformer_forward.43} parent=0 // pred_region
    %vm19 = vcmask 523264
    %20 = vst.msk [vmem:[#allocation2] sm:$0xff] %vm19, 0.0
    %21 = vst.msk [vmem:[#allocation2 + $0x8] sm:$0xff] %vm19, 0.0
  $region17: #{transformer_forward.43} parent=0 // pred_fallthru
    _
  %v22 = vld [vmem:[#allocation2] sm:$0xff]
  %v23 = vld [vmem:[#allocation2 + $0x8] sm:$0xff]
  %v24 = vld [vmem:[%s0] sm:$0xf]
  %v25 = vld [vmem:[%s0 + $0x4] sm:$0xf]
  %v26 = vld [vmem:[%s1] sm:$0xf]
  %v27 = vld [vmem:[%s1 + $0x4] sm:$0xf]
  %v28 = vld [vmem:[%s1 + $0x8] sm:$0xf]
  %v29 = vld [vmem:[%s1 + $0xc] sm:$0xf]
  %v32 = vunpack.c.l.b16 %v24
  %v33 = vunpack.c.l.b16 %v25
  %v34 = vpack.c.b16 %v33, %v32
  %v39 = vunpack.c.l.b16 %v26
  %v40 = vunpack.c.l.b16 %v27
  %v41 = vunpack.c.l.b16 %v28
  %v42 = vunpack.c.l.b16 %v29
  %v43 = vpack.c.b16 %v40, %v39
  %v44 = vpack.c.b16 %v42, %v41
  %vm47 = vcmask 261120
  %v49 = vsel %vm47, %v34, 0
  %51 = vmatprep.subr.bf16.mxu0 0
  %52 = vmatpush1.bf16.msra.mxu0 %v43
  %53 = vmatprep.subr.bf16.mxu0 0
  %54 = vmatpush1.bf16.msra.mxu0 %v44
  %55 = vmatprep.subr.bf16.mxu0 0
  %56 = vmatpush1.bf16.msra.mxu0 0
  %57 = vmatprep.subr.bf16.mxu0 0
  %58 = vmatpush1.bf16.msra.mxu0 0
  %59 = vmatprep.subr.bf16.mxu0 0
  %60 = vmatpush1.bf16.msra.mxu0 0
  %61 = vmatprep.subr.bf16.mxu0 0
  %62 = vmatpush1.bf16.msra.mxu0 0
  %63 = vmatprep.subr.bf16.mxu0 0
  %64 = vmatpush1.bf16.msra.mxu0 0
  %65 = vmatprep.subr.bf16.mxu0 0
  %66 = vmatpush1.bf16.msra.mxu0 0
  %67 = vmatprep.subr.bf16.mxu0 0
  %68 = vmatpush1.bf16.msra.mxu0 0
  %69 = vmatprep.subr.bf16.mxu0 0
  %70 = vmatpush1.bf16.msra.mxu0 0
  %71 = vmatprep.subr.bf16.mxu0 0
  %72 = vmatpush1.bf16.msra.mxu0 0
  %73 = vmatprep.subr.bf16.mxu0 0
  %74 = vmatpush1.bf16.msra.mxu0 0
  %75 = vmatprep.subr.bf16.mxu0 0
  %76 = vmatpush1.bf16.msra.mxu0 0
  %77 = vmatprep.subr.bf16.mxu0 0
  %78 = vmatpush1.bf16.msra.mxu0 0
  %79 = vmatprep.subr.bf16.mxu0 0
  %80 = vmatpush1.bf16.msra.mxu0 0
  %81 = vmatprep.subr.bf16.mxu0 0
  %82 = vmatpush1.bf16.msra.mxu0 0
  %83 = vmatprep.mubr.bf16.mxu0 0
  %84 = vmatmul.mubr.bf16.gmra.mrb[0].mxu0 %v49
  %v85 = vpop.f32.mrb[0].mxu0
  %v86 = vadd.f32 0.0, %v85
  %v87 = vpop.f32.mrb[0].mxu0
  %v88 = vpop.f32.mrb[0].mxu0
  %v89 = vadd.f32 0.0, %v88
  %v90 = vpop.f32.mrb[0].mxu0
  %91 = vdwg.mxu0
  %v92 = vadd.f32 %v22, %v86
  %v93 = vadd.f32 %v23, %v89
  %vm94 = vcmask 523264
  %95 = vst.msk [vmem:[#allocation2] sm:$0xff] %vm94, %v92
  %96 = vst.msk [vmem:[#allocation2 + $0x8] sm:$0xff] %vm94, %v93
  // Predicated region
  $region18: #{transformer_forward.43} parent=0 // pred_check
    %p97 = pneg %p15
  $region19: #{transformer_forward.43} parent=0 // pred_check_branch
    %99 = sbr.rel (%p97) target = $region21
  $region20: #{transformer_forward.43} parent=0 // pred_region
    %v100 = vld [vmem:[#allocation2] sm:$0xff]
    %v101 = vld [vmem:[#allocation2 + $0x8] sm:$0xff]
    %v102 = vld [vmem:[%s2] sm:$0x1]
    %v104 = vlaneseq
    %v105 = vshrl.u32 %v104, 7
    %v106 = vsub.s32 0, %v105
    %v107 = vrot.slane %v102, %v106
    %v109 = vadd.f32 %v100, %v107
    %v110 = vadd.f32 %v101, %v107
    %v111 = vmax.f32 %v109, 0.0
    %v112 = vmax.f32 %v110, 0.0
    %113 = vst.msk [vmem:[%s3] sm:$0xff] %vm94, %v111
    %114 = vst.msk [vmem:[%s3 + $0x8] sm:$0xff] %vm94, %v112
  $region21: #{transformer_forward.43} parent=0 // pred_fallthru
    _
  // Predicated region
  $region22: #{transformer_forward.43} parent=0 // pred_check
    _
  $region23: #{transformer_forward.43} parent=0 // pred_check_branch
    %116 = sbr.rel (0) target = $region25
  $region24: #{transformer_forward.43} parent=0 // pred_region
    _
  $region25: #{transformer_forward.43} parent=0 // pred_fallthru
    _
  // Predicated region
  $region26: #{transformer_forward.43} parent=0 // pred_check
    _
  $region27: #{transformer_forward.43} parent=0 // pred_check_branch
    %118 = sbr.rel (0) target = $region29
  $region28: #{transformer_forward.43} parent=0 // pred_region
    _
  $region29: #{transformer_forward.43} parent=0 // pred_fallthru
    _

// kernel: transformer_forward.58
$region0: #{transformer_forward.58}
  #allocation0 [shape = 'u32[]', space=smem, size = 0x4, offset = 0x4, fixed_abs, tag = 'smem constant byte address 0x4 - core index']
  #allocation1 [shape = 'u32[144,128]{1,0:T(1,128)}', space=vmem, size = 0x12000, scoped, tag = 'internal scratch']
  #allocation2 [shape = 'f32[16,64]{1,0:T(8,128)}', space=vmem, size = 0x2000, scoped, tag = 'scratch operand']
  %s0 = inlined_call_operand.vmem [shape: bf16[16,32], index: 0, kind: input, shape index: {}]
  %s1 = inlined_call_operand.vmem [shape: bf16[32,64], index: 1, kind: input, shape index: {}]
  %s2 = inlined_call_operand.vmem [shape: f32[1,64], index: 2, kind: input, shape index: {}]
  %s3 = inlined_call_operand.vmem [shape: f32[16,64], index: 3, kind: output, shape index: {}]
  %s4 = sld [smem:[#allocation0]]
  $region30: #{transformer_forward.58} parent=0
    _
  %s6 = ssub.s32 1, %s4
  %s7 = scalar_select 0, %s6, %s4
  // Predicated region
  $region2: #{transformer_forward.58} parent=0 // pred_check
    _
  $region3: #{transformer_forward.58} parent=0 // pred_check_branch
    %9 = sbr.rel (0) target = $region5
  $region4: #{transformer_forward.58} parent=0 // pred_region
    _
  $region5: #{transformer_forward.58} parent=0 // pred_fallthru
    _
  // Predicated region
  $region6: #{transformer_forward.58} parent=0 // pred_check
    _
  $region7: #{transformer_forward.58} parent=0 // pred_check_branch
    %11 = sbr.rel (0) target = $region9
  $region8: #{transformer_forward.58} parent=0 // pred_region
    _
  $region9: #{transformer_forward.58} parent=0 // pred_fallthru
    _
  // Predicated region
  $region10: #{transformer_forward.58} parent=0 // pred_check
    _
  $region11: #{transformer_forward.58} parent=0 // pred_check_branch
    %13 = sbr.rel (0) target = $region13
  $region12: #{transformer_forward.58} parent=0 // pred_region
    _
  $region13: #{transformer_forward.58} parent=0 // pred_fallthru
    _
  %p15 = scmp.eq.s32.totalorder 0, 0
  // Predicated region
  $region14: #{transformer_forward.58} parent=0 // pred_check
    %p16 = pneg %p15
  $region15: #{transformer_forward.58} parent=0 // pred_check_branch
    %18 = sbr.rel (%p16) target = $region17
  $region16: #{transformer_forward.58} parent=0 // pred_region
    %vm19 = vcmask 523264
    %20 = vst.msk [vmem:[#allocation2] sm:$0xff] %vm19, 0.0
    %21 = vst.msk [vmem:[#allocation2 + $0x8] sm:$0xff] %vm19, 0.0
  $region17: #{transformer_forward.58} parent=0 // pred_fallthru
    _
  %v22 = vld [vmem:[#allocation2] sm:$0xff]
  %v23 = vld [vmem:[#allocation2 + $0x8] sm:$0xff]
  %v24 = vld [vmem:[%s0] sm:$0xf]
  %v25 = vld [vmem:[%s0 + $0x4] sm:$0xf]
  %v26 = vld [vmem:[%s1] sm:$0xf]
  %v27 = vld [vmem:[%s1 + $0x4] sm:$0xf]
  %v28 = vld [vmem:[%s1 + $0x8] sm:$0xf]
  %v29 = vld [vmem:[%s1 + $0xc] sm:$0xf]
  %v32 = vunpack.c.l.b16 %v24
  %v33 = vunpack.c.l.b16 %v25
  %v34 = vpack.c.b16 %v33, %v32
  %v39 = vunpack.c.l.b16 %v26
  %v40 = vunpack.c.l.b16 %v27
  %v41 = vunpack.c.l.b16 %v28
  %v42 = vunpack.c.l.b16 %v29
  %v43 = vpack.c.b16 %v40, %v39
  %v44 = vpack.c.b16 %v42, %v41
  %vm47 = vcmask 261120
  %v49 = vsel %vm47, %v34, 0
  %51 = vmatprep.subr.bf16.mxu0 0
  %52 = vmatpush1.bf16.msra.mxu0 %v43
  %53 = vmatprep.subr.bf16.mxu0 0
  %54 = vmatpush1.bf16.msra.mxu0 %v44
  %55 = vmatprep.subr.bf16.mxu0 0
  %56 = vmatpush1.bf16.msra.mxu0 0
  %57 = vmatprep.subr.bf16.mxu0 0
  %58 = vmatpush1.bf16.msra.mxu0 0
  %59 = vmatprep.subr.bf16.mxu0 0
  %60 = vmatpush1.bf16.msra.mxu0 0
  %61 = vmatprep.subr.bf16.mxu0 0
  %62 = vmatpush1.bf16.msra.mxu0 0
  %63 = vmatprep.subr.bf16.mxu0 0
  %64 = vmatpush1.bf16.msra.mxu0 0
  %65 = vmatprep.subr.bf16.mxu0 0
  %66 = vmatpush1.bf16.msra.mxu0 0
  %67 = vmatprep.subr.bf16.mxu0 0
  %68 = vmatpush1.bf16.msra.mxu0 0
  %69 = vmatprep.subr.bf16.mxu0 0
  %70 = vmatpush1.bf16.msra.mxu0 0
  %71 = vmatprep.subr.bf16.mxu0 0
  %72 = vmatpush1.bf16.msra.mxu0 0
  %73 = vmatprep.subr.bf16.mxu0 0
  %74 = vmatpush1.bf16.msra.mxu0 0
  %75 = vmatprep.subr.bf16.mxu0 0
  %76 = vmatpush1.bf16.msra.mxu0 0
  %77 = vmatprep.subr.bf16.mxu0 0
  %78 = vmatpush1.bf16.msra.mxu0 0
  %79 = vmatprep.subr.bf16.mxu0 0
  %80 = vmatpush1.bf16.msra.mxu0 0
  %81 = vmatprep.subr.bf16.mxu0 0
  %82 = vmatpush1.bf16.msra.mxu0 0
  %83 = vmatprep.mubr.bf16.mxu0 0
  %84 = vmatmul.mubr.bf16.gmra.mrb[0].mxu0 %v49
  %v85 = vpop.f32.mrb[0].mxu0
  %v86 = vadd.f32 0.0, %v85
  %v87 = vpop.f32.mrb[0].mxu0
  %v88 = vpop.f32.mrb[0].mxu0
  %v89 = vadd.f32 0.0, %v88
  %v90 = vpop.f32.mrb[0].mxu0
  %91 = vdwg.mxu0
  %v92 = vadd.f32 %v22, %v86
  %v93 = vadd.f32 %v23, %v89
  %vm94 = vcmask 523264
  %95 = vst.msk [vmem:[#allocation2] sm:$0xff] %vm94, %v92
  %96 = vst.msk [vmem:[#allocation2 + $0x8] sm:$0xff] %vm94, %v93
  // Predicated region
  $region18: #{transformer_forward.58} parent=0 // pred_check
    %p97 = pneg %p15
  $region19: #{transformer_forward.58} parent=0 // pred_check_branch
    %99 = sbr.rel (%p97) target = $region21
  $region20: #{transformer_forward.58} parent=0 // pred_region
    %v100 = vld [vmem:[#allocation2] sm:$0xff]
    %v101 = vld [vmem:[#allocation2 + $0x8] sm:$0xff]
    %v102 = vld [vmem:[%s2] sm:$0x1]
    %v104 = vlaneseq
    %v105 = vshrl.u32 %v104, 7
    %v106 = vsub.s32 0, %v105
    %v107 = vrot.slane %v102, %v106
    %v109 = vadd.f32 %v100, %v107
    %v110 = vadd.f32 %v101, %v107
    %111 = vst.msk [vmem:[%s3] sm:$0xff] %vm94, %v109
    %112 = vst.msk [vmem:[%s3 + $0x8] sm:$0xff] %vm94, %v110
  $region21: #{transformer_forward.58} parent=0 // pred_fallthru
    _
  // Predicated region
  $region22: #{transformer_forward.58} parent=0 // pred_check
    _
  $region23: #{transformer_forward.58} parent=0 // pred_check_branch
    %114 = sbr.rel (0) target = $region25
  $region24: #{transformer_forward.58} parent=0 // pred_region
    _
  $region25: #{transformer_forward.58} parent=0 // pred_fallthru
    _
  // Predicated region
  $region26: #{transformer_forward.58} parent=0 // pred_check
    _
  $region27: #{transformer_forward.58} parent=0 // pred_check_branch
    %116 = sbr.rel (0) target = $region29
  $region28: #{transformer_forward.58} parent=0 // pred_region
    _
  $region29: #{transformer_forward.58} parent=0 // pred_fallthru
    _

// kernel: transformer_forward.44
$region0: #{transformer_forward.44}
  #allocation0 [shape = 'u32[]', space=smem, size = 0x4, offset = 0x4, fixed_abs, tag = 'smem constant byte address 0x4 - core index']
  #allocation1 [shape = 'u32[144,128]{1,0:T(1,128)}', space=vmem, size = 0x12000, scoped, tag = 'internal scratch']
  #allocation2 [shape = 'f32[16,32]{1,0:T(8,128)}', space=vmem, size = 0x2000, scoped, tag = 'scratch operand']
  %s0 = inlined_call_operand.vmem [shape: bf16[16,64], index: 0, kind: input, shape index: {}]
  %s1 = inlined_call_operand.vmem [shape: bf16[64,32], index: 1, kind: input, shape index: {}]
  %s2 = inlined_call_operand.vmem [shape: f32[1,32], index: 2, kind: input, shape index: {}]
  %s3 = inlined_call_operand.vmem [shape: f32[16,32], index: 3, kind: output, shape index: {}]
  %s4 = sld [smem:[#allocation0]]
  $region30: #{transformer_forward.44} parent=0
    _
  %s6 = ssub.s32 1, %s4
  %s7 = scalar_select 0, %s6, %s4
  // Predicated region
  $region2: #{transformer_forward.44} parent=0 // pred_check
    _
  $region3: #{transformer_forward.44} parent=0 // pred_check_branch
    %9 = sbr.rel (0) target = $region5
  $region4: #{transformer_forward.44} parent=0 // pred_region
    _
  $region5: #{transformer_forward.44} parent=0 // pred_fallthru
    _
  // Predicated region
  $region6: #{transformer_forward.44} parent=0 // pred_check
    _
  $region7: #{transformer_forward.44} parent=0 // pred_check_branch
    %11 = sbr.rel (0) target = $region9
  $region8: #{transformer_forward.44} parent=0 // pred_region
    _
  $region9: #{transformer_forward.44} parent=0 // pred_fallthru
    _
  // Predicated region
  $region10: #{transformer_forward.44} parent=0 // pred_check
    _
  $region11: #{transformer_forward.44} parent=0 // pred_check_branch
    %13 = sbr.rel (0) target = $region13
  $region12: #{transformer_forward.44} parent=0 // pred_region
    _
  $region13: #{transformer_forward.44} parent=0 // pred_fallthru
    _
  %p15 = scmp.eq.s32.totalorder 0, 0
  // Predicated region
  $region14: #{transformer_forward.44} parent=0 // pred_check
    %p16 = pneg %p15
  $region15: #{transformer_forward.44} parent=0 // pred_check_branch
    %18 = sbr.rel (%p16) target = $region17
  $region16: #{transformer_forward.44} parent=0 // pred_region
    %vm19 = vcmask 261120
    %20 = vst.msk [vmem:[#allocation2] sm:$0xff] %vm19, 0.0
    %21 = vst.msk [vmem:[#allocation2 + $0x8] sm:$0xff] %vm19, 0.0
  $region17: #{transformer_forward.44} parent=0 // pred_fallthru
    _
  %v22 = vld [vmem:[#allocation2] sm:$0xff]
  %v23 = vld [vmem:[#allocation2 + $0x8] sm:$0xff]
  %v24 = vld [vmem:[%s0] sm:$0xf]
  %v25 = vld [vmem:[%s0 + $0x4] sm:$0xf]
  %v26 = vld [vmem:[%s1] sm:$0xf]
  %v27 = vld [vmem:[%s1 + $0x4] sm:$0xf]
  %v28 = vld [vmem:[%s1 + $0x8] sm:$0xf]
  %v29 = vld [vmem:[%s1 + $0xc] sm:$0xf]
  %v30 = vld [vmem:[%s1 + $0x10] sm:$0xf]
  %v31 = vld [vmem:[%s1 + $0x14] sm:$0xf]
  %v32 = vld [vmem:[%s1 + $0x18] sm:$0xf]
  %v33 = vld [vmem:[%s1 + $0x1c] sm:$0xf]
  %v36 = vunpack.c.l.b16 %v24
  %v37 = vunpack.c.l.b16 %v25
  %v38 = vpack.c.b16 %v37, %v36
  %v47 = vunpack.c.l.b16 %v26
  %v48 = vunpack.c.l.b16 %v27
  %v49 = vunpack.c.l.b16 %v28
  %v50 = vunpack.c.l.b16 %v29
  %v51 = vunpack.c.l.b16 %v30
  %v52 = vunpack.c.l.b16 %v31
  %v53 = vunpack.c.l.b16 %v32
  %v54 = vunpack.c.l.b16 %v33
  %v55 = vpack.c.b16 %v48, %v47
  %v56 = vpack.c.b16 %v50, %v49
  %v57 = vpack.c.b16 %v52, %v51
  %v58 = vpack.c.b16 %v54, %v53
  %vm63 = vcmask 523264
  %v65 = vsel %vm63, %v38, 0
  %67 = vmatprep.subr.bf16.mxu0 0
  %68 = vmatpush1.bf16.msra.mxu0 %v55
  %69 = vmatprep.subr.bf16.mxu0 0
  %70 = vmatpush1.bf16.msra.mxu0 %v56
  %71 = vmatprep.subr.bf16.mxu0 0
  %72 = vmatpush1.bf16.msra.mxu0 %v57
  %73 = vmatprep.subr.bf16.mxu0 0
  %74 = vmatpush1.bf16.msra.mxu0 %v58
  %75 = vmatprep.subr.bf16.mxu0 0
  %76 = vmatpush1.bf16.msra.mxu0 0
  %77 = vmatprep.subr.bf16.mxu0 0
  %78 = vmatpush1.bf16.msra.mxu0 0
  %79 = vmatprep.subr.bf16.mxu0 0
  %80 = vmatpush1.bf16.msra.mxu0 0
  %81 = vmatprep.subr.bf16.mxu0 0
  %82 = vmatpush1.bf16.msra.mxu0 0
  %83 = vmatprep.subr.bf16.mxu0 0
  %84 = vmatpush1.bf16.msra.mxu0 0
  %85 = vmatprep.subr.bf16.mxu0 0
  %86 = vmatpush1.bf16.msra.mxu0 0
  %87 = vmatprep.subr.bf16.mxu0 0
  %88 = vmatpush1.bf16.msra.mxu0 0
  %89 = vmatprep.subr.bf16.mxu0 0
  %90 = vmatpush1.bf16.msra.mxu0 0
  %91 = vmatprep.subr.bf16.mxu0 0
  %92 = vmatpush1.bf16.msra.mxu0 0
  %93 = vmatprep.subr.bf16.mxu0 0
  %94 = vmatpush1.bf16.msra.mxu0 0
  %95 = vmatprep.subr.bf16.mxu0 0
  %96 = vmatpush1.bf16.msra.mxu0 0
  %97 = vmatprep.subr.bf16.mxu0 0
  %98 = vmatpush1.bf16.msra.mxu0 0
  %99 = vmatprep.mubr.bf16.mxu0 0
  %100 = vmatmul.mubr.bf16.gmra.mrb[0].mxu0 %v65
  %v101 = vpop.f32.mrb[0].mxu0
  %v102 = vadd.f32 0.0, %v101
  %v103 = vpop.f32.mrb[0].mxu0
  %v104 = vpop.f32.mrb[0].mxu0
  %v105 = vadd.f32 0.0, %v104
  %v106 = vpop.f32.mrb[0].mxu0
  %107 = vdwg.mxu0
  %v108 = vadd.f32 %v22, %v102
  %v109 = vadd.f32 %v23, %v105
  %vm110 = vcmask 261120
  %111 = vst.msk [vmem:[#allocation2] sm:$0xff] %vm110, %v108
  %112 = vst.msk [vmem:[#allocation2 + $0x8] sm:$0xff] %vm110, %v109
  // Predicated region
  $region18: #{transformer_forward.44} parent=0 // pred_check
    %p113 = pneg %p15
  $region19: #{transformer_forward.44} parent=0 // pred_check_branch
    %115 = sbr.rel (%p113) target = $region21
  $region20: #{transformer_forward.44} parent=0 // pred_region
    %v116 = vld [vmem:[#allocation2] sm:$0xff]
    %v117 = vld [vmem:[#allocation2 + $0x8] sm:$0xff]
    %v118 = vld [vmem:[%s2] sm:$0x1]
    %v120 = vlaneseq
    %v121 = vshrl.u32 %v120, 7
    %v122 = vsub.s32 0, %v121
    %v123 = vrot.slane %v118, %v122
    %v125 = vadd.f32 %v116, %v123
    %v126 = vadd.f32 %v117, %v123
    %127 = vst.msk [vmem:[%s3] sm:$0xff] %vm110, %v125
    %128 = vst.msk [vmem:[%s3 + $0x8] sm:$0xff] %vm110, %v126
  $region21: #{transformer_forward.44} parent=0 // pred_fallthru
    _
  // Predicated region
  $region22: #{transformer_forward.44} parent=0 // pred_check
    _
  $region23: #{transformer_forward.44} parent=0 // pred_check_branch
    %130 = sbr.rel (0) target = $region25
  $region24: #{transformer_forward.44} parent=0 // pred_region
    _
  $region25: #{transformer_forward.44} parent=0 // pred_fallthru
    _
  // Predicated region
  $region26: #{transformer_forward.44} parent=0 // pred_check
    _
  $region27: #{transformer_forward.44} parent=0 // pred_check_branch
    %132 = sbr.rel (0) target = $region29
  $region28: #{transformer_forward.44} parent=0 // pred_region
    _
  $region29: #{transformer_forward.44} parent=0 // pred_fallthru
    _

// kernel: transformer_forward.77
$region0: #{transformer_forward.77}
  #allocation0 [shape = 'u32[]', space=smem, size = 0x4, offset = 0x4, fixed_abs, tag = 'smem constant byte address 0x4 - core index']
  #allocation1 [shape = 'u32[144,128]{1,0:T(1,128)}', space=vmem, size = 0x12000, scoped, tag = 'internal scratch']
  #allocation2 [shape = 'f32[16,100]{1,0:T(8,128)}', space=vmem, size = 0x2000, scoped, tag = 'scratch operand']
  %s0 = inlined_call_operand.vmem [shape: bf16[16,32], index: 0, kind: input, shape index: {}]
  %s1 = inlined_call_operand.vmem [shape: bf16[32,100], index: 1, kind: input, shape index: {}]
  %s2 = inlined_call_operand.vmem [shape: f32[1,100], index: 2, kind: input, shape index: {}]
  %s3 = inlined_call_operand.hbm [shape: f32[16,100], index: 3, kind: output, shape index: {}]
  %s4 = sld [smem:[#allocation0]]
  $region30: #{transformer_forward.77} parent=0
    _
  %s6 = ssub.s32 1, %s4
  %s7 = scalar_select 0, %s6, %s4
  $region1: #{transformer_forward.77} parent=0
    #allocation3 [shape = 'u8[8192]{0}', space=vmem, size = 0x2000, scoped, tag = 'output window, operand 0, single buffered']
    #allocation4 [shape = 's32[1]{0}', space=sflag, size = 0x4, scoped, tag = 'scoped memory for transformer_forward.77']
    %8 = vsyncpa [#allocation4], 0
    // Predicated region
    $region2: #{transformer_forward.77} parent=1 // pred_check
      _
    $region3: #{transformer_forward.77} parent=1 // pred_check_branch
      %10 = sbr.rel (0) target = $region5
    $region4: #{transformer_forward.77} parent=1 // pred_region
      _
    $region5: #{transformer_forward.77} parent=1 // pred_fallthru
      _
    // Predicated region
    $region6: #{transformer_forward.77} parent=1 // pred_check
      _
    $region7: #{transformer_forward.77} parent=1 // pred_check_branch
      %12 = sbr.rel (0) target = $region9
    $region8: #{transformer_forward.77} parent=1 // pred_region
      _
    $region9: #{transformer_forward.77} parent=1 // pred_fallthru
      _
    // Predicated region
    $region10: #{transformer_forward.77} parent=1 // pred_check
      _
    $region11: #{transformer_forward.77} parent=1 // pred_check_branch
      %14 = sbr.rel (0) target = $region13
    $region12: #{transformer_forward.77} parent=1 // pred_region
      _
    $region13: #{transformer_forward.77} parent=1 // pred_fallthru
      _
    %p16 = scmp.eq.s32.totalorder 0, 0
    // Predicated region
    $region14: #{transformer_forward.77} parent=1 // pred_check
      %p17 = pneg %p16
    $region15: #{transformer_forward.77} parent=1 // pred_check_branch
      %19 = sbr.rel (%p17) target = $region17
    $region16: #{transformer_forward.77} parent=1 // pred_region
      %vm20 = vcmask 818176
      %21 = vst.msk [vmem:[#allocation2] sm:$0xff] %vm20, 0.0
      %22 = vst.msk [vmem:[#allocation2 + $0x8] sm:$0xff] %vm20, 0.0
    $region17: #{transformer_forward.77} parent=1 // pred_fallthru
      _
    %v23 = vld [vmem:[#allocation2] sm:$0xff]
    %v24 = vld [vmem:[#allocation2 + $0x8] sm:$0xff]
    %v25 = vld [vmem:[%s0] sm:$0xf]
    %v26 = vld [vmem:[%s0 + $0x4] sm:$0xf]
    %v27 = vld [vmem:[%s1] sm:$0xf]
    %v28 = vld [vmem:[%s1 + $0x4] sm:$0xf]
    %v29 = vld [vmem:[%s1 + $0x8] sm:$0xf]
    %v30 = vld [vmem:[%s1 + $0xc] sm:$0xf]
    %v33 = vunpack.c.l.b16 %v25
    %v34 = vunpack.c.l.b16 %v26
    %v35 = vpack.c.b16 %v34, %v33
    %v40 = vunpack.c.l.b16 %v27
    %v41 = vunpack.c.l.b16 %v28
    %v42 = vunpack.c.l.b16 %v29
    %v43 = vunpack.c.l.b16 %v30
    %v44 = vpack.c.b16 %v41, %v40
    %v45 = vpack.c.b16 %v43, %v42
    %vm48 = vcmask 261120
    %v50 = vsel %vm48, %v35, 0
    %52 = vmatprep.subr.bf16.mxu0 0
    %53 = vmatpush1.bf16.msra.mxu0 %v44
    %54 = vmatprep.subr.bf16.mxu0 0
    %55 = vmatpush1.bf16.msra.mxu0 %v45
    %56 = vmatprep.subr.bf16.mxu0 0
    %57 = vmatpush1.bf16.msra.mxu0 0
    %58 = vmatprep.subr.bf16.mxu0 0
    %59 = vmatpush1.bf16.msra.mxu0 0
    %60 = vmatprep.subr.bf16.mxu0 0
    %61 = vmatpush1.bf16.msra.mxu0 0
    %62 = vmatprep.subr.bf16.mxu0 0
    %63 = vmatpush1.bf16.msra.mxu0 0
    %64 = vmatprep.subr.bf16.mxu0 0
    %65 = vmatpush1.bf16.msra.mxu0 0
    %66 = vmatprep.subr.bf16.mxu0 0
    %67 = vmatpush1.bf16.msra.mxu0 0
    %68 = vmatprep.subr.bf16.mxu0 0
    %69 = vmatpush1.bf16.msra.mxu0 0
    %70 = vmatprep.subr.bf16.mxu0 0
    %71 = vmatpush1.bf16.msra.mxu0 0
    %72 = vmatprep.subr.bf16.mxu0 0
    %73 = vmatpush1.bf16.msra.mxu0 0
    %74 = vmatprep.subr.bf16.mxu0 0
    %75 = vmatpush1.bf16.msra.mxu0 0
    %76 = vmatprep.subr.bf16.mxu0 0
    %77 = vmatpush1.bf16.msra.mxu0 0
    %78 = vmatprep.subr.bf16.mxu0 0
    %79 = vmatpush1.bf16.msra.mxu0 0
    %80 = vmatprep.subr.bf16.mxu0 0
    %81 = vmatpush1.bf16.msra.mxu0 0
    %82 = vmatprep.subr.bf16.mxu0 0
    %83 = vmatpush1.bf16.msra.mxu0 0
    %84 = vmatprep.mubr.bf16.mxu0 0
    %85 = vmatmul.mubr.bf16.gmra.mrb[0].mxu0 %v50
    %v86 = vpop.f32.mrb[0].mxu0
    %v87 = vadd.f32 0.0, %v86
    %v88 = vpop.f32.mrb[0].mxu0
    %v89 = vpop.f32.mrb[0].mxu0
    %v90 = vadd.f32 0.0, %v89
    %v91 = vpop.f32.mrb[0].mxu0
    %92 = vdwg.mxu0
    %v93 = vadd.f32 %v23, %v87
    %v94 = vadd.f32 %v24, %v90
    %vm95 = vcmask 818176
    %96 = vst.msk [vmem:[#allocation2] sm:$0xff] %vm95, %v93
    %97 = vst.msk [vmem:[#allocation2 + $0x8] sm:$0xff] %vm95, %v94
    // Predicated region
    $region18: #{transformer_forward.77} parent=1 // pred_check
      %p98 = pneg %p16
    $region19: #{transformer_forward.77} parent=1 // pred_check_branch
      %100 = sbr.rel (%p98) target = $region21
    $region20: #{transformer_forward.77} parent=1 // pred_region
      %v101 = vld [vmem:[#allocation2] sm:$0xff]
      %v102 = vld [vmem:[#allocation2 + $0x8] sm:$0xff]
      %v103 = vld [vmem:[%s2] sm:$0x1]
      %v105 = vlaneseq
      %v106 = vshrl.u32 %v105, 7
      %v107 = vsub.s32 0, %v106
      %v108 = vrot.slane %v103, %v107
      %v110 = vadd.f32 %v101, %v108
      %v111 = vadd.f32 %v102, %v108
      %112 = vst.msk [vmem:[#allocation3] sm:$0xff] %vm95, %v110
      %113 = vst.msk [vmem:[#allocation3 + $0x8] sm:$0xff] %vm95, %v111
    $region21: #{transformer_forward.77} parent=1 // pred_fallthru
      _
    // Predicated region
    $region22: #{transformer_forward.77} parent=1 // pred_check
      _
    $region23: #{transformer_forward.77} parent=1 // pred_check_branch
      %115 = sbr.rel (0) target = $region25
    $region24: #{transformer_forward.77} parent=1 // pred_region
      %s117 = ssub.s32 256, 256
      %118 = vsyncadd [#allocation4], %s117
      %s119 = sshll.u32 [#allocation3], 4
      %s120 = int_to_ptr.vmem [resolvable:$true] %s119
      %125 = dma.vmem_to_hbm [thread:$0]  %s120, 256, %s3, [#allocation4], 128, 128, 8
    $region25: #{transformer_forward.77} parent=1 // pred_fallthru
      _
    // Predicated region
    $region26: #{transformer_forward.77} parent=1 // pred_check
      _
    $region27: #{transformer_forward.77} parent=1 // pred_check_branch
      %127 = sbr.rel (0) target = $region29
    $region28: #{transformer_forward.77} parent=1 // pred_region
      %128 = dma.done [#allocation4], 256
    $region29: #{transformer_forward.77} parent=1 // pred_fallthru
      _
    %129 = vsyncpa [#allocation4], 1

// kernel: transformer_forward.54
$region0: #{transformer_forward.54}
  #allocation0 [shape = 'u32[]', space=smem, size = 0x4, offset = 0x4, fixed_abs, tag = 'smem constant byte address 0x4 - core index']
  #allocation1 [shape = 'u32[144,128]{1,0:T(1,128)}', space=vmem, size = 0x12000, scoped, tag = 'internal scratch']
  %s0 = inlined_call_operand.vmem [shape: bf16[2,8,32], index: 0, kind: input, shape index: {}]
  %s1 = inlined_call_operand.vmem [shape: bf16[2,8,32], index: 1, kind: input, shape index: {}]
  %s2 = inlined_call_operand.vmem [shape: bf16[2,8,32], index: 2, kind: input, shape index: {}]
  %s3 = inlined_call_operand.vmem [shape: f32[2,1,8], index: 3, kind: input, shape index: {}]
  %s4 = inlined_call_operand.vmem [shape: f32[2,8,32], index: 4, kind: output, shape index: {}]
  %s5 = sld [smem:[#allocation0]]
  $region49: #{transformer_forward.54} parent=0
    _
  %s7 = ssub.s32 1, %s5
  %s8 = scalar_select 0, %s7, %s5
  loop: start=0, step=1, limit=4
  $region2: #{transformer_forward.54} parent=0 // loop_pre_header
    _
  $region3: #{transformer_forward.54} parent=0 // loop_header
    %s10 = sphi 0, %s14
    %p11 = scmp.ge.s32.totalorder %s10, 4
    %s20 = sphi 0, %s22
    %s23 = sphi 0, %s20
    %s24 = sphi 0, %s23
    %s40 = sphi 0, %s24
    %s46 = sphi 0, %s48
    %s49 = sphi 0, %s46
    %s50 = sphi 0, %s49
    %s66 = sphi 0, %s50
    %s72 = sphi 0, %s74
    %s75 = sphi 0, %s72
    %s76 = sphi 0, %s75
    %s92 = sphi 0, %s76
    %s98 = sphi 0, %s100
    %s101 = sphi 0, %s98
    %s102 = sphi 0, %s101
    %s118 = sphi 0, %s102
    %s124 = sphi 0, %s126
    %s127 = sphi 0, %s124
    %s128 = sphi 0, %s127
    %s144 = sphi 0, %s128
  $region4: #{transformer_forward.54} parent=0 // loop_header_branch
    %13 = sbr.rel (%p11) target = $region8
  $region5: #{transformer_forward.54} parent=0 // loop_body
    %s15 = ssub.s32 %s10, 1
    %s16 = ssub.s32 %s10, 2
    %s17 = sadd.s32 %s10, 1
    %s18 = ssub.s32 %s10, %s17
    %p19 = scmp.eq.s32.totalorder %s18, 0
    %s21 = sadd.s32 %s20, 1
    %s22 = scalar_select %p19, %s20, %s21
    %p25 = pneg %p19
    %p26 = scmp.eq.s32.totalorder %s10, 1
    %p27 = por %p25, %p26
    %p28 = scmp.ne.s32.totalorder %s20, %s23
    %p29 = scmp.eq.s32.totalorder %s10, 0
    %p30 = por %p28, %p29
    %p31 = scmp.ne.s32.totalorder %s20, %s23
    %p32 = scmp.eq.s32.totalorder %s15, 1
    %p33 = por %p31, %p32
    %p34 = scmp.ne.s32.totalorder %s23, %s24
    %p35 = scmp.eq.s32.totalorder %s15, 0
    %p36 = por %p34, %p35
    %p37 = scmp.ne.s32.totalorder %s23, %s24
    %p38 = scmp.eq.s32.totalorder %s16, 1
    %p39 = por %p37, %p38
    %p41 = scmp.ne.s32.totalorder %s24, %s40
    %p42 = scmp.eq.s32.totalorder %s16, 0
    %p43 = por %p41, %p42
    %s44 = ssub.s32 %s10, %s17
    %p45 = scmp.eq.s32.totalorder %s44, 0
    %s47 = sadd.s32 %s46, 1
    %s48 = scalar_select %p45, %s46, %s47
    %p51 = pneg %p45
    %p52 = scmp.eq.s32.totalorder %s10, 1
    %p53 = por %p51, %p52
    %p54 = scmp.ne.s32.totalorder %s46, %s49
    %p55 = scmp.eq.s32.totalorder %s10, 0
    %p56 = por %p54, %p55
    %p57 = scmp.ne.s32.totalorder %s46, %s49
    %p58 = scmp.eq.s32.totalorder %s15, 1
    %p59 = por %p57, %p58
    %p60 = scmp.ne.s32.totalorder %s49, %s50
    %p61 = scmp.eq.s32.totalorder %s15, 0
    %p62 = por %p60, %p61
    %p63 = scmp.ne.s32.totalorder %s49, %s50
    %p64 = scmp.eq.s32.totalorder %s16, 1
    %p65 = por %p63, %p64
    %p67 = scmp.ne.s32.totalorder %s50, %s66
    %p68 = scmp.eq.s32.totalorder %s16, 0
    %p69 = por %p67, %p68
    %s70 = ssub.s32 %s10, %s17
    %p71 = scmp.eq.s32.totalorder %s70, 0
    %s73 = sadd.s32 %s72, 1
    %s74 = scalar_select %p71, %s72, %s73
    %p77 = pneg %p71
    %p78 = scmp.eq.s32.totalorder %s10, 1
    %p79 = por %p77, %p78
    %p80 = scmp.ne.s32.totalorder %s72, %s75
    %p81 = scmp.eq.s32.totalorder %s10, 0
    %p82 = por %p80, %p81
    %p83 = scmp.ne.s32.totalorder %s72, %s75
    %p84 = scmp.eq.s32.totalorder %s15, 1
    %p85 = por %p83, %p84
    %p86 = scmp.ne.s32.totalorder %s75, %s76
    %p87 = scmp.eq.s32.totalorder %s15, 0
    %p88 = por %p86, %p87
    %p89 = scmp.ne.s32.totalorder %s75, %s76
    %p90 = scmp.eq.s32.totalorder %s16, 1
    %p91 = por %p89, %p90
    %p93 = scmp.ne.s32.totalorder %s76, %s92
    %p94 = scmp.eq.s32.totalorder %s16, 0
    %p95 = por %p93, %p94
    %s96 = ssub.s32 %s10, %s17
    %p97 = scmp.eq.s32.totalorder %s96, 0
    %s99 = sadd.s32 %s98, 1
    %s100 = scalar_select %p97, %s98, %s99
    %p103 = pneg %p97
    %p104 = scmp.eq.s32.totalorder %s10, 1
    %p105 = por %p103, %p104
    %p106 = scmp.ne.s32.totalorder %s98, %s101
    %p107 = scmp.eq.s32.totalorder %s10, 0
    %p108 = por %p106, %p107
    %p109 = scmp.ne.s32.totalorder %s98, %s101
    %p110 = scmp.eq.s32.totalorder %s15, 1
    %p111 = por %p109, %p110
    %p112 = scmp.ne.s32.totalorder %s101, %s102
    %p113 = scmp.eq.s32.totalorder %s15, 0
    %p114 = por %p112, %p113
    %p115 = scmp.ne.s32.totalorder %s101, %s102
    %p116 = scmp.eq.s32.totalorder %s16, 1
    %p117 = por %p115, %p116
    %p119 = scmp.ne.s32.totalorder %s102, %s118
    %p120 = scmp.eq.s32.totalorder %s16, 0
    %p121 = por %p119, %p120
    %s122 = ssub.s32 %s10, %s17
    %p123 = scmp.eq.s32.totalorder %s122, 0
    %s125 = sadd.s32 %s124, 1
    %s126 = scalar_select %p123, %s124, %s125
    %p129 = pneg %p123
    %p130 = scmp.eq.s32.totalorder %s10, 1
    %p131 = por %p129, %p130
    %p132 = scmp.ne.s32.totalorder %s124, %s127
    %p133 = scmp.eq.s32.totalorder %s10, 0
    %p134 = por %p132, %p133
    %p135 = scmp.ne.s32.totalorder %s124, %s127
    %p136 = scmp.eq.s32.totalorder %s15, 1
    %p137 = por %p135, %p136
    %p138 = scmp.ne.s32.totalorder %s127, %s128
    %p139 = scmp.eq.s32.totalorder %s15, 0
    %p140 = por %p138, %p139
    %p141 = scmp.ne.s32.totalorder %s127, %s128
    %p142 = scmp.eq.s32.totalorder %s16, 1
    %p143 = por %p141, %p142
    %p145 = scmp.ne.s32.totalorder %s128, %s144
    %p146 = scmp.eq.s32.totalorder %s16, 0
    %p147 = por %p145, %p146
    %p148 = scmp.le.s32.totalorder 1, %s10
    %p149 = scmp.lt.s32.totalorder %s10, 3
    %p150 = pnand %p148, %p149
    %p151 = pneg %p150
    // Predicated region
    $region9: #{transformer_forward.54} parent=5 // pred_check
      _
    $region10: #{transformer_forward.54} parent=5 // pred_check_branch
      %153 = sbr.rel (%p150) target = $region12
    $region11: #{transformer_forward.54} parent=5 // pred_region
      %s154 = ssub.s32 %s10, 1
    $region12: #{transformer_forward.54} parent=5 // pred_fallthru
      _
    %p155 = scmp.lt.s32.totalorder %s10, 2
    // Predicated region
    $region13: #{transformer_forward.54} parent=5 // pred_check
      %p156 = pneg %p155
    $region14: #{transformer_forward.54} parent=5 // pred_check_branch
      %158 = sbr.rel (%p156) target = $region16
    $region15: #{transformer_forward.54} parent=5 // pred_region
      // Predicated region
      $region17: #{transformer_forward.54} parent=15 // pred_check
        %p159 = pneg %p30
      $region18: #{transformer_forward.54} parent=15 // pred_check_branch
        %161 = sbr.rel (%p159) target = $region20
      $region19: #{transformer_forward.54} parent=15 // pred_region
        %p162 = scmp.lt.s32.totalorder %s10, 1
        %s163 = scalar_select %p162, %s10, 1
        %s164 = smul.addr %s163, 4
        %s165 = scalar_lea.vmem %s0, %s164
      $region20: #{transformer_forward.54} parent=15 // pred_fallthru
        _
      // Predicated region
      $region21: #{transformer_forward.54} parent=15 // pred_check
        %p166 = pneg %p56
      $region22: #{transformer_forward.54} parent=15 // pred_check_branch
        %168 = sbr.rel (%p166) target = $region24
      $region23: #{transformer_forward.54} parent=15 // pred_region
        %p169 = scmp.lt.s32.totalorder %s10, 1
        %s170 = scalar_select %p169, %s10, 1
        %s171 = smul.addr %s170, 4
        %s172 = scalar_lea.vmem %s1, %s171
      $region24: #{transformer_forward.54} parent=15 // pred_fallthru
        _
      // Predicated region
      $region25: #{transformer_forward.54} parent=15 // pred_check
        %p173 = pneg %p82
      $region26: #{transformer_forward.54} parent=15 // pred_check_branch
        %175 = sbr.rel (%p173) target = $region28
      $region27: #{transformer_forward.54} parent=15 // pred_region
        %p176 = scmp.lt.s32.totalorder %s10, 1
        %s177 = scalar_select %p176, %s10, 1
        %s178 = smul.addr %s177, 4
        %s179 = scalar_lea.vmem %s2, %s178
      $region28: #{transformer_forward.54} parent=15 // pred_fallthru
        _
      // Predicated region
      $region29: #{transformer_forward.54} parent=15 // pred_check
        %p180 = pneg %p108
      $region30: #{transformer_forward.54} parent=15 // pred_check_branch
        %182 = sbr.rel (%p180) target = $region32
      $region31: #{transformer_forward.54} parent=15 // pred_region
        %p183 = scmp.lt.s32.totalorder %s10, 1
        %s184 = scalar_select %p183, %s10, 1
        %s185 = scalar_lea.vmem %s3, %s184
      $region32: #{transformer_forward.54} parent=15 // pred_fallthru
        _
    $region16: #{transformer_forward.54} parent=5 // pred_fallthru
      _
    %p186 = scmp.le.s32.totalorder 1, %s10
    %p187 = scmp.lt.s32.totalorder %s10, 3
    %p188 = pnand %p186, %p187
    %p189 = pneg %p188
    // Predicated region
    $region33: #{transformer_forward.54} parent=5 // pred_check
      _
    $region34: #{transformer_forward.54} parent=5 // pred_check_branch
      %191 = sbr.rel (%p188) target = $region36
    $region35: #{transformer_forward.54} parent=5 // pred_region
      %s192 = ssub.s32 %s10, 1
      %p193 = scmp.lt.s32.totalorder %s15, 1
      %s194 = scalar_select %p193, %s15, 1
      %s195 = smul.addr %s194, 4
      %s196 = scalar_lea.vmem %s0, %s195
      %p197 = pneg %p36
      %p198 = pneg %p33
      %p199 = scmp.lt.s32.totalorder %s15, 1
      %s200 = scalar_select %p199, %s15, 1
      %s201 = smul.addr %s200, 4
      %s202 = scalar_lea.vmem %s1, %s201
      %p203 = pneg %p62
      %p204 = pneg %p59
      %p205 = scmp.lt.s32.totalorder %s15, 1
      %s206 = scalar_select %p205, %s15, 1
      %s207 = smul.addr %s206, 4
      %s208 = scalar_lea.vmem %s2, %s207
      %p209 = pneg %p88
      %p210 = pneg %p85
      %p211 = scmp.lt.s32.totalorder %s15, 1
      %s212 = scalar_select %p211, %s15, 1
      %s213 = scalar_lea.vmem %s3, %s212
      %p214 = pneg %p114
      %p215 = pneg %p111
      %p216 = pneg %p140
      %p217 = pneg %p137
      %p218 = scmp.lt.s32.totalorder %s15, 1
      %s219 = scalar_select %p218, %s15, 1
      %s220 = smul.addr %s219, 8
      %s221 = scalar_lea.vmem %s4, %s220
      %p222 = scmp.lt.s32.totalorder %s15, 1
      %s223 = scalar_select %p222, %s15, 1
      %s224 = smul.addr %s223, 4
      %s225 = scalar_lea.vmem %s0, %s224
      %p226 = scmp.lt.s32.totalorder %s15, 1
      %s227 = scalar_select %p226, %s15, 1
      %s228 = smul.addr %s227, 4
      %s229 = scalar_lea.vmem %s1, %s228
      %p230 = scmp.lt.s32.totalorder %s15, 1
      %s231 = scalar_select %p230, %s15, 1
      %s232 = smul.addr %s231, 4
      %s233 = scalar_lea.vmem %s2, %s232
      %p234 = scmp.lt.s32.totalorder %s15, 1
      %s235 = scalar_select %p234, %s15, 1
      %s236 = scalar_lea.vmem %s3, %s235
      %p237 = scmp.lt.s32.totalorder %s15, 1
      %s238 = scalar_select %p237, %s15, 1
      %s239 = smul.addr %s238, 8
      %s240 = scalar_lea.vmem %s4, %s239
      %v242 = vld [vmem:[%s225] sm:$0xf]
      %v243 = vld [vmem:[%s229] sm:$0xf]
      %v244 = vld [vmem:[%s233] sm:$0xf]
      %v245 = vld [vmem:[%s236] sm:$0x1]
      %v246 = vlaneseq
      %v247 = vshrl.u32 %v246, 7
      %v248 = vlaneseq
      %v249 = vand.u32 %v248, 127
      %vm250 = vcmp.gt.s32.totalorder %v249, %v247
      %v251 = vsel %vm250, -1e+09, 0.0
      %vm252 = vcmask 64512
      %v254 = vsel %vm252, %v242, 0
      %v257 = vsel %vm252, %v243, 0
      %259 = vmatprep.subr.bf16.mxu0 0
      %260 = vmatpush1.bf16.xpose.msra.mxu0 %v257
      %261 = vmatprep.subr.bf16.mxu0 0
      %262 = vmatpush1.bf16.xpose.msra.mxu0 0
      %263 = vmatprep.subr.bf16.mxu0 0
      %264 = vmatpush1.bf16.xpose.msra.mxu0 0
      %265 = vmatprep.subr.bf16.mxu0 0
      %266 = vmatpush1.bf16.xpose.msra.mxu0 0
      %267 = vmatprep.subr.bf16.mxu0 0
      %268 = vmatpush1.bf16.xpose.msra.mxu0 0
      %269 = vmatprep.subr.bf16.mxu0 0
      %270 = vmatpush1.bf16.xpose.msra.mxu0 0
      %271 = vmatprep.subr.bf16.mxu0 0
      %272 = vmatpush1.bf16.xpose.msra.mxu0 0
      %273 = vmatprep.subr.bf16.mxu0 0
      %274 = vmatpush1.bf16.xpose.msra.mxu0 0
      %275 = vmatprep.subr.bf16.mxu0 0
      %276 = vmatpush1.bf16.xpose.msra.mxu0 0
      %277 = vmatprep.subr.bf16.mxu0 0
      %278 = vmatpush1.bf16.xpose.msra.mxu0 0
      %279 = vmatprep.subr.bf16.mxu0 0
      %280 = vmatpush1.bf16.xpose.msra.mxu0 0
      %281 = vmatprep.subr.bf16.mxu0 0
      %282 = vmatpush1.bf16.xpose.msra.mxu0 0
      %283 = vmatprep.subr.bf16.mxu0 0
      %284 = vmatpush1.bf16.xpose.msra.mxu0 0
      %285 = vmatprep.subr.bf16.mxu0 0
      %286 = vmatpush1.bf16.xpose.msra.mxu0 0
      %287 = vmatprep.subr.bf16.mxu0 0
      %288 = vmatpush1.bf16.xpose.msra.mxu0 0
      %289 = vmatprep.subr.bf16.mxu0 0
      %290 = vmatpush1.bf16.xpose.msra.mxu0 0
      %291 = vmatprep.mubr.bf16.mxu0 0
      %292 = vmatmul.mubr.bf16.gmra.mrb[0].mxu0 %v254
      %v293 = vpop.f32.mrb[0].mxu0
      %v294 = vadd.f32 0.0, %v293
      %v295 = vpop.f32.mrb[0].mxu0
      %v296 = vpop.f32.mrb[0].mxu0
      %v297 = vpop.f32.mrb[0].mxu0
      %298 = vdwg.mxu0
      %v299 = vmul.f32 %v294, 0.35355338
      %v301 = vlaneseq
      %v302 = vshrl.u32 %v301, 7
      %v303 = vsub.s32 0, %v302
      %v304 = vrot.slane %v245, %v303
      %v306 = vadd.f32 %v299, %v304
      %v307 = vadd.f32 %v306, %v251
      %v308 = vsel %vm252, %v307, -inf
      %309 = vmax.xlane.f32.xlu0 %v308
      %v310 = vpop.xlane.xlu0 %309
      %v311 = vsub.f32 %v307, %v310
      %v312 = vmul.f32 %v311, 1.442695
      %v313 = vpow.pop %v312
      %v314 = vsel %vm252, %v313, 0.0
      %315 = vadd.xlane.f32.xlu0 %v314
      %v316 = vpop.xlane.xlu0 %315
      %v317 = vrcp.pop %v316
      %v318 = vmul.f32 %v313, %v317
      %v319 = vpack.c.bf16 %v318, %v318
      %v321 = vsel %vm252, %v319, 0
      %vm323 = vcmask 1043456
      %v325 = vsel %vm323, %v244, 0
      %327 = vmatprep.subr.bf16.mxu0 0
      %328 = vmatpush1.bf16.msra.mxu0 %v325
      %329 = vmatprep.subr.bf16.mxu0 0
      %330 = vmatpush1.bf16.msra.mxu0 0
      %331 = vmatprep.subr.bf16.mxu0 0
      %332 = vmatpush1.bf16.msra.mxu0 0
      %333 = vmatprep.subr.bf16.mxu0 0
      %334 = vmatpush1.bf16.msra.mxu0 0
      %335 = vmatprep.subr.bf16.mxu0 0
      %336 = vmatpush1.bf16.msra.mxu0 0
      %337 = vmatprep.subr.bf16.mxu0 0
      %338 = vmatpush1.bf16.msra.mxu0 0
      %339 = vmatprep.subr.bf16.mxu0 0
      %340 = vmatpush1.bf16.msra.mxu0 0
      %341 = vmatprep.subr.bf16.mxu0 0
      %342 = vmatpush1.bf16.msra.mxu0 0
      %343 = vmatprep.subr.bf16.mxu0 0
      %344 = vmatpush1.bf16.msra.mxu0 0
      %345 = vmatprep.subr.bf16.mxu0 0
      %346 = vmatpush1.bf16.msra.mxu0 0
      %347 = vmatprep.subr.bf16.mxu0 0
      %348 = vmatpush1.bf16.msra.mxu0 0
      %349 = vmatprep.subr.bf16.mxu0 0
      %350 = vmatpush1.bf16.msra.mxu0 0
      %351 = vmatprep.subr.bf16.mxu0 0
      %352 = vmatpush1.bf16.msra.mxu0 0
      %353 = vmatprep.subr.bf16.mxu0 0
      %354 = vmatpush1.bf16.msra.mxu0 0
      %355 = vmatprep.subr.bf16.mxu0 0
      %356 = vmatpush1.bf16.msra.mxu0 0
      %357 = vmatprep.subr.bf16.mxu0 0
      %358 = vmatpush1.bf16.msra.mxu0 0
      %359 = vmatprep.mubr.bf16.mxu0 0
      %360 = vmatmul.mubr.bf16.gmra.mrb[0].mxu0 %v321
      %v361 = vpop.f32.mrb[0].mxu0
      %v362 = vadd.f32 0.0, %v361
      %v363 = vpop.f32.mrb[0].mxu0
      %v364 = vpop.f32.mrb[0].mxu0
      %v365 = vpop.f32.mrb[0].mxu0
      %366 = vdwg.mxu0
      %367 = vst.msk [vmem:[%s240] sm:$0xff] %vm252, %v362
      %v369 = vunpack.c.l.b16 %v242
      %v370 = vpack.c.b16 %v369, %v369
      %371 = vrot.lane.b32.xlu0 %v370, 120
      %v372 = vpop.permute.xlu0 %371
      %v374 = vunpack.c.l.b16 %v243
      %v375 = vpack.c.b16 %v374, %v374
      %376 = vrot.lane.b32.xlu0 %v375, 120
      %v377 = vpop.permute.xlu0 %376
      %v379 = vsel %vm252, %v372, 0
      %v382 = vsel %vm252, %v377, 0
      %384 = vmatprep.subr.bf16.mxu0 0
      %385 = vmatpush1.bf16.xpose.msra.mxu0 %v382
      %386 = vmatprep.subr.bf16.mxu0 0
      %387 = vmatpush1.bf16.xpose.msra.mxu0 0
      %388 = vmatprep.subr.bf16.mxu0 0
      %389 = vmatpush1.bf16.xpose.msra.mxu0 0
      %390 = vmatprep.subr.bf16.mxu0 0
      %391 = vmatpush1.bf16.xpose.msra.mxu0 0
      %392 = vmatprep.subr.bf16.mxu0 0
      %393 = vmatpush1.bf16.xpose.msra.mxu0 0
      %394 = vmatprep.subr.bf16.mxu0 0
      %395 = vmatpush1.bf16.xpose.msra.mxu0 0
      %396 = vmatprep.subr.bf16.mxu0 0
      %397 = vmatpush1.bf16.xpose.msra.mxu0 0
      %398 = vmatprep.subr.bf16.mxu0 0
      %399 = vmatpush1.bf16.xpose.msra.mxu0 0
      %400 = vmatprep.subr.bf16.mxu0 0
      %401 = vmatpush1.bf16.xpose.msra.mxu0 0
      %402 = vmatprep.subr.bf16.mxu0 0
      %403 = vmatpush1.bf16.xpose.msra.mxu0 0
      %404 = vmatprep.subr.bf16.mxu0 0
      %405 = vmatpush1.bf16.xpose.msra.mxu0 0
      %406 = vmatprep.subr.bf16.mxu0 0
      %407 = vmatpush1.bf16.xpose.msra.mxu0 0
      %408 = vmatprep.subr.bf16.mxu0 0
      %409 = vmatpush1.bf16.xpose.msra.mxu0 0
      %410 = vmatprep.subr.bf16.mxu0 0
      %411 = vmatpush1.bf16.xpose.msra.mxu0 0
      %412 = vmatprep.subr.bf16.mxu0 0
      %413 = vmatpush1.bf16.xpose.msra.mxu0 0
      %414 = vmatprep.subr.bf16.mxu0 0
      %415 = vmatpush1.bf16.xpose.msra.mxu0 0
      %416 = vmatprep.mubr.bf16.mxu0 0
      %417 = vmatmul.mubr.bf16.gmra.mrb[0].mxu0 %v379
      %v418 = vpop.f32.mrb[0].mxu0
      %v419 = vadd.f32 0.0, %v418
      %v420 = vpop.f32.mrb[0].mxu0
      %v421 = vpop.f32.mrb[0].mxu0
      %v422 = vpop.f32.mrb[0].mxu0
      %423 = vdwg.mxu0
      %v424 = vmul.f32 %v419, 0.35355338
      %v425 = vadd.f32 %v424, %v304
      %v426 = vadd.f32 %v425, %v251
      %v427 = vsel %vm252, %v426, -inf
      %428 = vmax.xlane.f32.xlu0 %v427
      %v429 = vpop.xlane.xlu0 %428
      %v430 = vsub.f32 %v426, %v429
      %v431 = vmul.f32 %v430, 1.442695
      %v432 = vpow.pop %v431
      %v433 = vsel %vm252, %v432, 0.0
      %434 = vadd.xlane.f32.xlu0 %v433
      %v435 = vpop.xlane.xlu0 %434
      %v436 = vrcp.pop %v435
      %v437 = vmul.f32 %v432, %v436
      %v438 = vpack.c.bf16 %v437, %v437
      %v440 = vunpack.c.l.b16 %v244
      %v441 = vpack.c.b16 %v440, %v440
      %442 = vrot.lane.b32.xlu0 %v441, 120
      %v443 = vpop.permute.xlu0 %442
      %v445 = vsel %vm252, %v438, 0
      %v448 = vsel %vm323, %v443, 0
      %450 = vmatprep.subr.bf16.mxu0 0
      %451 = vmatpush1.bf16.msra.mxu0 %v448
      %452 = vmatprep.subr.bf16.mxu0 0
      %453 = vmatpush1.bf16.msra.mxu0 0
      %454 = vmatprep.subr.bf16.mxu0 0
      %455 = vmatpush1.bf16.msra.mxu0 0
      %456 = vmatprep.subr.bf16.mxu0 0
      %457 = vmatpush1.bf16.msra.mxu0 0
      %458 = vmatprep.subr.bf16.mxu0 0
      %459 = vmatpush1.bf16.msra.mxu0 0
      %460 = vmatprep.subr.bf16.mxu0 0
      %461 = vmatpush1.bf16.msra.mxu0 0
      %462 = vmatprep.subr.bf16.mxu0 0
      %463 = vmatpush1.bf16.msra.mxu0 0
      %464 = vmatprep.subr.bf16.mxu0 0
      %465 = vmatpush1.bf16.msra.mxu0 0
      %466 = vmatprep.subr.bf16.mxu0 0
      %467 = vmatpush1.bf16.msra.mxu0 0
      %468 = vmatprep.subr.bf16.mxu0 0
      %469 = vmatpush1.bf16.msra.mxu0 0
      %470 = vmatprep.subr.bf16.mxu0 0
      %471 = vmatpush1.bf16.msra.mxu0 0
      %472 = vmatprep.subr.bf16.mxu0 0
      %473 = vmatpush1.bf16.msra.mxu0 0
      %474 = vmatprep.subr.bf16.mxu0 0
      %475 = vmatpush1.bf16.msra.mxu0 0
      %476 = vmatprep.subr.bf16.mxu0 0
      %477 = vmatpush1.bf16.msra.mxu0 0
      %478 = vmatprep.subr.bf16.mxu0 0
      %479 = vmatpush1.bf16.msra.mxu0 0
      %480 = vmatprep.subr.bf16.mxu0 0
      %481 = vmatpush1.bf16.msra.mxu0 0
      %482 = vmatprep.mubr.bf16.mxu0 0
      %483 = vmatmul.mubr.bf16.gmra.mrb[0].mxu0 %v445
      %v484 = vpop.f32.mrb[0].mxu0
      %v485 = vadd.f32 0.0, %v484
      %v486 = vpop.f32.mrb[0].mxu0
      %v487 = vpop.f32.mrb[0].mxu0
      %v488 = vpop.f32.mrb[0].mxu0
      %489 = vdwg.mxu0
      %491 = vrot.lane.b32.xlu0 %v485, 8
      %v492 = vpop.permute.xlu0 %491
      %vm494 = vcmask 130112
      %495 = vst.msk [vmem:[%s240] sm:$0xff] %vm494, %v492
      %496 = vrot.lane.b32.xlu0 %v370, 112
      %v497 = vpop.permute.xlu0 %496
      %498 = vrot.lane.b32.xlu0 %v375, 112
      %v499 = vpop.permute.xlu0 %498
      %v501 = vsel %vm252, %v497, 0
      %v504 = vsel %vm252, %v499, 0
      %506 = vmatprep.subr.bf16.mxu0 0
      %507 = vmatpush1.bf16.xpose.msra.mxu0 %v504
      %508 = vmatprep.subr.bf16.mxu0 0
      %509 = vmatpush1.bf16.xpose.msra.mxu0 0
      %510 = vmatprep.subr.bf16.mxu0 0
      %511 = vmatpush1.bf16.xpose.msra.mxu0 0
      %512 = vmatprep.subr.bf16.mxu0 0
      %513 = vmatpush1.bf16.xpose.msra.mxu0 0
      %514 = vmatprep.subr.bf16.mxu0 0
      %515 = vmatpush1.bf16.xpose.msra.mxu0 0
      %516 = vmatprep.subr.bf16.mxu0 0
      %517 = vmatpush1.bf16.xpose.msra.mxu0 0
      %518 = vmatprep.subr.bf16.mxu0 0
      %519 = vmatpush1.bf16.xpose.msra.mxu0 0
      %520 = vmatprep.subr.bf16.mxu0 0
      %521 = vmatpush1.bf16.xpose.msra.mxu0 0
      %522 = vmatprep.subr.bf16.mxu0 0
      %523 = vmatpush1.bf16.xpose.msra.mxu0 0
      %524 = vmatprep.subr.bf16.mxu0 0
      %525 = vmatpush1.bf16.xpose.msra.mxu0 0
      %526 = vmatprep.subr.bf16.mxu0 0
      %527 = vmatpush1.bf16.xpose.msra.mxu0 0
      %528 = vmatprep.subr.bf16.mxu0 0
      %529 = vmatpush1.bf16.xpose.msra.mxu0 0
      %530 = vmatprep.subr.bf16.mxu0 0
      %531 = vmatpush1.bf16.xpose.msra.mxu0 0
      %532 = vmatprep.subr.bf16.mxu0 0
      %533 = vmatpush1.bf16.xpose.msra.mxu0 0
      %534 = vmatprep.subr.bf16.mxu0 0
      %535 = vmatpush1.bf16.xpose.msra.mxu0 0
      %536 = vmatprep.subr.bf16.mxu0 0
      %537 = vmatpush1.bf16.xpose.msra.mxu0 0
      %538 = vmatprep.mubr.bf16.mxu0 0
      %539 = vmatmul.mubr.bf16.gmra.mrb[0].mxu0 %v501
      %v540 = vpop.f32.mrb[0].mxu0
      %v541 = vadd.f32 0.0, %v540
      %v542 = vpop.f32.mrb[0].mxu0
      %v543 = vpop.f32.mrb[0].mxu0
      %v544 = vpop.f32.mrb[0].mxu0
      %545 = vdwg.mxu0
      %v546 = vmul.f32 %v541, 0.35355338
      %v547 = vadd.f32 %v546, %v304
      %v548 = vadd.f32 %v547, %v251
      %v549 = vsel %vm252, %v548, -inf
      %550 = vmax.xlane.f32.xlu0 %v549
      %v551 = vpop.xlane.xlu0 %550
      %v552 = vsub.f32 %v548, %v551
      %v553 = vmul.f32 %v552, 1.442695
      %v554 = vpow.pop %v553
      %v555 = vsel %vm252, %v554, 0.0
      %556 = vadd.xlane.f32.xlu0 %v555
      %v557 = vpop.xlane.xlu0 %556
      %v558 = vrcp.pop %v557
      %v559 = vmul.f32 %v554, %v558
      %v560 = vpack.c.bf16 %v559, %v559
      %561 = vrot.lane.b32.xlu0 %v441, 112
      %v562 = vpop.permute.xlu0 %561
      %v564 = vsel %vm252, %v560, 0
      %v567 = vsel %vm323, %v562, 0
      %569 = vmatprep.subr.bf16.mxu0 0
      %570 = vmatpush1.bf16.msra.mxu0 %v567
      %571 = vmatprep.subr.bf16.mxu0 0
      %572 = vmatpush1.bf16.msra.mxu0 0
      %573 = vmatprep.subr.bf16.mxu0 0
      %574 = vmatpush1.bf16.msra.mxu0 0
      %575 = vmatprep.subr.bf16.mxu0 0
      %576 = vmatpush1.bf16.msra.mxu0 0
      %577 = vmatprep.subr.bf16.mxu0 0
      %578 = vmatpush1.bf16.msra.mxu0 0
      %579 = vmatprep.subr.bf16.mxu0 0
      %580 = vmatpush1.bf16.msra.mxu0 0
      %581 = vmatprep.subr.bf16.mxu0 0
      %582 = vmatpush1.bf16.msra.mxu0 0
      %583 = vmatprep.subr.bf16.mxu0 0
      %584 = vmatpush1.bf16.msra.mxu0 0
      %585 = vmatprep.subr.bf16.mxu0 0
      %586 = vmatpush1.bf16.msra.mxu0 0
      %587 = vmatprep.subr.bf16.mxu0 0
      %588 = vmatpush1.bf16.msra.mxu0 0
      %589 = vmatprep.subr.bf16.mxu0 0
      %590 = vmatpush1.bf16.msra.mxu0 0
      %591 = vmatprep.subr.bf16.mxu0 0
      %592 = vmatpush1.bf16.msra.mxu0 0
      %593 = vmatprep.subr.bf16.mxu0 0
      %594 = vmatpush1.bf16.msra.mxu0 0
      %595 = vmatprep.subr.bf16.mxu0 0
      %596 = vmatpush1.bf16.msra.mxu0 0
      %597 = vmatprep.subr.bf16.mxu0 0
      %598 = vmatpush1.bf16.msra.mxu0 0
      %599 = vmatprep.subr.bf16.mxu0 0
      %600 = vmatpush1.bf16.msra.mxu0 0
      %601 = vmatprep.mubr.bf16.mxu0 0
      %602 = vmatmul.mubr.bf16.gmra.mrb[0].mxu0 %v564
      %v603 = vpop.f32.mrb[0].mxu0
      %v604 = vadd.f32 0.0, %v603
      %v605 = vpop.f32.mrb[0].mxu0
      %v606 = vpop.f32.mrb[0].mxu0
      %v607 = vpop.f32.mrb[0].mxu0
      %608 = vdwg.mxu0
      %610 = vrot.lane.b32.xlu0 %v604, 16
      %v611 = vpop.permute.xlu0 %610
      %vm613 = vcmask 195712
      %614 = vst.msk [vmem:[%s240] sm:$0xff] %vm613, %v611
      %615 = vrot.lane.b32.xlu0 %v370, 104
      %v616 = vpop.permute.xlu0 %615
      %617 = vrot.lane.b32.xlu0 %v375, 104
      %v618 = vpop.permute.xlu0 %617
      %v620 = vsel %vm252, %v616, 0
      %v623 = vsel %vm252, %v618, 0
      %625 = vmatprep.subr.bf16.mxu0 0
      %626 = vmatpush1.bf16.xpose.msra.mxu0 %v623
      %627 = vmatprep.subr.bf16.mxu0 0
      %628 = vmatpush1.bf16.xpose.msra.mxu0 0
      %629 = vmatprep.subr.bf16.mxu0 0
      %630 = vmatpush1.bf16.xpose.msra.mxu0 0
      %631 = vmatprep.subr.bf16.mxu0 0
      %632 = vmatpush1.bf16.xpose.msra.mxu0 0
      %633 = vmatprep.subr.bf16.mxu0 0
      %634 = vmatpush1.bf16.xpose.msra.mxu0 0
      %635 = vmatprep.subr.bf16.mxu0 0
      %636 = vmatpush1.bf16.xpose.msra.mxu0 0
      %637 = vmatprep.subr.bf16.mxu0 0
      %638 = vmatpush1.bf16.xpose.msra.mxu0 0
      %639 = vmatprep.subr.bf16.mxu0 0
      %640 = vmatpush1.bf16.xpose.msra.mxu0 0
      %641 = vmatprep.subr.bf16.mxu0 0
      %642 = vmatpush1.bf16.xpose.msra.mxu0 0
      %643 = vmatprep.subr.bf16.mxu0 0
      %644 = vmatpush1.bf16.xpose.msra.mxu0 0
      %645 = vmatprep.subr.bf16.mxu0 0
      %646 = vmatpush1.bf16.xpose.msra.mxu0 0
      %647 = vmatprep.subr.bf16.mxu0 0
      %648 = vmatpush1.bf16.xpose.msra.mxu0 0
      %649 = vmatprep.subr.bf16.mxu0 0
      %650 = vmatpush1.bf16.xpose.msra.mxu0 0
      %651 = vmatprep.subr.bf16.mxu0 0
      %652 = vmatpush1.bf16.xpose.msra.mxu0 0
      %653 = vmatprep.subr.bf16.mxu0 0
      %654 = vmatpush1.bf16.xpose.msra.mxu0 0
      %655 = vmatprep.subr.bf16.mxu0 0
      %656 = vmatpush1.bf16.xpose.msra.mxu0 0
      %657 = vmatprep.mubr.bf16.mxu0 0
      %658 = vmatmul.mubr.bf16.gmra.mrb[0].mxu0 %v620
      %v659 = vpop.f32.mrb[0].mxu0
      %v660 = vadd.f32 0.0, %v659
      %v661 = vpop.f32.mrb[0].mxu0
      %v662 = vpop.f32.mrb[0].mxu0
      %v663 = vpop.f32.mrb[0].mxu0
      %664 = vdwg.mxu0
      %v665 = vmul.f32 %v660, 0.35355338
      %v666 = vadd.f32 %v665, %v304
      %v667 = vadd.f32 %v666, %v251
      %v668 = vsel %vm252, %v667, -inf
      %669 = vmax.xlane.f32.xlu0 %v668
      %v670 = vpop.xlane.xlu0 %669
      %v671 = vsub.f32 %v667, %v670
      %v672 = vmul.f32 %v671, 1.442695
      %v673 = vpow.pop %v672
      %v674 = vsel %vm252, %v673, 0.0
      %675 = vadd.xlane.f32.xlu0 %v674
      %v676 = vpop.xlane.xlu0 %675
      %v677 = vrcp.pop %v676
      %v678 = vmul.f32 %v673, %v677
      %v679 = vpack.c.bf16 %v678, %v678
      %680 = vrot.lane.b32.xlu0 %v441, 104
      %v681 = vpop.permute.xlu0 %680
      %v683 = vsel %vm252, %v679, 0
      %v686 = vsel %vm323, %v681, 0
      %688 = vmatprep.subr.bf16.mxu0 0
      %689 = vmatpush1.bf16.msra.mxu0 %v686
      %690 = vmatprep.subr.bf16.mxu0 0
      %691 = vmatpush1.bf16.msra.mxu0 0
      %692 = vmatprep.subr.bf16.mxu0 0
      %693 = vmatpush1.bf16.msra.mxu0 0
      %694 = vmatprep.subr.bf16.mxu0 0
      %695 = vmatpush1.bf16.msra.mxu0 0
      %696 = vmatprep.subr.bf16.mxu0 0
      %697 = vmatpush1.bf16.msra.mxu0 0
      %698 = vmatprep.subr.bf16.mxu0 0
      %699 = vmatpush1.bf16.msra.mxu0 0
      %700 = vmatprep.subr.bf16.mxu0 0
      %701 = vmatpush1.bf16.msra.mxu0 0
      %702 = vmatprep.subr.bf16.mxu0 0
      %703 = vmatpush1.bf16.msra.mxu0 0
      %704 = vmatprep.subr.bf16.mxu0 0
      %705 = vmatpush1.bf16.msra.mxu0 0
      %706 = vmatprep.subr.bf16.mxu0 0
      %707 = vmatpush1.bf16.msra.mxu0 0
      %708 = vmatprep.subr.bf16.mxu0 0
      %709 = vmatpush1.bf16.msra.mxu0 0
      %710 = vmatprep.subr.bf16.mxu0 0
      %711 = vmatpush1.bf16.msra.mxu0 0
      %712 = vmatprep.subr.bf16.mxu0 0
      %713 = vmatpush1.bf16.msra.mxu0 0
      %714 = vmatprep.subr.bf16.mxu0 0
      %715 = vmatpush1.bf16.msra.mxu0 0
      %716 = vmatprep.subr.bf16.mxu0 0
      %717 = vmatpush1.bf16.msra.mxu0 0
      %718 = vmatprep.subr.bf16.mxu0 0
      %719 = vmatpush1.bf16.msra.mxu0 0
      %720 = vmatprep.mubr.bf16.mxu0 0
      %721 = vmatmul.mubr.bf16.gmra.mrb[0].mxu0 %v683
      %v722 = vpop.f32.mrb[0].mxu0
      %v723 = vadd.f32 0.0, %v722
      %v724 = vpop.f32.mrb[0].mxu0
      %v725 = vpop.f32.mrb[0].mxu0
      %v726 = vpop.f32.mrb[0].mxu0
      %727 = vdwg.mxu0
      %729 = vrot.lane.b32.xlu0 %v723, 24
      %v730 = vpop.permute.xlu0 %729
      %vm732 = vcmask 261312
      %733 = vst.msk [vmem:[%s240] sm:$0xff] %vm732, %v730
      %p734 = scmp.lt.s32.totalorder %s15, 1
      %s735 = scalar_select %p734, %s15, 1
      %s736 = smul.addr %s735, 8
      %s737 = scalar_lea.vmem %s4, %s736
      // Predicated region
      $region37: #{transformer_forward.54} parent=35 // pred_check
        %p738 = pneg %p137
      $region38: #{transformer_forward.54} parent=35 // pred_check_branch
        %740 = sbr.rel (%p738) target = $region40
      $region39: #{transformer_forward.54} parent=35 // pred_region
        _
      $region40: #{transformer_forward.54} parent=35 // pred_fallthru
        _
    $region36: #{transformer_forward.54} parent=5 // pred_fallthru
      _
    %p741 = scmp.le.s32.totalorder 2, %s10
    // Predicated region
    $region41: #{transformer_forward.54} parent=5 // pred_check
      %p742 = pneg %p741
    $region42: #{transformer_forward.54} parent=5 // pred_check_branch
      %744 = sbr.rel (%p742) target = $region44
    $region43: #{transformer_forward.54} parent=5 // pred_region
      %s745 = ssub.s32 %s10, 2
      // Predicated region
      $region45: #{transformer_forward.54} parent=43 // pred_check
        %p746 = pneg %p143
      $region46: #{transformer_forward.54} parent=43 // pred_check_branch
        %748 = sbr.rel (%p746) target = $region48
      $region47: #{transformer_forward.54} parent=43 // pred_region
        %p749 = scmp.lt.s32.totalorder %s16, 1
        %s750 = scalar_select %p749, %s16, 1
        %s751 = smul.addr %s750, 8
        %s752 = scalar_lea.vmem %s4, %s751
      $region48: #{transformer_forward.54} parent=43 // pred_fallthru
        _
    $region44: #{transformer_forward.54} parent=5 // pred_fallthru
      _
  $region6: #{transformer_forward.54} parent=0 // loop_footer
    %s14 = sadd.s32 1, %s10
  $region7: #{transformer_forward.54} parent=0 // loop_footer_branch
    %9 = sbr.rel target = $region3
  $region8: #{transformer_forward.54} parent=0 // loop_exit
    _

</llo_original>
